<compile_context>
chip_gen: v6e
topology: v6e:2x2x1
jax: 0.10.0
libtpu: 0.0.40
codegen_flags: <defaults>
</compile_context>

<pallas_src>
import functools

import jax
import jax.numpy as jnp
from jax.experimental import pallas as pl
from jax.experimental.pallas import tpu as pltpu


# ----------------------------------------------------------------------------
# VGG16 feature-stack description (torchvision layer indexing):
#   0 conv(3,64) 1 relu 2 conv(64,64) 3 relu 4 maxpool 5 conv(64,128) ...
# ----------------------------------------------------------------------------
VGG16_CFG = [64, 64, 'M', 128, 128, 'M', 256, 256, 256, 'M',
             512, 512, 512, 'M', 512, 512, 512, 'M']

_MAX_TILE_ROWS = 8                       # output rows per conv grid step
_VMEM_LIMIT_BYTES = 48 * 1024 * 1024     # safe on v5e/v6e (128 MiB) and v7x (64 MiB)


def build_vgg_layers(perceptual_layers, key):
    """Build the first (perceptual_layers+1) layers of vgg16.features.

    Returns a list of ('conv', w_hwio, b) / ('relu',) / ('pool',) tuples.
    Weights are deterministic synthetic stand-ins for the pretrained ones.
    """
    layers = []
    in_c = 3
    idx = 0
    for v in VGG16_CFG:
        if v == 'M':
            layers.append(('pool',))
            idx += 1
        else:
            key, k_w, k_b = jax.random.split(key, 3)
            fan_in = 9 * in_c
            w = jax.random.normal(k_w, (3, 3, in_c, v), jnp.float32) / jnp.sqrt(
                jnp.float32(fan_in))
            b = 0.01 * jax.random.normal(k_b, (1, v), jnp.float32)
            layers.append(('conv', w, b))
            idx += 1
            layers.append(('relu',))
            idx += 1
            in_c = v
        if idx > perceptual_layers:
            break
    return layers[:perceptual_layers + 1]


def _pick_rows(h, *, need_even):
    """Largest divisor of h <= _MAX_TILE_ROWS (even when need_even)."""
    best = None
    for d in range(1, h + 1):
        if h % d:
            continue
        if need_even and d % 2:
            continue
        if d <= _MAX_TILE_ROWS:
            best = d
    return best if best is not None else h


# ----------------------------------------------------------------------------
# 3x3 SAME conv (+ bias, fused ReLU, fused 2x2 maxpool), row-tiled with halo.
# ----------------------------------------------------------------------------
def _conv3x3_kernel(xm_ref, xh0_ref, xh1_ref, w_ref, b_ref, o_ref, xbuf,
                    *pool_scratch, rows, width, cin, cout, relu, pool):
    # Assemble the (rows+2, W+2, Cin) halo window in bf16; this doubles as the
    # cast that feeds the MXU.
    xbuf[0:rows] = xm_ref[0].astype(jnp.bfloat16)
    xbuf[rows] = xh0_ref[0, 0].astype(jnp.bfloat16)
    xbuf[rows + 1] = xh1_ref[0, 0].astype(jnp.bfloat16)
    xv = xbuf[...]                                   # (rows+2, W+2, Cin) bf16

    acc = None
    for dx in range(3):
        # One unaligned width slice per dx (hoisted out of the dy loop); the
        # dy selection below is a cheap outer-dim slice.
        xs = xv[:, dx:dx + width, :]                 # (rows+2, W, Cin)
        for dy in range(3):
            lhs = xs[dy:dy + rows].reshape(rows * width, cin)
            p = jnp.dot(lhs, w_ref[dy, dx], preferred_element_type=jnp.float32)
            acc = p if acc is None else acc + p

    out = acc + b_ref[...]                           # (rows*W, Cout) f32
    if relu:
        out = jnp.maximum(out, 0.0)
    out = out.reshape(rows, width, cout)
    if pool:
        pbuf = pool_scratch[0]
        pbuf[...] = out
        ro, wo = rows // 2, width // 2
        out = jnp.maximum(
            jnp.maximum(pbuf[pl.ds(0, ro, 2), pl.ds(0, wo, 2), :],
                        pbuf[pl.ds(0, ro, 2), pl.ds(1, wo, 2), :]),
            jnp.maximum(pbuf[pl.ds(1, ro, 2), pl.ds(0, wo, 2), :],
                        pbuf[pl.ds(1, ro, 2), pl.ds(1, wo, 2), :]))
    o_ref[0] = out.astype(o_ref.dtype)


def conv3x3(x, w, b, *, relu, pool):
    """3x3 SAME conv (stride 1) + bias (+ fused ReLU / fused 2x2 maxpool).

    x: (B, H, W, Cin) f32 NHWC, w: (3, 3, Cin, Cout) f32 HWIO, b: (1, Cout).
    """
    B, H, W, Cin = x.shape
    Cout = w.shape[-1]
    if pool:
        assert H % 2 == 0 and W % 2 == 0, "fused 2x2 pool needs even H, W"
    rows = _pick_rows(H, need_even=pool)
    n_h = H // rows
    # TODO(synk): in-kernel halo masking would remove this HBM copy of the
    #             activation; kept as glue for simplicity/robustness.
    xp = jnp.pad(x, ((0, 0), (1, 1), (1, 1), (0, 0)))
    Wp = W + 2
    Ho, Wo = (H // 2, W // 2) if pool else (H, W)
    ro = rows // 2 if pool else rows

    kernel = functools.partial(_conv3x3_kernel, rows=rows, width=W,
                               cin=Cin, cout=Cout, relu=relu, pool=pool)
    scratch = [pltpu.VMEM((rows + 2, Wp, Cin), jnp.bfloat16)]
    if pool:
        scratch.append(pltpu.VMEM((rows, W, Cout), jnp.float32))

    # TODO(synk): for the 256/512-channel layers a Cout-tile grid axis would
    #             further shrink the working set (matters on v7x's 64 MiB VMEM).
    return pl.pallas_call(
        kernel,
        out_shape=jax.ShapeDtypeStruct((B, Ho, Wo, Cout), jnp.float32),
        grid=(B, n_h),
        in_specs=[
            pl.BlockSpec((1, rows, Wp, Cin), lambda nb, ib: (nb, ib, 0, 0)),
            # two single-row halo views of the same padded input
            pl.BlockSpec((1, 1, Wp, Cin),
                         lambda nb, ib: (nb, (ib + 1) * rows, 0, 0)),
            pl.BlockSpec((1, 1, Wp, Cin),
                         lambda nb, ib: (nb, (ib + 1) * rows + 1, 0, 0)),
            pl.BlockSpec((3, 3, Cin, Cout), lambda nb, ib: (0, 0, 0, 0)),
            pl.BlockSpec((1, Cout), lambda nb, ib: (0, 0)),
        ],
        out_specs=pl.BlockSpec((1, ro, Wo, Cout), lambda nb, ib: (nb, ib, 0, 0)),
        scratch_shapes=scratch,
        compiler_params=pltpu.CompilerParams(
            dimension_semantics=("parallel", "parallel"),
            vmem_limit_bytes=_VMEM_LIMIT_BYTES),
    )(xp, xp, xp, w.astype(jnp.bfloat16), b)


# ----------------------------------------------------------------------------
# RGB stem: im2col in the wrapper (K = 27), single-dot kernel per row tile.
# ----------------------------------------------------------------------------
def _conv1x1_kernel(x_ref, w_ref, b_ref, o_ref, *, rows, width, k, cout, relu):
    lhs = x_ref[0].astype(jnp.bfloat16).reshape(rows * width, k)
    out = jnp.dot(lhs, w_ref[...], preferred_element_type=jnp.float32)
    out = out + b_ref[...]
    if relu:
        out = jnp.maximum(out, 0.0)
    o_ref[0] = out.reshape(rows, width, cout).astype(o_ref.dtype)


def conv3x3_stem(x, w, b, *, relu):
    """First VGG conv (Cin=3): fold the 3x3 taps into the contraction (K=27)."""
    B, H, W, Cin = x.shape
    Cout = w.shape[-1]
    xp = jnp.pad(x.astype(jnp.bfloat16), ((0, 0), (1, 1), (1, 1), (0, 0)))
    cols = [xp[:, dy:dy + H, dx:dx + W, :] for dy in range(3) for dx in range(3)]
    xcol = jnp.concatenate(cols, axis=-1)            # (B, H, W, 9*Cin)
    wcol = w.reshape(9 * Cin, Cout).astype(jnp.bfloat16)
    K = 9 * Cin
    rows = _pick_rows(H, need_even=False)
    n_h = H // rows

    kernel = functools.partial(_conv1x1_kernel, rows=rows, width=W, k=K,
                               cout=Cout, relu=relu)
    return pl.pallas_call(
        kernel,
        out_shape=jax.ShapeDtypeStruct((B, H, W, Cout), jnp.float32),
        grid=(B, n_h),
        in_specs=[
            pl.BlockSpec((1, rows, W, K), lambda nb, ib: (nb, ib, 0, 0)),
            pl.BlockSpec((K, Cout), lambda nb, ib: (0, 0)),
            pl.BlockSpec((1, Cout), lambda nb, ib: (0, 0)),
        ],
        out_specs=pl.BlockSpec((1, rows, W, Cout), lambda nb, ib: (nb, ib, 0, 0)),
        compiler_params=pltpu.CompilerParams(
            dimension_semantics=("parallel", "parallel"),
            vmem_limit_bytes=_VMEM_LIMIT_BYTES),
    )(xcol, wcol, b)


def _maxpool_fallback(x):
    # Unreachable for VGG16 truncations (every pool follows conv+relu and is
    # fused into the conv epilogue); kept only to preserve module semantics.
    return jax.lax.reduce_window(x, -jnp.inf, jax.lax.max,
                                 (1, 2, 2, 1), (1, 2, 2, 1), 'VALID')


# ----------------------------------------------------------------------------
# mean(|a - b|) over all elements (F.l1_loss, reduction='mean')
# ----------------------------------------------------------------------------
def l1_loss_mean(a, b):
    N, H, W, C = a.shape
    rows = _pick_rows(H, need_even=False)
    n_t = H // rows

    def kernel(a_ref, b_ref, o_ref, acc_ref):
        i = pl.program_id(0)
        j = pl.program_id(1)

        @pl.when(jnp.logical_and(i == 0, j == 0))
        def _init():
            acc_ref[...] = jnp.zeros_like(acc_ref)

        acc_ref[...] += jnp.abs(a_ref[0].astype(jnp.float32)
                                - b_ref[0].astype(jnp.float32))

        @pl.when(jnp.logical_and(i == pl.num_programs(0) - 1,
                                 j == pl.num_programs(1) - 1))
        def _finalize():
            o_ref[...] = jnp.zeros_like(o_ref) + jnp.sum(acc_ref[...])

    total = pl.pallas_call(
        kernel,
        out_shape=jax.ShapeDtypeStruct((1, 1), jnp.float32),
        grid=(N, n_t),
        in_specs=[
            pl.BlockSpec((1, rows, W, C), lambda i, j: (i, j, 0, 0)),
            pl.BlockSpec((1, rows, W, C), lambda i, j: (i, j, 0, 0)),
        ],
        out_specs=pl.BlockSpec((1, 1), lambda i, j: (0, 0)),
        scratch_shapes=[pltpu.VMEM((rows, W, C), jnp.float32)],
        compiler_params=pltpu.CompilerParams(
            dimension_semantics=("arbitrary", "arbitrary")),
    )(a, b)
    return total[0, 0] / jnp.float32(a.size)


# ----------------------------------------------------------------------------
# PerceptualLoss module (forward only)
# ----------------------------------------------------------------------------
class PerceptualLossPallas:
    def __init__(self, perceptual_layers, key):
        self.layers = build_vgg_layers(perceptual_layers, key)

    def _vgg_submodel(self, x):
        layers = self.layers
        i = 0
        while i < len(layers):
            kind = layers[i][0]
            if kind == 'conv':
                w, b = layers[i][1], layers[i][2]
                relu = i + 1 < len(layers) and layers[i + 1][0] == 'relu'
                pool = relu and i + 2 < len(layers) and layers[i + 2][0] == 'pool'
                if w.shape[2] <= 4:                      # RGB stem (Cin = 3)
                    x = conv3x3_stem(x, w, b, relu=relu)
                    if pool:                             # never happens in VGG16
                        x = _maxpool_fallback(x)
                else:
                    x = conv3x3(x, w, b, relu=relu, pool=pool)
                i += 1 + int(relu) + int(pool)
            elif kind == 'relu':
                # Unreachable for VGG16 (ReLU always directly follows a conv).
                x = jnp.maximum(x, 0.0)
                i += 1
            else:
                x = _maxpool_fallback(x)
                i += 1
        return x

    def __call__(self, inputs_nchw, targets_nchw):
        # [-1, 1] -> [0, 1], exactly as the PyTorch forward (no mean/std there).
        fake = (inputs_nchw + 1.0) / 2.0
        real = (targets_nchw + 1.0) / 2.0
        # One VGG pass over the stacked (fake ++ real) batch, NCHW -> NHWC.
        x = jnp.transpose(jnp.concatenate([fake, real], axis=0), (0, 2, 3, 1))
        feats = self._vgg_submodel(x)
        n = inputs_nchw.shape[0]
        # .detach() on the target features is a no-op in a forward-only pass.
        return l1_loss_mean(feats[:n], feats[n:])


# ----------------------------------------------------------------------------
# Pure-JAX reference for a correctness check (mirrors bf16 MXU inputs)
# ----------------------------------------------------------------------------
def reference_forward(layers, inputs_nchw, targets_nchw):
    def vgg(x):
        for layer in layers:
            if layer[0] == 'conv':
                w, b = layer[1], layer[2]
                y = jax.lax.conv_general_dilated(
                    x.astype(jnp.bfloat16), w.astype(jnp.bfloat16),
                    (1, 1), 'SAME',
                    dimension_numbers=('NHWC', 'HWIO', 'NHWC'),
                    preferred_element_type=jnp.float32)
                x = y + b.reshape(1, 1, 1, -1)
            elif layer[0] == 'relu':
                x = jnp.maximum(x, 0.0)
            else:
                x = jax.lax.reduce_window(
                    x, -jnp.inf, jax.lax.max,
                    (1, 2, 2, 1), (1, 2, 2, 1), 'VALID')
        return x

    fake = jnp.transpose((inputs_nchw + 1.0) / 2.0, (0, 2, 3, 1))
    real = jnp.transpose((targets_nchw + 1.0) / 2.0, (0, 2, 3, 1))
    return jnp.mean(jnp.abs(vgg(fake) - vgg(real)))


if __name__ == "__main__":
    key = jax.random.PRNGKey(0)
    k_w, k_in, k_tg = jax.random.split(key, 3)

    # vgg16.features[0..5]: conv-relu-conv-relu-maxpool-conv; exercises the
    # im2col stem, the fused relu+pool conv and a bare conv epilogue.
    PERCEPTUAL_LAYERS = 5

    N, C, H, W = 2, 3, 16, 16   # small demo shapes; VGG expects 3-channel input
    inputs = jax.random.uniform(k_in, (N, C, H, W), jnp.float32,
                                minval=-1.0, maxval=1.0)
    targets = jax.random.uniform(k_tg, (N, C, H, W), jnp.float32,
                                 minval=-1.0, maxval=1.0)

    loss_mod = PerceptualLossPallas(PERCEPTUAL_LAYERS, k_w)
    loss_fn = jax.jit(loss_mod.__call__)
    loss = jax.block_until_ready(loss_fn(inputs, targets))

    ref = jax.block_until_ready(
        reference_forward(loss_mod.layers, inputs, targets))
    assert jnp.allclose(loss, ref, rtol=5e-3, atol=1e-5), (loss, ref)

    print("KERNEL_OK")
</pallas_src>

<mosaic_0001>
module attributes {stable_mosaic.version = 11 : i64} {
  func.func @_conv1x1_kernel(%arg0: i32, %arg1: i32, %arg2: memref<1x8x16x27xbf16, #tpu.memory_space<vmem>>, %arg3: memref<27x64xbf16, #tpu.memory_space<vmem>>, %arg4: memref<1x64xf32, #tpu.memory_space<vmem>>, %arg5: memref<1x8x16x64xf32, #tpu.memory_space<vmem>>) attributes {dimension_semantics = [#tpu.dimension_semantics<parallel>, #tpu.dimension_semantics<parallel>], iteration_bounds = array<i64: 4, 2>, scalar_prefetch = 0 : i64, scratch_operands = 0 : i64, tpu.core_type = #tpu.core_type<tc>, window_params = [{transform_indices = @transform_0, window_bounds = array<i64: 1, 8, 16, 27>}, {pipeline_mode = #tpu.pipeline_mode<synchronous>, transform_indices = @transform_1, window_bounds = array<i64: 27, 64>}, {pipeline_mode = #tpu.pipeline_mode<synchronous>, transform_indices = @transform_2, window_bounds = array<i64: 1, 64>}, {transform_indices = @transform_3, window_bounds = array<i64: 1, 8, 16, 64>}]} {
    %c0 = arith.constant 0 : index
    %c0_0 = arith.constant 0 : index
    %c0_1 = arith.constant 0 : index
    %c0_2 = arith.constant 0 : index
    %0 = vector.load %arg2[%c0, %c0_0, %c0_1, %c0_2] : memref<1x8x16x27xbf16, #tpu.memory_space<vmem>>, vector<1x8x16x27xbf16>
    %1 = vector.shape_cast %0 : vector<1x8x16x27xbf16> to vector<8x16x27xbf16>
    %2 = vector.shape_cast %1 : vector<8x16x27xbf16> to vector<128x27xbf16>
    %c0_3 = arith.constant 0 : index
    %c0_4 = arith.constant 0 : index
    %3 = vector.load %arg3[%c0_3, %c0_4] : memref<27x64xbf16, #tpu.memory_space<vmem>>, vector<27x64xbf16>
    %cst = arith.constant dense<0.000000e+00> : vector<128x64xf32>
    %4 = tpu.matmul %2, %3, %cst {dimension_numbers = #tpu.dot_dimension_numbers<[1], [0], [0], [1], [0, 0, 1, 1], [], []>} : vector<128x27xbf16>, vector<27x64xbf16>, vector<128x64xf32> -> vector<128x64xf32>
    %c0_5 = arith.constant 0 : index
    %c0_6 = arith.constant 0 : index
    %5 = vector.load %arg4[%c0_5, %c0_6] : memref<1x64xf32, #tpu.memory_space<vmem>>, vector<1x64xf32>
    %6 = vector.broadcast %5 : vector<1x64xf32> to vector<128x64xf32>
    %7 = arith.addf %4, %6 : vector<128x64xf32>
    %cst_7 = arith.constant 0.000000e+00 : f32
    %8 = vector.broadcast %cst_7 : f32 to vector<128x64xf32>
    %9 = arith.maximumf %7, %8 : vector<128x64xf32>
    %10 = vector.shape_cast %9 : vector<128x64xf32> to vector<8x16x64xf32>
    %c0_8 = arith.constant 0 : index
    %c0_9 = arith.constant 0 : index
    %c0_10 = arith.constant 0 : index
    %c0_11 = arith.constant 0 : index
    %11 = vector.load %arg5[%c0_8, %c0_9, %c0_10, %c0_11] : memref<1x8x16x64xf32, #tpu.memory_space<vmem>>, vector<1x8x16x64xf32>
    %12 = vector.shape_cast %11 : vector<1x8x16x64xf32> to vector<8x16x64xf32>
    %13 = vector.shape_cast %10 : vector<8x16x64xf32> to vector<1x8x16x64xf32>
    tpu.vector_store %arg5[%c0_8, %c0_9, %c0_10, %c0_11], %13 {strides = array<i32>} : memref<1x8x16x64xf32, #tpu.memory_space<vmem>>, vector<1x8x16x64xf32>,
    return
  }
  func.func @transform_0(%arg0: i32, %arg1: i32) -> (i32, i32, i32, i32) {
    %c0_i32 = arith.constant 0 : i32
    %c0_i32_0 = arith.constant 0 : i32
    %c0_i32_1 = arith.constant 0 : i32
    return %arg0, %arg1, %c0_i32, %c0_i32_0 : i32, i32, i32, i32
  }
  func.func @transform_1(%arg0: i32, %arg1: i32) -> (i32, i32) {
    %c0_i32 = arith.constant 0 : i32
    %c0_i32_0 = arith.constant 0 : i32
    %c0_i32_1 = arith.constant 0 : i32
    return %c0_i32, %c0_i32_0 : i32, i32
  }
  func.func @transform_2(%arg0: i32, %arg1: i32) -> (i32, i32) {
    %c0_i32 = arith.constant 0 : i32
    %c0_i32_0 = arith.constant 0 : i32
    %c0_i32_1 = arith.constant 0 : i32
    return %c0_i32, %c0_i32_0 : i32, i32
  }
  func.func @transform_3(%arg0: i32, %arg1: i32) -> (i32, i32, i32, i32) {
    %c0_i32 = arith.constant 0 : i32
    %c0_i32_0 = arith.constant 0 : i32
    %c0_i32_1 = arith.constant 0 : i32
    return %arg0, %arg1, %c0_i32, %c0_i32_0 : i32, i32, i32, i32
  }
}

module attributes {stable_mosaic.version = 11 : i64} {
  func.func @_conv3x3_kernel(%arg0: i32, %arg1: i32, %arg2: memref<1x8x18x64xf32, #tpu.memory_space<vmem>>, %arg3: memref<1x1x18x64xf32, #tpu.memory_space<vmem>>, %arg4: memref<1x1x18x64xf32, #tpu.memory_space<vmem>>, %arg5: memref<3x3x64x64xbf16, #tpu.memory_space<vmem>>, %arg6: memref<1x64xf32, #tpu.memory_space<vmem>>, %arg7: memref<1x4x8x64xf32, #tpu.memory_space<vmem>>, %arg8: memref<10x18x64xbf16, #tpu.memory_space<vmem>>, %arg9: memref<8x16x64xf32, #tpu.memory_space<vmem>>) attributes {dimension_semantics = [#tpu.dimension_semantics<parallel>, #tpu.dimension_semantics<parallel>], iteration_bounds = array<i64: 4, 2>, scalar_prefetch = 0 : i64, scratch_operands = 2 : i64, tpu.core_type = #tpu.core_type<tc>, window_params = [{transform_indices = @transform_0, window_bounds = array<i64: 1, 8, 18, 64>}, {transform_indices = @transform_1, window_bounds = array<i64: 1, 1, 18, 64>}, {transform_indices = @transform_2, window_bounds = array<i64: 1, 1, 18, 64>}, {pipeline_mode = #tpu.pipeline_mode<synchronous>, transform_indices = @transform_3, window_bounds = array<i64: 3, 3, 64, 64>}, {pipeline_mode = #tpu.pipeline_mode<synchronous>, transform_indices = @transform_4, window_bounds = array<i64: 1, 64>}, {transform_indices = @transform_5, window_bounds = array<i64: 1, 4, 8, 64>}]} {
    %c0 = arith.constant 0 : index
    %c0_0 = arith.constant 0 : index
    %c0_1 = arith.constant 0 : index
    %c0_2 = arith.constant 0 : index
    %0 = vector.load %arg2[%c0, %c0_0, %c0_1, %c0_2] : memref<1x8x18x64xf32, #tpu.memory_space<vmem>>, vector<1x8x18x64xf32>
    %1 = vector.shape_cast %0 : vector<1x8x18x64xf32> to vector<8x18x64xf32>
    %2 = arith.truncf %1 : vector<8x18x64xf32> to vector<8x18x64xbf16>
    %c0_3 = arith.constant 0 : index
    %c0_4 = arith.constant 0 : index
    %c0_5 = arith.constant 0 : index
    %3 = vector.load %arg8[%c0_3, %c0_4, %c0_5] : memref<10x18x64xbf16, #tpu.memory_space<vmem>>, vector<8x18x64xbf16>
    tpu.vector_store %arg8[%c0_3, %c0_4, %c0_5], %2 {strides = array<i32>} : memref<10x18x64xbf16, #tpu.memory_space<vmem>>, vector<8x18x64xbf16>,
    %c0_6 = arith.constant 0 : index
    %c0_7 = arith.constant 0 : index
    %c0_8 = arith.constant 0 : index
    %c0_9 = arith.constant 0 : index
    %4 = vector.load %arg3[%c0_6, %c0_7, %c0_8, %c0_9] : memref<1x1x18x64xf32, #tpu.memory_space<vmem>>, vector<1x1x18x64xf32>
    %5 = vector.shape_cast %4 : vector<1x1x18x64xf32> to vector<18x64xf32>
    %6 = arith.truncf %5 : vector<18x64xf32> to vector<18x64xbf16>
    %c8 = arith.constant 8 : index
    %c0_10 = arith.constant 0 : index
    %c0_11 = arith.constant 0 : index
    %7 = vector.load %arg8[%c8, %c0_10, %c0_11] : memref<10x18x64xbf16, #tpu.memory_space<vmem>>, vector<1x18x64xbf16>
    %8 = vector.shape_cast %7 : vector<1x18x64xbf16> to vector<18x64xbf16>
    %9 = vector.shape_cast %6 : vector<18x64xbf16> to vector<1x18x64xbf16>
    tpu.vector_store %arg8[%c8, %c0_10, %c0_11], %9 {strides = array<i32>} : memref<10x18x64xbf16, #tpu.memory_space<vmem>>, vector<1x18x64xbf16>,
    %c0_12 = arith.constant 0 : index
    %c0_13 = arith.constant 0 : index
    %c0_14 = arith.constant 0 : index
    %c0_15 = arith.constant 0 : index
    %10 = vector.load %arg4[%c0_12, %c0_13, %c0_14, %c0_15] : memref<1x1x18x64xf32, #tpu.memory_space<vmem>>, vector<1x1x18x64xf32>
    %11 = vector.shape_cast %10 : vector<1x1x18x64xf32> to vector<18x64xf32>
    %12 = arith.truncf %11 : vector<18x64xf32> to vector<18x64xbf16>
    %c9 = arith.constant 9 : index
    %c0_16 = arith.constant 0 : index
    %c0_17 = arith.constant 0 : index
    %13 = vector.load %arg8[%c9, %c0_16, %c0_17] : memref<10x18x64xbf16, #tpu.memory_space<vmem>>, vector<1x18x64xbf16>
    %14 = vector.shape_cast %13 : vector<1x18x64xbf16> to vector<18x64xbf16>
    %15 = vector.shape_cast %12 : vector<18x64xbf16> to vector<1x18x64xbf16>
    tpu.vector_store %arg8[%c9, %c0_16, %c0_17], %15 {strides = array<i32>} : memref<10x18x64xbf16, #tpu.memory_space<vmem>>, vector<1x18x64xbf16>,
    %c0_18 = arith.constant 0 : index
    %c0_19 = arith.constant 0 : index
    %c0_20 = arith.constant 0 : index
    %16 = vector.load %arg8[%c0_18, %c0_19, %c0_20] : memref<10x18x64xbf16, #tpu.memory_space<vmem>>, vector<10x18x64xbf16>
    %17 = vector.extract_strided_slice %16 {offsets = [0, 0, 0], sizes = [10, 16, 64], strides = [1, 1, 1]} : vector<10x18x64xbf16> to vector<10x16x64xbf16>
    %18 = vector.extract_strided_slice %17 {offsets = [0, 0, 0], sizes = [8, 16, 64], strides = [1, 1, 1]} : vector<10x16x64xbf16> to vector<8x16x64xbf16>
    %19 = vector.shape_cast %18 : vector<8x16x64xbf16> to vector<128x64xbf16>
    %c0_21 = arith.constant 0 : index
    %c0_22 = arith.constant 0 : index
    %c0_23 = arith.constant 0 : index
    %c0_24 = arith.constant 0 : index
    %20 = vector.load %arg5[%c0_21, %c0_22, %c0_23, %c0_24] : memref<3x3x64x64xbf16, #tpu.memory_space<vmem>>, vector<1x1x64x64xbf16>
    %21 = vector.shape_cast %20 : vector<1x1x64x64xbf16> to vector<64x64xbf16>
    %cst = arith.constant dense<0.000000e+00> : vector<128x64xf32>
    %22 = tpu.matmul %19, %21, %cst {dimension_numbers = #tpu.dot_dimension_numbers<[1], [0], [0], [1], [0, 0, 1, 1], [], []>} : vector<128x64xbf16>, vector<64x64xbf16>, vector<128x64xf32> -> vector<128x64xf32>
    %23 = vector.extract_strided_slice %17 {offsets = [1, 0, 0], sizes = [8, 16, 64], strides = [1, 1, 1]} : vector<10x16x64xbf16> to vector<8x16x64xbf16>
    %24 = vector.shape_cast %23 : vector<8x16x64xbf16> to vector<128x64xbf16>
    %c1 = arith.constant 1 : index
    %c0_25 = arith.constant 0 : index
    %c0_26 = arith.constant 0 : index
    %c0_27 = arith.constant 0 : index
    %25 = vector.load %arg5[%c1, %c0_25, %c0_26, %c0_27] : memref<3x3x64x64xbf16, #tpu.memory_space<vmem>>, vector<1x1x64x64xbf16>
    %26 = vector.shape_cast %25 : vector<1x1x64x64xbf16> to vector<64x64xbf16>
    %cst_28 = arith.constant dense<0.000000e+00> : vector<128x64xf32>
    %27 = tpu.matmul %24, %26, %cst_28 {dimension_numbers = #tpu.dot_dimension_numbers<[1], [0], [0], [1], [0, 0, 1, 1], [], []>} : vector<128x64xbf16>, vector<64x64xbf16>, vector<128x64xf32> -> vector<128x64xf32>
    %28 = arith.addf %22, %27 : vector<128x64xf32>
    %29 = vector.extract_strided_slice %17 {offsets = [2, 0, 0], sizes = [8, 16, 64], strides = [1, 1, 1]} : vector<10x16x64xbf16> to vector<8x16x64xbf16>
    %30 = vector.shape_cast %29 : vector<8x16x64xbf16> to vector<128x64xbf16>
    %c2 = arith.constant 2 : index
    %c0_29 = arith.constant 0 : index
    %c0_30 = arith.constant 0 : index
    %c0_31 = arith.constant 0 : index
    %31 = vector.load %arg5[%c2, %c0_29, %c0_30, %c0_31] : memref<3x3x64x64xbf16, #tpu.memory_space<vmem>>, vector<1x1x64x64xbf16>
    %32 = vector.shape_cast %31 : vector<1x1x64x64xbf16> to vector<64x64xbf16>
    %cst_32 = arith.constant dense<0.000000e+00> : vector<128x64xf32>
    %33 = tpu.matmul %30, %32, %cst_32 {dimension_numbers = #tpu.dot_dimension_numbers<[1], [0], [0], [1], [0, 0, 1, 1], [], []>} : vector<128x64xbf16>, vector<64x64xbf16>, vector<128x64xf32> -> vector<128x64xf32>
    %34 = arith.addf %28, %33 : vector<128x64xf32>
    %35 = vector.extract_strided_slice %16 {offsets = [0, 1, 0], sizes = [10, 16, 64], strides = [1, 1, 1]} : vector<10x18x64xbf16> to vector<10x16x64xbf16>
    %36 = vector.extract_strided_slice %35 {offsets = [0, 0, 0], sizes = [8, 16, 64], strides = [1, 1, 1]} : vector<10x16x64xbf16> to vector<8x16x64xbf16>
    %37 = vector.shape_cast %36 : vector<8x16x64xbf16> to vector<128x64xbf16>
    %c0_33 = arith.constant 0 : index
    %c1_34 = arith.constant 1 : index
    %c0_35 = arith.constant 0 : index
    %c0_36 = arith.constant 0 : index
    %38 = vector.load %arg5[%c0_33, %c1_34, %c0_35, %c0_36] : memref<3x3x64x64xbf16, #tpu.memory_space<vmem>>, vector<1x1x64x64xbf16>
    %39 = vector.shape_cast %38 : vector<1x1x64x64xbf16> to vector<64x64xbf16>
    %cst_37 = arith.constant dense<0.000000e+00> : vector<128x64xf32>
    %40 = tpu.matmul %37, %39, %cst_37 {dimension_numbers = #tpu.dot_dimension_numbers<[1], [0], [0], [1], [0, 0, 1, 1], [], []>} : vector<128x64xbf16>, vector<64x64xbf16>, vector<128x64xf32> -> vector<128x64xf32>
    %41 = arith.addf %34, %40 : vector<128x64xf32>
    %42 = vector.extract_strided_slice %35 {offsets = [1, 0, 0], sizes = [8, 16, 64], strides = [1, 1, 1]} : vector<10x16x64xbf16> to vector<8x16x64xbf16>
    %43 = vector.shape_cast %42 : vector<8x16x64xbf16> to vector<128x64xbf16>
    %c1_38 = arith.constant 1 : index
    %c1_39 = arith.constant 1 : index
    %c0_40 = arith.constant 0 : index
    %c0_41 = arith.constant 0 : index
    %44 = vector.load %arg5[%c1_38, %c1_39, %c0_40, %c0_41] : memref<3x3x64x64xbf16, #tpu.memory_space<vmem>>, vector<1x1x64x64xbf16>
    %45 = vector.shape_cast %44 : vector<1x1x64x64xbf16> to vector<64x64xbf16>
    %cst_42 = arith.constant dense<0.000000e+00> : vector<128x64xf32>
    %46 = tpu.matmul %43, %45, %cst_42 {dimension_numbers = #tpu.dot_dimension_numbers<[1], [0], [0], [1], [0, 0, 1, 1], [], []>} : vector<128x64xbf16>, vector<64x64xbf16>, vector<128x64xf32> -> vector<128x64xf32>
    %47 = arith.addf %41, %46 : vector<128x64xf32>
    %48 = vector.extract_strided_slice %35 {offsets = [2, 0, 0], sizes = [8, 16, 64], strides = [1, 1, 1]} : vector<10x16x64xbf16> to vector<8x16x64xbf16>
    %49 = vector.shape_cast %48 : vector<8x16x64xbf16> to vector<128x64xbf16>
    %c2_43 = arith.constant 2 : index
    %c1_44 = arith.constant 1 : index
    %c0_45 = arith.constant 0 : index
    %c0_46 = arith.constant 0 : index
    %50 = vector.load %arg5[%c2_43, %c1_44, %c0_45, %c0_46] : memref<3x3x64x64xbf16, #tpu.memory_space<vmem>>, vector<1x1x64x64xbf16>
    %51 = vector.shape_cast %50 : vector<1x1x64x64xbf16> to vector<64x64xbf16>
    %cst_47 = arith.constant dense<0.000000e+00> : vector<128x64xf32>
    %52 = tpu.matmul %49, %51, %cst_47 {dimension_numbers = #tpu.dot_dimension_numbers<[1], [0], [0], [1], [0, 0, 1, 1], [], []>} : vector<128x64xbf16>, vector<64x64xbf16>, vector<128x64xf32> -> vector<128x64xf32>
    %53 = arith.addf %47, %52 : vector<128x64xf32>
    %54 = vector.extract_strided_slice %16 {offsets = [0, 2, 0], sizes = [10, 16, 64], strides = [1, 1, 1]} : vector<10x18x64xbf16> to vector<10x16x64xbf16>
    %55 = vector.extract_strided_slice %54 {offsets = [0, 0, 0], sizes = [8, 16, 64], strides = [1, 1, 1]} : vector<10x16x64xbf16> to vector<8x16x64xbf16>
    %56 = vector.shape_cast %55 : vector<8x16x64xbf16> to vector<128x64xbf16>
    %c0_48 = arith.constant 0 : index
    %c2_49 = arith.constant 2 : index
    %c0_50 = arith.constant 0 : index
    %c0_51 = arith.constant 0 : index
    %57 = vector.load %arg5[%c0_48, %c2_49, %c0_50, %c0_51] : memref<3x3x64x64xbf16, #tpu.memory_space<vmem>>, vector<1x1x64x64xbf16>
    %58 = vector.shape_cast %57 : vector<1x1x64x64xbf16> to vector<64x64xbf16>
    %cst_52 = arith.constant dense<0.000000e+00> : vector<128x64xf32>
    %59 = tpu.matmul %56, %58, %cst_52 {dimension_numbers = #tpu.dot_dimension_numbers<[1], [0], [0], [1], [0, 0, 1, 1], [], []>} : vector<128x64xbf16>, vector<64x64xbf16>, vector<128x64xf32> -> vector<128x64xf32>
    %60 = arith.addf %53, %59 : vector<128x64xf32>
    %61 = vector.extract_strided_slice %54 {offsets = [1, 0, 0], sizes = [8, 16, 64], strides = [1, 1, 1]} : vector<10x16x64xbf16> to vector<8x16x64xbf16>
    %62 = vector.shape_cast %61 : vector<8x16x64xbf16> to vector<128x64xbf16>
    %c1_53 = arith.constant 1 : index
    %c2_54 = arith.constant 2 : index
    %c0_55 = arith.constant 0 : index
    %c0_56 = arith.constant 0 : index
    %63 = vector.load %arg5[%c1_53, %c2_54, %c0_55, %c0_56] : memref<3x3x64x64xbf16, #tpu.memory_space<vmem>>, vector<1x1x64x64xbf16>
    %64 = vector.shape_cast %63 : vector<1x1x64x64xbf16> to vector<64x64xbf16>
    %cst_57 = arith.constant dense<0.000000e+00> : vector<128x64xf32>
    %65 = tpu.matmul %62, %64, %cst_57 {dimension_numbers = #tpu.dot_dimension_numbers<[1], [0], [0], [1], [0, 0, 1, 1], [], []>} : vector<128x64xbf16>, vector<64x64xbf16>, vector<128x64xf32> -> vector<128x64xf32>
    %66 = arith.addf %60, %65 : vector<128x64xf32>
    %67 = vector.extract_strided_slice %54 {offsets = [2, 0, 0], sizes = [8, 16, 64], strides = [1, 1, 1]} : vector<10x16x64xbf16> to vector<8x16x64xbf16>
    %68 = vector.shape_cast %67 : vector<8x16x64xbf16> to vector<128x64xbf16>
    %c2_58 = arith.constant 2 : index
    %c2_59 = arith.constant 2 : index
    %c0_60 = arith.constant 0 : index
    %c0_61 = arith.constant 0 : index
    %69 = vector.load %arg5[%c2_58, %c2_59, %c0_60, %c0_61] : memref<3x3x64x64xbf16, #tpu.memory_space<vmem>>, vector<1x1x64x64xbf16>
    %70 = vector.shape_cast %69 : vector<1x1x64x64xbf16> to vector<64x64xbf16>
    %cst_62 = arith.constant dense<0.000000e+00> : vector<128x64xf32>
    %71 = tpu.matmul %68, %70, %cst_62 {dimension_numbers = #tpu.dot_dimension_numbers<[1], [0], [0], [1], [0, 0, 1, 1], [], []>} : vector<128x64xbf16>, vector<64x64xbf16>, vector<128x64xf32> -> vector<128x64xf32>
    %72 = arith.addf %66, %71 : vector<128x64xf32>
    %c0_63 = arith.constant 0 : index
    %c0_64 = arith.constant 0 : index
    %73 = vector.load %arg6[%c0_63, %c0_64] : memref<1x64xf32, #tpu.memory_space<vmem>>, vector<1x64xf32>
    %74 = vector.broadcast %73 : vector<1x64xf32> to vector<128x64xf32>
    %75 = arith.addf %72, %74 : vector<128x64xf32>
    %cst_65 = arith.constant 0.000000e+00 : f32
    %76 = vector.broadcast %cst_65 : f32 to vector<128x64xf32>
    %77 = arith.maximumf %75, %76 : vector<128x64xf32>
    %78 = vector.shape_cast %77 : vector<128x64xf32> to vector<8x16x64xf32>
    %c0_66 = arith.constant 0 : index
    %c0_67 = arith.constant 0 : index
    %c0_68 = arith.constant 0 : index
    %79 = vector.load %arg9[%c0_66, %c0_67, %c0_68] : memref<8x16x64xf32, #tpu.memory_space<vmem>>, vector<8x16x64xf32>
    tpu.vector_store %arg9[%c0_66, %c0_67, %c0_68], %78 {strides = array<i32>} : memref<8x16x64xf32, #tpu.memory_space<vmem>>, vector<8x16x64xf32>,
    %c0_69 = arith.constant 0 : index
    %c0_70 = arith.constant 0 : index
    %c0_71 = arith.constant 0 : index
    %80 = tpu.strided_load %arg9[%c0_69, %c0_70, %c0_71] {strides = array<i32: 2, 2, 1>} : memref<8x16x64xf32, #tpu.memory_space<vmem>>, vector<4x8x64xf32>
    %c0_72 = arith.constant 0 : index
    %c1_73 = arith.constant 1 : index
    %c0_74 = arith.constant 0 : index
    %81 = tpu.strided_load %arg9[%c0_72, %c1_73, %c0_74] {strides = array<i32: 2, 2, 1>} : memref<8x16x64xf32, #tpu.memory_space<vmem>>, vector<4x8x64xf32>
    %82 = arith.maximumf %80, %81 : vector<4x8x64xf32>
    %c1_75 = arith.constant 1 : index
    %c0_76 = arith.constant 0 : index
    %c0_77 = arith.constant 0 : index
    %83 = tpu.strided_load %arg9[%c1_75, %c0_76, %c0_77] {strides = array<i32: 2, 2, 1>} : memref<8x16x64xf32, #tpu.memory_space<vmem>>, vector<4x8x64xf32>
    %c1_78 = arith.constant 1 : index
    %c1_79 = arith.constant 1 : index
    %c0_80 = arith.constant 0 : index
    %84 = tpu.strided_load %arg9[%c1_78, %c1_79, %c0_80] {strides = array<i32: 2, 2, 1>} : memref<8x16x64xf32, #tpu.memory_space<vmem>>, vector<4x8x64xf32>
    %85 = arith.maximumf %83, %84 : vector<4x8x64xf32>
    %86 = arith.maximumf %82, %85 : vector<4x8x64xf32>
    %c0_81 = arith.constant 0 : index
    %c0_82 = arith.constant 0 : index
    %c0_83 = arith.constant 0 : index
    %c0_84 = arith.constant 0 : index
    %87 = vector.load %arg7[%c0_81, %c0_82, %c0_83, %c0_84] : memref<1x4x8x64xf32, #tpu.memory_space<vmem>>, vector<1x4x8x64xf32>
    %88 = vector.shape_cast %87 : vector<1x4x8x64xf32> to vector<4x8x64xf32>
    %89 = vector.shape_cast %86 : vector<4x8x64xf32> to vector<1x4x8x64xf32>
    tpu.vector_store %arg7[%c0_81, %c0_82, %c0_83, %c0_84], %89 {strides = array<i32>} : memref<1x4x8x64xf32, #tpu.memory_space<vmem>>, vector<1x4x8x64xf32>,
    return
  }
  func.func @transform_0(%arg0: i32, %arg1: i32) -> (i32, i32, i32, i32) {
    %c0_i32 = arith.constant 0 : i32
    %c0_i32_0 = arith.constant 0 : i32
    %c0_i32_1 = arith.constant 0 : i32
    return %arg0, %arg1, %c0_i32, %c0_i32_0 : i32, i32, i32, i32
  }
  func.func @transform_1(%arg0: i32, %arg1: i32) -> (i32, i32, i32, i32) {
    %c1_i32 = arith.constant 1 : i32
    %0 = arith.addi %arg1, %c1_i32 : i32
    %c8_i32 = arith.constant 8 : i32
    %1 = arith.muli %0, %c8_i32 : i32
    %c0_i32 = arith.constant 0 : i32
    %c0_i32_0 = arith.constant 0 : i32
    %c0_i32_1 = arith.constant 0 : i32
    return %arg0, %1, %c0_i32, %c0_i32_0 : i32, i32, i32, i32
  }
  func.func @transform_2(%arg0: i32, %arg1: i32) -> (i32, i32, i32, i32) {
    %c1_i32 = arith.constant 1 : i32
    %0 = arith.addi %arg1, %c1_i32 : i32
    %c8_i32 = arith.constant 8 : i32
    %1 = arith.muli %0, %c8_i32 : i32
    %c1_i32_0 = arith.constant 1 : i32
    %2 = arith.addi %1, %c1_i32_0 : i32
    %c0_i32 = arith.constant 0 : i32
    %c0_i32_1 = arith.constant 0 : i32
    %c0_i32_2 = arith.constant 0 : i32
    return %arg0, %2, %c0_i32, %c0_i32_1 : i32, i32, i32, i32
  }
  func.func @transform_3(%arg0: i32, %arg1: i32) -> (i32, i32, i32, i32) {
    %c0_i32 = arith.constant 0 : i32
    %c0_i32_0 = arith.constant 0 : i32
    %c0_i32_1 = arith.constant 0 : i32
    %c0_i32_2 = arith.constant 0 : i32
    %c0_i32_3 = arith.constant 0 : i32
    return %c0_i32, %c0_i32_0, %c0_i32_1, %c0_i32_2 : i32, i32, i32, i32
  }
  func.func @transform_4(%arg0: i32, %arg1: i32) -> (i32, i32) {
    %c0_i32 = arith.constant 0 : i32
    %c0_i32_0 = arith.constant 0 : i32
    %c0_i32_1 = arith.constant 0 : i32
    return %c0_i32, %c0_i32_0 : i32, i32
  }
  func.func @transform_5(%arg0: i32, %arg1: i32) -> (i32, i32, i32, i32) {
    %c0_i32 = arith.constant 0 : i32
    %c0_i32_0 = arith.constant 0 : i32
    %c0_i32_1 = arith.constant 0 : i32
    return %arg0, %arg1, %c0_i32, %c0_i32_0 : i32, i32, i32, i32
  }
}

module attributes {stable_mosaic.version = 11 : i64} {
  func.func @_conv3x3_kernel(%arg0: i32, %arg1: i32, %arg2: memref<1x8x10x64xf32, #tpu.memory_space<vmem>>, %arg3: memref<1x1x10x64xf32, #tpu.memory_space<vmem>>, %arg4: memref<1x1x10x64xf32, #tpu.memory_space<vmem>>, %arg5: memref<3x3x64x128xbf16, #tpu.memory_space<vmem>>, %arg6: memref<1x128xf32, #tpu.memory_space<vmem>>, %arg7: memref<1x8x8x128xf32, #tpu.memory_space<vmem>>, %arg8: memref<10x10x64xbf16, #tpu.memory_space<vmem>>) attributes {dimension_semantics = [#tpu.dimension_semantics<parallel>, #tpu.dimension_semantics<parallel>], iteration_bounds = array<i64: 4, 1>, scalar_prefetch = 0 : i64, scratch_operands = 1 : i64, tpu.core_type = #tpu.core_type<tc>, window_params = [{transform_indices = @transform_0, window_bounds = array<i64: 1, 8, 10, 64>}, {transform_indices = @transform_1, window_bounds = array<i64: 1, 1, 10, 64>}, {transform_indices = @transform_2, window_bounds = array<i64: 1, 1, 10, 64>}, {pipeline_mode = #tpu.pipeline_mode<synchronous>, transform_indices = @transform_3, window_bounds = array<i64: 3, 3, 64, 128>}, {pipeline_mode = #tpu.pipeline_mode<synchronous>, transform_indices = @transform_4, window_bounds = array<i64: 1, 128>}, {transform_indices = @transform_5, window_bounds = array<i64: 1, 8, 8, 128>}]} {
    %c0 = arith.constant 0 : index
    %c0_0 = arith.constant 0 : index
    %c0_1 = arith.constant 0 : index
    %c0_2 = arith.constant 0 : index
    %0 = vector.load %arg2[%c0, %c0_0, %c0_1, %c0_2] : memref<1x8x10x64xf32, #tpu.memory_space<vmem>>, vector<1x8x10x64xf32>
    %1 = vector.shape_cast %0 : vector<1x8x10x64xf32> to vector<8x10x64xf32>
    %2 = arith.truncf %1 : vector<8x10x64xf32> to vector<8x10x64xbf16>
    %c0_3 = arith.constant 0 : index
    %c0_4 = arith.constant 0 : index
    %c0_5 = arith.constant 0 : index
    %3 = vector.load %arg8[%c0_3, %c0_4, %c0_5] : memref<10x10x64xbf16, #tpu.memory_space<vmem>>, vector<8x10x64xbf16>
    tpu.vector_store %arg8[%c0_3, %c0_4, %c0_5], %2 {strides = array<i32>} : memref<10x10x64xbf16, #tpu.memory_space<vmem>>, vector<8x10x64xbf16>,
    %c0_6 = arith.constant 0 : index
    %c0_7 = arith.constant 0 : index
    %c0_8 = arith.constant 0 : index
    %c0_9 = arith.constant 0 : index
    %4 = vector.load %arg3[%c0_6, %c0_7, %c0_8, %c0_9] : memref<1x1x10x64xf32, #tpu.memory_space<vmem>>, vector<1x1x10x64xf32>
    %5 = vector.shape_cast %4 : vector<1x1x10x64xf32> to vector<10x64xf32>
    %6 = arith.truncf %5 : vector<10x64xf32> to vector<10x64xbf16>
    %c8 = arith.constant 8 : index
    %c0_10 = arith.constant 0 : index
    %c0_11 = arith.constant 0 : index
    %7 = vector.load %arg8[%c8, %c0_10, %c0_11] : memref<10x10x64xbf16, #tpu.memory_space<vmem>>, vector<1x10x64xbf16>
    %8 = vector.shape_cast %7 : vector<1x10x64xbf16> to vector<10x64xbf16>
    %9 = vector.shape_cast %6 : vector<10x64xbf16> to vector<1x10x64xbf16>
    tpu.vector_store %arg8[%c8, %c0_10, %c0_11], %9 {strides = array<i32>} : memref<10x10x64xbf16, #tpu.memory_space<vmem>>, vector<1x10x64xbf16>,
    %c0_12 = arith.constant 0 : index
    %c0_13 = arith.constant 0 : index
    %c0_14 = arith.constant 0 : index
    %c0_15 = arith.constant 0 : index
    %10 = vector.load %arg4[%c0_12, %c0_13, %c0_14, %c0_15] : memref<1x1x10x64xf32, #tpu.memory_space<vmem>>, vector<1x1x10x64xf32>
    %11 = vector.shape_cast %10 : vector<1x1x10x64xf32> to vector<10x64xf32>
    %12 = arith.truncf %11 : vector<10x64xf32> to vector<10x64xbf16>
    %c9 = arith.constant 9 : index
    %c0_16 = arith.constant 0 : index
    %c0_17 = arith.constant 0 : index
    %13 = vector.load %arg8[%c9, %c0_16, %c0_17] : memref<10x10x64xbf16, #tpu.memory_space<vmem>>, vector<1x10x64xbf16>
    %14 = vector.shape_cast %13 : vector<1x10x64xbf16> to vector<10x64xbf16>
    %15 = vector.shape_cast %12 : vector<10x64xbf16> to vector<1x10x64xbf16>
    tpu.vector_store %arg8[%c9, %c0_16, %c0_17], %15 {strides = array<i32>} : memref<10x10x64xbf16, #tpu.memory_space<vmem>>, vector<1x10x64xbf16>,
    %c0_18 = arith.constant 0 : index
    %c0_19 = arith.constant 0 : index
    %c0_20 = arith.constant 0 : index
    %16 = vector.load %arg8[%c0_18, %c0_19, %c0_20] : memref<10x10x64xbf16, #tpu.memory_space<vmem>>, vector<10x10x64xbf16>
    %17 = vector.extract_strided_slice %16 {offsets = [0, 0, 0], sizes = [10, 8, 64], strides = [1, 1, 1]} : vector<10x10x64xbf16> to vector<10x8x64xbf16>
    %18 = vector.extract_strided_slice %17 {offsets = [0, 0, 0], sizes = [8, 8, 64], strides = [1, 1, 1]} : vector<10x8x64xbf16> to vector<8x8x64xbf16>
    %19 = vector.shape_cast %18 : vector<8x8x64xbf16> to vector<64x64xbf16>
    %c0_21 = arith.constant 0 : index
    %c0_22 = arith.constant 0 : index
    %c0_23 = arith.constant 0 : index
    %c0_24 = arith.constant 0 : index
    %20 = vector.load %arg5[%c0_21, %c0_22, %c0_23, %c0_24] : memref<3x3x64x128xbf16, #tpu.memory_space<vmem>>, vector<1x1x64x128xbf16>
    %21 = vector.shape_cast %20 : vector<1x1x64x128xbf16> to vector<64x128xbf16>
    %cst = arith.constant dense<0.000000e+00> : vector<64x128xf32>
    %22 = tpu.matmul %19, %21, %cst {dimension_numbers = #tpu.dot_dimension_numbers<[1], [0], [0], [1], [0, 0, 1, 1], [], []>} : vector<64x64xbf16>, vector<64x128xbf16>, vector<64x128xf32> -> vector<64x128xf32>
    %23 = vector.extract_strided_slice %17 {offsets = [1, 0, 0], sizes = [8, 8, 64], strides = [1, 1, 1]} : vector<10x8x64xbf16> to vector<8x8x64xbf16>
    %24 = vector.shape_cast %23 : vector<8x8x64xbf16> to vector<64x64xbf16>
    %c1 = arith.constant 1 : index
    %c0_25 = arith.constant 0 : index
    %c0_26 = arith.constant 0 : index
    %c0_27 = arith.constant 0 : index
    %25 = vector.load %arg5[%c1, %c0_25, %c0_26, %c0_27] : memref<3x3x64x128xbf16, #tpu.memory_space<vmem>>, vector<1x1x64x128xbf16>
    %26 = vector.shape_cast %25 : vector<1x1x64x128xbf16> to vector<64x128xbf16>
    %cst_28 = arith.constant dense<0.000000e+00> : vector<64x128xf32>
    %27 = tpu.matmul %24, %26, %cst_28 {dimension_numbers = #tpu.dot_dimension_numbers<[1], [0], [0], [1], [0, 0, 1, 1], [], []>} : vector<64x64xbf16>, vector<64x128xbf16>, vector<64x128xf32> -> vector<64x128xf32>
    %28 = arith.addf %22, %27 : vector<64x128xf32>
    %29 = vector.extract_strided_slice %17 {offsets = [2, 0, 0], sizes = [8, 8, 64], strides = [1, 1, 1]} : vector<10x8x64xbf16> to vector<8x8x64xbf16>
    %30 = vector.shape_cast %29 : vector<8x8x64xbf16> to vector<64x64xbf16>
    %c2 = arith.constant 2 : index
    %c0_29 = arith.constant 0 : index
    %c0_30 = arith.constant 0 : index
    %c0_31 = arith.constant 0 : index
    %31 = vector.load %arg5[%c2, %c0_29, %c0_30, %c0_31] : memref<3x3x64x128xbf16, #tpu.memory_space<vmem>>, vector<1x1x64x128xbf16>
    %32 = vector.shape_cast %31 : vector<1x1x64x128xbf16> to vector<64x128xbf16>
    %cst_32 = arith.constant dense<0.000000e+00> : vector<64x128xf32>
    %33 = tpu.matmul %30, %32, %cst_32 {dimension_numbers = #tpu.dot_dimension_numbers<[1], [0], [0], [1], [0, 0, 1, 1], [], []>} : vector<64x64xbf16>, vector<64x128xbf16>, vector<64x128xf32> -> vector<64x128xf32>
    %34 = arith.addf %28, %33 : vector<64x128xf32>
    %35 = vector.extract_strided_slice %16 {offsets = [0, 1, 0], sizes = [10, 8, 64], strides = [1, 1, 1]} : vector<10x10x64xbf16> to vector<10x8x64xbf16>
    %36 = vector.extract_strided_slice %35 {offsets = [0, 0, 0], sizes = [8, 8, 64], strides = [1, 1, 1]} : vector<10x8x64xbf16> to vector<8x8x64xbf16>
    %37 = vector.shape_cast %36 : vector<8x8x64xbf16> to vector<64x64xbf16>
    %c0_33 = arith.constant 0 : index
    %c1_34 = arith.constant 1 : index
    %c0_35 = arith.constant 0 : index
    %c0_36 = arith.constant 0 : index
    %38 = vector.load %arg5[%c0_33, %c1_34, %c0_35, %c0_36] : memref<3x3x64x128xbf16, #tpu.memory_space<vmem>>, vector<1x1x64x128xbf16>
    %39 = vector.shape_cast %38 : vector<1x1x64x128xbf16> to vector<64x128xbf16>
    %cst_37 = arith.constant dense<0.000000e+00> : vector<64x128xf32>
    %40 = tpu.matmul %37, %39, %cst_37 {dimension_numbers = #tpu.dot_dimension_numbers<[1], [0], [0], [1], [0, 0, 1, 1], [], []>} : vector<64x64xbf16>, vector<64x128xbf16>, vector<64x128xf32> -> vector<64x128xf32>
    %41 = arith.addf %34, %40 : vector<64x128xf32>
    %42 = vector.extract_strided_slice %35 {offsets = [1, 0, 0], sizes = [8, 8, 64], strides = [1, 1, 1]} : vector<10x8x64xbf16> to vector<8x8x64xbf16>
    %43 = vector.shape_cast %42 : vector<8x8x64xbf16> to vector<64x64xbf16>
    %c1_38 = arith.constant 1 : index
    %c1_39 = arith.constant 1 : index
    %c0_40 = arith.constant 0 : index
    %c0_41 = arith.constant 0 : index
    %44 = vector.load %arg5[%c1_38, %c1_39, %c0_40, %c0_41] : memref<3x3x64x128xbf16, #tpu.memory_space<vmem>>, vector<1x1x64x128xbf16>
    %45 = vector.shape_cast %44 : vector<1x1x64x128xbf16> to vector<64x128xbf16>
    %cst_42 = arith.constant dense<0.000000e+00> : vector<64x128xf32>
    %46 = tpu.matmul %43, %45, %cst_42 {dimension_numbers = #tpu.dot_dimension_numbers<[1], [0], [0], [1], [0, 0, 1, 1], [], []>} : vector<64x64xbf16>, vector<64x128xbf16>, vector<64x128xf32> -> vector<64x128xf32>
    %47 = arith.addf %41, %46 : vector<64x128xf32>
    %48 = vector.extract_strided_slice %35 {offsets = [2, 0, 0], sizes = [8, 8, 64], strides = [1, 1, 1]} : vector<10x8x64xbf16> to vector<8x8x64xbf16>
    %49 = vector.shape_cast %48 : vector<8x8x64xbf16> to vector<64x64xbf16>
    %c2_43 = arith.constant 2 : index
    %c1_44 = arith.constant 1 : index
    %c0_45 = arith.constant 0 : index
    %c0_46 = arith.constant 0 : index
    %50 = vector.load %arg5[%c2_43, %c1_44, %c0_45, %c0_46] : memref<3x3x64x128xbf16, #tpu.memory_space<vmem>>, vector<1x1x64x128xbf16>
    %51 = vector.shape_cast %50 : vector<1x1x64x128xbf16> to vector<64x128xbf16>
    %cst_47 = arith.constant dense<0.000000e+00> : vector<64x128xf32>
    %52 = tpu.matmul %49, %51, %cst_47 {dimension_numbers = #tpu.dot_dimension_numbers<[1], [0], [0], [1], [0, 0, 1, 1], [], []>} : vector<64x64xbf16>, vector<64x128xbf16>, vector<64x128xf32> -> vector<64x128xf32>
    %53 = arith.addf %47, %52 : vector<64x128xf32>
    %54 = vector.extract_strided_slice %16 {offsets = [0, 2, 0], sizes = [10, 8, 64], strides = [1, 1, 1]} : vector<10x10x64xbf16> to vector<10x8x64xbf16>
    %55 = vector.extract_strided_slice %54 {offsets = [0, 0, 0], sizes = [8, 8, 64], strides = [1, 1, 1]} : vector<10x8x64xbf16> to vector<8x8x64xbf16>
    %56 = vector.shape_cast %55 : vector<8x8x64xbf16> to vector<64x64xbf16>
    %c0_48 = arith.constant 0 : index
    %c2_49 = arith.constant 2 : index
    %c0_50 = arith.constant 0 : index
    %c0_51 = arith.constant 0 : index
    %57 = vector.load %arg5[%c0_48, %c2_49, %c0_50, %c0_51] : memref<3x3x64x128xbf16, #tpu.memory_space<vmem>>, vector<1x1x64x128xbf16>
    %58 = vector.shape_cast %57 : vector<1x1x64x128xbf16> to vector<64x128xbf16>
    %cst_52 = arith.constant dense<0.000000e+00> : vector<64x128xf32>
    %59 = tpu.matmul %56, %58, %cst_52 {dimension_numbers = #tpu.dot_dimension_numbers<[1], [0], [0], [1], [0, 0, 1, 1], [], []>} : vector<64x64xbf16>, vector<64x128xbf16>, vector<64x128xf32> -> vector<64x128xf32>
    %60 = arith.addf %53, %59 : vector<64x128xf32>
    %61 = vector.extract_strided_slice %54 {offsets = [1, 0, 0], sizes = [8, 8, 64], strides = [1, 1, 1]} : vector<10x8x64xbf16> to vector<8x8x64xbf16>
    %62 = vector.shape_cast %61 : vector<8x8x64xbf16> to vector<64x64xbf16>
    %c1_53 = arith.constant 1 : index
    %c2_54 = arith.constant 2 : index
    %c0_55 = arith.constant 0 : index
    %c0_56 = arith.constant 0 : index
    %63 = vector.load %arg5[%c1_53, %c2_54, %c0_55, %c0_56] : memref<3x3x64x128xbf16, #tpu.memory_space<vmem>>, vector<1x1x64x128xbf16>
    %64 = vector.shape_cast %63 : vector<1x1x64x128xbf16> to vector<64x128xbf16>
    %cst_57 = arith.constant dense<0.000000e+00> : vector<64x128xf32>
    %65 = tpu.matmul %62, %64, %cst_57 {dimension_numbers = #tpu.dot_dimension_numbers<[1], [0], [0], [1], [0, 0, 1, 1], [], []>} : vector<64x64xbf16>, vector<64x128xbf16>, vector<64x128xf32> -> vector<64x128xf32>
    %66 = arith.addf %60, %65 : vector<64x128xf32>
    %67 = vector.extract_strided_slice %54 {offsets = [2, 0, 0], sizes = [8, 8, 64], strides = [1, 1, 1]} : vector<10x8x64xbf16> to vector<8x8x64xbf16>
    %68 = vector.shape_cast %67 : vector<8x8x64xbf16> to vector<64x64xbf16>
    %c2_58 = arith.constant 2 : index
    %c2_59 = arith.constant 2 : index
    %c0_60 = arith.constant 0 : index
    %c0_61 = arith.constant 0 : index
    %69 = vector.load %arg5[%c2_58, %c2_59, %c0_60, %c0_61] : memref<3x3x64x128xbf16, #tpu.memory_space<vmem>>, vector<1x1x64x128xbf16>
    %70 = vector.shape_cast %69 : vector<1x1x64x128xbf16> to vector<64x128xbf16>
    %cst_62 = arith.constant dense<0.000000e+00> : vector<64x128xf32>
    %71 = tpu.matmul %68, %70, %cst_62 {dimension_numbers = #tpu.dot_dimension_numbers<[1], [0], [0], [1], [0, 0, 1, 1], [], []>} : vector<64x64xbf16>, vector<64x128xbf16>, vector<64x128xf32> -> vector<64x128xf32>
    %72 = arith.addf %66, %71 : vector<64x128xf32>
    %c0_63 = arith.constant 0 : index
    %c0_64 = arith.constant 0 : index
    %73 = vector.load %arg6[%c0_63, %c0_64] : memref<1x128xf32, #tpu.memory_space<vmem>>, vector<1x128xf32>
    %74 = vector.broadcast %73 : vector<1x128xf32> to vector<64x128xf32>
    %75 = arith.addf %72, %74 : vector<64x128xf32>
    %76 = vector.shape_cast %75 : vector<64x128xf32> to vector<8x8x128xf32>
    %c0_65 = arith.constant 0 : index
    %c0_66 = arith.constant 0 : index
    %c0_67 = arith.constant 0 : index
    %c0_68 = arith.constant 0 : index
    %77 = vector.load %arg7[%c0_65, %c0_66, %c0_67, %c0_68] : memref<1x8x8x128xf32, #tpu.memory_space<vmem>>, vector<1x8x8x128xf32>
    %78 = vector.shape_cast %77 : vector<1x8x8x128xf32> to vector<8x8x128xf32>
    %79 = vector.shape_cast %76 : vector<8x8x128xf32> to vector<1x8x8x128xf32>
    tpu.vector_store %arg7[%c0_65, %c0_66, %c0_67, %c0_68], %79 {strides = array<i32>} : memref<1x8x8x128xf32, #tpu.memory_space<vmem>>, vector<1x8x8x128xf32>,
    return
  }
  func.func @transform_0(%arg0: i32, %arg1: i32) -> (i32, i32, i32, i32) {
    %c0_i32 = arith.constant 0 : i32
    %c0_i32_0 = arith.constant 0 : i32
    %c0_i32_1 = arith.constant 0 : i32
    return %arg0, %arg1, %c0_i32, %c0_i32_0 : i32, i32, i32, i32
  }
  func.func @transform_1(%arg0: i32, %arg1: i32) -> (i32, i32, i32, i32) {
    %c1_i32 = arith.constant 1 : i32
    %0 = arith.addi %arg1, %c1_i32 : i32
    %c8_i32 = arith.constant 8 : i32
    %1 = arith.muli %0, %c8_i32 : i32
    %c0_i32 = arith.constant 0 : i32
    %c0_i32_0 = arith.constant 0 : i32
    %c0_i32_1 = arith.constant 0 : i32
    return %arg0, %1, %c0_i32, %c0_i32_0 : i32, i32, i32, i32
  }
  func.func @transform_2(%arg0: i32, %arg1: i32) -> (i32, i32, i32, i32) {
    %c1_i32 = arith.constant 1 : i32
    %0 = arith.addi %arg1, %c1_i32 : i32
    %c8_i32 = arith.constant 8 : i32
    %1 = arith.muli %0, %c8_i32 : i32
    %c1_i32_0 = arith.constant 1 : i32
    %2 = arith.addi %1, %c1_i32_0 : i32
    %c0_i32 = arith.constant 0 : i32
    %c0_i32_1 = arith.constant 0 : i32
    %c0_i32_2 = arith.constant 0 : i32
    return %arg0, %2, %c0_i32, %c0_i32_1 : i32, i32, i32, i32
  }
  func.func @transform_3(%arg0: i32, %arg1: i32) -> (i32, i32, i32, i32) {
    %c0_i32 = arith.constant 0 : i32
    %c0_i32_0 = arith.constant 0 : i32
    %c0_i32_1 = arith.constant 0 : i32
    %c0_i32_2 = arith.constant 0 : i32
    %c0_i32_3 = arith.constant 0 : i32
    return %c0_i32, %c0_i32_0, %c0_i32_1, %c0_i32_2 : i32, i32, i32, i32
  }
  func.func @transform_4(%arg0: i32, %arg1: i32) -> (i32, i32) {
    %c0_i32 = arith.constant 0 : i32
    %c0_i32_0 = arith.constant 0 : i32
    %c0_i32_1 = arith.constant 0 : i32
    return %c0_i32, %c0_i32_0 : i32, i32
  }
  func.func @transform_5(%arg0: i32, %arg1: i32) -> (i32, i32, i32, i32) {
    %c0_i32 = arith.constant 0 : i32
    %c0_i32_0 = arith.constant 0 : i32
    %c0_i32_1 = arith.constant 0 : i32
    return %arg0, %arg1, %c0_i32, %c0_i32_0 : i32, i32, i32, i32
  }
}

module attributes {stable_mosaic.version = 11 : i64} {
  func.func @kernel(%arg0: i32, %arg1: i32, %arg2: memref<1x8x8x128xf32, #tpu.memory_space<vmem>>, %arg3: memref<1x8x8x128xf32, #tpu.memory_space<vmem>>, %arg4: memref<1x1xf32, #tpu.memory_space<vmem>>, %arg5: memref<8x8x128xf32, #tpu.memory_space<vmem>>) attributes {dimension_semantics = [#tpu.dimension_semantics<arbitrary>, #tpu.dimension_semantics<arbitrary>], iteration_bounds = array<i64: 2, 1>, scalar_prefetch = 0 : i64, scratch_operands = 1 : i64, tpu.core_type = #tpu.core_type<tc>, window_params = [{transform_indices = @transform_0, window_bounds = array<i64: 1, 8, 8, 128>}, {transform_indices = @transform_1, window_bounds = array<i64: 1, 8, 8, 128>}, {pipeline_mode = #tpu.pipeline_mode<synchronous>, transform_indices = @transform_2, window_bounds = array<i64: 1, 1>}]} {
    %c0_i32 = arith.constant 0 : i32
    %0 = arith.cmpi eq, %arg0, %c0_i32 : i32
    %c0_i32_0 = arith.constant 0 : i32
    %1 = arith.cmpi eq, %arg1, %c0_i32_0 : i32
    %2 = arith.andi %0, %1 : i1
    %3 = arith.extui %2 : i1 to i32
    %c0_i32_1 = arith.constant 0 : i32
    %4 = arith.cmpi ne, %3, %c0_i32_1 : i32
    scf.if %4 {
      %cst = arith.constant 0.000000e+00 : f32
      %19 = vector.broadcast %cst : f32 to vector<8x8x128xf32>
      %c0_17 = arith.constant 0 : index
      %c0_18 = arith.constant 0 : index
      %c0_19 = arith.constant 0 : index
      %20 = vector.load %arg5[%c0_17, %c0_18, %c0_19] : memref<8x8x128xf32, #tpu.memory_space<vmem>>, vector<8x8x128xf32>
      tpu.vector_store %arg5[%c0_17, %c0_18, %c0_19], %19 {strides = array<i32>} : memref<8x8x128xf32, #tpu.memory_space<vmem>>, vector<8x8x128xf32>,
    } else {
    }
    %c0 = arith.constant 0 : index
    %c0_2 = arith.constant 0 : index
    %c0_3 = arith.constant 0 : index
    %5 = vector.load %arg5[%c0, %c0_2, %c0_3] : memref<8x8x128xf32, #tpu.memory_space<vmem>>, vector<8x8x128xf32>
    %c0_4 = arith.constant 0 : index
    %c0_5 = arith.constant 0 : index
    %c0_6 = arith.constant 0 : index
    %c0_7 = arith.constant 0 : index
    %6 = vector.load %arg2[%c0_4, %c0_5, %c0_6, %c0_7] : memref<1x8x8x128xf32, #tpu.memory_space<vmem>>, vector<1x8x8x128xf32>
    %7 = vector.shape_cast %6 : vector<1x8x8x128xf32> to vector<8x8x128xf32>
    %c0_8 = arith.constant 0 : index
    %c0_9 = arith.constant 0 : index
    %c0_10 = arith.constant 0 : index
    %c0_11 = arith.constant 0 : index
    %8 = vector.load %arg3[%c0_8, %c0_9, %c0_10, %c0_11] : memref<1x8x8x128xf32, #tpu.memory_space<vmem>>, vector<1x8x8x128xf32>
    %9 = vector.shape_cast %8 : vector<1x8x8x128xf32> to vector<8x8x128xf32>
    %10 = arith.subf %7, %9 : vector<8x8x128xf32>
    %11 = math.absf %10 : vector<8x8x128xf32>
    %12 = arith.addf %5, %11 : vector<8x8x128xf32>
    %c0_12 = arith.constant 0 : index
    %c0_13 = arith.constant 0 : index
    %c0_14 = arith.constant 0 : index
    %13 = vector.load %arg5[%c0_12, %c0_13, %c0_14] : memref<8x8x128xf32, #tpu.memory_space<vmem>>, vector<8x8x128xf32>
    tpu.vector_store %arg5[%c0_12, %c0_13, %c0_14], %12 {strides = array<i32>} : memref<8x8x128xf32, #tpu.memory_space<vmem>>, vector<8x8x128xf32>,
    %c1_i32 = arith.constant 1 : i32
    %14 = arith.cmpi eq, %arg0, %c1_i32 : i32
    %c0_i32_15 = arith.constant 0 : i32
    %15 = arith.cmpi eq, %arg1, %c0_i32_15 : i32
    %16 = arith.andi %14, %15 : i1
    %17 = arith.extui %16 : i1 to i32
    %c0_i32_16 = arith.constant 0 : i32
    %18 = arith.cmpi ne, %17, %c0_i32_16 : i32
    scf.if %18 {
      %cst = arith.constant 0.000000e+00 : f32
      %19 = vector.broadcast %cst : f32 to vector<1x1xf32>
      %c0_17 = arith.constant 0 : index
      %c0_18 = arith.constant 0 : index
      %c0_19 = arith.constant 0 : index
      %20 = vector.load %arg5[%c0_17, %c0_18, %c0_19] : memref<8x8x128xf32, #tpu.memory_space<vmem>>, vector<8x8x128xf32>
      %21 = vector.shape_cast %20 : vector<8x8x128xf32> to vector<1x8x8x128xf32>
      %cst_20 = arith.constant dense<0.000000e+00> : vector<1xf32>
      %22 = vector.multi_reduction <add>, %21, %cst_20 [1, 2, 3] : vector<1x8x8x128xf32> to vector<1xf32>
      %23 = vector.shape_cast %22 : vector<1xf32> to vector<1x1x1x1xf32>
      %24 = vector.extract %23[0, 0, 0, 0] : f32 from vector<1x1x1x1xf32>
      %25 = vector.broadcast %24 : f32 to vector<1x1xf32>
      %26 = arith.addf %19, %25 : vector<1x1xf32>
      %c0_21 = arith.constant 0 : index
      %c0_22 = arith.constant 0 : index
      %27 = vector.load %arg4[%c0_21, %c0_22] : memref<1x1xf32, #tpu.memory_space<vmem>>, vector<1x1xf32>
      tpu.vector_store %arg4[%c0_21, %c0_22], %26 {strides = array<i32>} : memref<1x1xf32, #tpu.memory_space<vmem>>, vector<1x1xf32>,
    } else {
    }
    return
  }
  func.func @transform_0(%arg0: i32, %arg1: i32) -> (i32, i32, i32, i32) {
    %c0_i32 = arith.constant 0 : i32
    %c0_i32_0 = arith.constant 0 : i32
    %c0_i32_1 = arith.constant 0 : i32
    return %arg0, %arg1, %c0_i32, %c0_i32_0 : i32, i32, i32, i32
  }
  func.func @transform_1(%arg0: i32, %arg1: i32) -> (i32, i32, i32, i32) {
    %c0_i32 = arith.constant 0 : i32
    %c0_i32_0 = arith.constant 0 : i32
    %c0_i32_1 = arith.constant 0 : i32
    return %arg0, %arg1, %c0_i32, %c0_i32_0 : i32, i32, i32, i32
  }
  func.func @transform_2(%arg0: i32, %arg1: i32) -> (i32, i32) {
    %c0_i32 = arith.constant 0 : i32
    %c0_i32_0 = arith.constant 0 : i32
    %c0_i32_1 = arith.constant 0 : i32
    return %c0_i32, %c0_i32_0 : i32, i32
  }
}

</mosaic_0001>

<llo_original>
// kernel: a_call__.4
$region0: #{a_call__.4}
  #allocation0 [shape = 'u32[]', space=smem, size = 0x4, offset = 0x4, fixed_abs, tag = 'smem constant byte address 0x4 - core index']
  #allocation1 [shape = 'u32[144,128]{1,0:T(1,128)}', space=vmem, size = 0x12000, scoped, tag = 'internal scratch']
  %s0 = inlined_call_operand.vmem [shape: bf16[4,16,16,27], index: 0, kind: input, shape index: {}]
  %s1 = inlined_call_operand.vmem [shape: bf16[27,64], index: 1, kind: input, shape index: {}]
  %s2 = inlined_call_operand.vmem [shape: f32[1,64], index: 2, kind: input, shape index: {}]
  %s3 = inlined_call_operand.vmem [shape: f32[4,16,16,64], index: 3, kind: output, shape index: {}]
  %s4 = sld [smem:[#allocation0]]
  $region45: #{a_call__.4} parent=0
    _
  %s6 = ssub.s32 1, %s4
  %s7 = scalar_select 0, %s6, %s4
  loop: start=0, step=1, limit=10
  $region2: #{a_call__.4} parent=0 // loop_pre_header
    _
  $region3: #{a_call__.4} parent=0 // loop_header
    %s9 = sphi 0, %s13
    %p10 = scmp.ge.s32.totalorder %s9, 10
    %s16 = sphi 0, %s28
    %s17 = sphi 0, %s24
    %s18 = sphi 0, %s16
    %s19 = sphi 0, %s17
    %s20 = sphi 0, %s18
    %s21 = sphi 0, %s19
    %s33 = sphi 0, %s35
    %s36 = sphi 0, %s33
    %s37 = sphi 0, %s36
    %s53 = sphi 0, %s37
    %s57 = sphi 0, %s57
    %s59 = sphi 0, %s57
    %s60 = sphi 0, %s59
    %s74 = sphi 0, %s60
    %s78 = sphi 0, %s78
    %s80 = sphi 0, %s78
    %s81 = sphi 0, %s80
    %s95 = sphi 0, %s81
    %s103 = sphi 0, %s105
    %s106 = sphi 0, %s103
    %s107 = sphi 0, %s106
    %s123 = sphi 0, %s107
  $region4: #{a_call__.4} parent=0 // loop_header_branch
    %12 = sbr.rel (%p10) target = $region8
  $region5: #{a_call__.4} parent=0 // loop_body
    %s14 = ssub.s32 %s9, 1
    %s15 = ssub.s32 %s9, 2
    %s22 = sadd.s32 1, %s17
    %p23 = scmp.ge.s32.totalorder %s22, 2
    %s24 = scalar_select %p23, 0, %s22
    %s25 = sadd.s32 1, %s16
    %s26 = scalar_select %p23, %s25, %s16
    %p27 = scmp.ge.s32.totalorder %s26, 4
    %s28 = scalar_select %p27, 0, %s26
    %s29 = ssub.s32 %s16, %s28
    %s30 = ssub.s32 %s17, %s24
    %s31 = sor.u32 %s29, %s30
    %p32 = scmp.eq.s32.totalorder %s31, 0
    %s34 = sadd.s32 %s33, 1
    %s35 = scalar_select %p32, %s33, %s34
    %p38 = pneg %p32
    %p39 = scmp.eq.s32.totalorder %s9, 7
    %p40 = por %p38, %p39
    %p41 = scmp.ne.s32.totalorder %s33, %s36
    %p42 = scmp.eq.s32.totalorder %s9, 0
    %p43 = por %p41, %p42
    %p44 = scmp.ne.s32.totalorder %s33, %s36
    %p45 = scmp.eq.s32.totalorder %s14, 7
    %p46 = por %p44, %p45
    %p47 = scmp.ne.s32.totalorder %s36, %s37
    %p48 = scmp.eq.s32.totalorder %s14, 0
    %p49 = por %p47, %p48
    %p50 = scmp.ne.s32.totalorder %s36, %s37
    %p51 = scmp.eq.s32.totalorder %s15, 7
    %p52 = por %p50, %p51
    %p54 = scmp.ne.s32.totalorder %s37, %s53
    %p55 = scmp.eq.s32.totalorder %s15, 0
    %p56 = por %p54, %p55
    %s58 = sadd.s32 %s57, 1
    %p61 = scmp.eq.s32.totalorder %s9, 7
    %p62 = scmp.ne.s32.totalorder %s57, %s59
    %p63 = scmp.eq.s32.totalorder %s9, 0
    %p64 = por %p62, %p63
    %p65 = scmp.ne.s32.totalorder %s57, %s59
    %p66 = scmp.eq.s32.totalorder %s14, 7
    %p67 = por %p65, %p66
    %p68 = scmp.ne.s32.totalorder %s59, %s60
    %p69 = scmp.eq.s32.totalorder %s14, 0
    %p70 = por %p68, %p69
    %p71 = scmp.ne.s32.totalorder %s59, %s60
    %p72 = scmp.eq.s32.totalorder %s15, 7
    %p73 = por %p71, %p72
    %p75 = scmp.ne.s32.totalorder %s60, %s74
    %p76 = scmp.eq.s32.totalorder %s15, 0
    %p77 = por %p75, %p76
    %s79 = sadd.s32 %s78, 1
    %p82 = scmp.eq.s32.totalorder %s9, 7
    %p83 = scmp.ne.s32.totalorder %s78, %s80
    %p84 = scmp.eq.s32.totalorder %s9, 0
    %p85 = por %p83, %p84
    %p86 = scmp.ne.s32.totalorder %s78, %s80
    %p87 = scmp.eq.s32.totalorder %s14, 7
    %p88 = por %p86, %p87
    %p89 = scmp.ne.s32.totalorder %s80, %s81
    %p90 = scmp.eq.s32.totalorder %s14, 0
    %p91 = por %p89, %p90
    %p92 = scmp.ne.s32.totalorder %s80, %s81
    %p93 = scmp.eq.s32.totalorder %s15, 7
    %p94 = por %p92, %p93
    %p96 = scmp.ne.s32.totalorder %s81, %s95
    %p97 = scmp.eq.s32.totalorder %s15, 0
    %p98 = por %p96, %p97
    %s99 = ssub.s32 %s16, %s28
    %s100 = ssub.s32 %s17, %s24
    %s101 = sor.u32 %s99, %s100
    %p102 = scmp.eq.s32.totalorder %s101, 0
    %s104 = sadd.s32 %s103, 1
    %s105 = scalar_select %p102, %s103, %s104
    %p108 = pneg %p102
    %p109 = scmp.eq.s32.totalorder %s9, 7
    %p110 = por %p108, %p109
    %p111 = scmp.ne.s32.totalorder %s103, %s106
    %p112 = scmp.eq.s32.totalorder %s9, 0
    %p113 = por %p111, %p112
    %p114 = scmp.ne.s32.totalorder %s103, %s106
    %p115 = scmp.eq.s32.totalorder %s14, 7
    %p116 = por %p114, %p115
    %p117 = scmp.ne.s32.totalorder %s106, %s107
    %p118 = scmp.eq.s32.totalorder %s14, 0
    %p119 = por %p117, %p118
    %p120 = scmp.ne.s32.totalorder %s106, %s107
    %p121 = scmp.eq.s32.totalorder %s15, 7
    %p122 = por %p120, %p121
    %p124 = scmp.ne.s32.totalorder %s107, %s123
    %p125 = scmp.eq.s32.totalorder %s15, 0
    %p126 = por %p124, %p125
    %p127 = scmp.le.s32.totalorder 1, %s9
    %p128 = scmp.lt.s32.totalorder %s9, 9
    %p129 = pnand %p127, %p128
    %p130 = pneg %p129
    // Predicated region
    $region9: #{a_call__.4} parent=5 // pred_check
      _
    $region10: #{a_call__.4} parent=5 // pred_check_branch
      %132 = sbr.rel (%p129) target = $region12
    $region11: #{a_call__.4} parent=5 // pred_region
      %s133 = ssub.s32 %s9, 1
      // Predicated region
      $region13: #{a_call__.4} parent=11 // pred_check
        %p134 = pneg %p70
      $region14: #{a_call__.4} parent=11 // pred_check_branch
        %136 = sbr.rel (%p134) target = $region16
      $region15: #{a_call__.4} parent=11 // pred_region
        _
      $region16: #{a_call__.4} parent=11 // pred_fallthru
        _
      // Predicated region
      $region17: #{a_call__.4} parent=11 // pred_check
        %p137 = pneg %p91
      $region18: #{a_call__.4} parent=11 // pred_check_branch
        %139 = sbr.rel (%p137) target = $region20
      $region19: #{a_call__.4} parent=11 // pred_region
        _
      $region20: #{a_call__.4} parent=11 // pred_fallthru
        _
    $region12: #{a_call__.4} parent=5 // pred_fallthru
      _
    %p140 = scmp.lt.s32.totalorder %s9, 8
    // Predicated region
    $region21: #{a_call__.4} parent=5 // pred_check
      %p141 = pneg %p140
    $region22: #{a_call__.4} parent=5 // pred_check_branch
      %143 = sbr.rel (%p141) target = $region24
    $region23: #{a_call__.4} parent=5 // pred_region
      // Predicated region
      $region25: #{a_call__.4} parent=23 // pred_check
        %p144 = pneg %p43
      $region26: #{a_call__.4} parent=23 // pred_check_branch
        %146 = sbr.rel (%p144) target = $region28
      $region27: #{a_call__.4} parent=23 // pred_region
        %s147 = smul.u32 8, %s17
        %p148 = scmp.lt.s32.totalorder %s16, 3
        %s149 = scalar_select %p148, %s16, 3
        %p150 = scmp.lt.s32.totalorder %s147, 15
        %s151 = scalar_select %p150, %s147, 15
        %s152 = smul.addr %s151, 2
        %s153 = smul.addr %s149, 32
        %s154 = sadd.s32 %s152, %s153
        %s155 = smul.addr %s154, 4
        %s156 = scalar_lea.vmem %s0, %s155
        %s157 = smul.u32 8, %s17
      $region28: #{a_call__.4} parent=23 // pred_fallthru
        _
    $region24: #{a_call__.4} parent=5 // pred_fallthru
      _
    %p158 = scmp.le.s32.totalorder 1, %s9
    %p159 = scmp.lt.s32.totalorder %s9, 9
    %p160 = pnand %p158, %p159
    %p161 = pneg %p160
    // Predicated region
    $region29: #{a_call__.4} parent=5 // pred_check
      _
    $region30: #{a_call__.4} parent=5 // pred_check_branch
      %163 = sbr.rel (%p160) target = $region32
    $region31: #{a_call__.4} parent=5 // pred_region
      %s164 = ssub.s32 %s9, 1
      %s165 = smul.u32 8, %s19
      %p166 = scmp.lt.s32.totalorder %s18, 3
      %s167 = scalar_select %p166, %s18, 3
      %p168 = scmp.lt.s32.totalorder %s165, 15
      %s169 = scalar_select %p168, %s165, 15
      %s170 = smul.addr %s169, 2
      %s171 = smul.addr %s167, 32
      %s172 = sadd.s32 %s170, %s171
      %s173 = smul.addr %s172, 4
      %s174 = scalar_lea.vmem %s0, %s173
      %p175 = pneg %p49
      %p176 = pneg %p46
      %p177 = pneg %p70
      %p178 = pneg %p67
      %p179 = pneg %p91
      %p180 = pneg %p88
      %p181 = pneg %p119
      %p182 = pneg %p116
      %s183 = smul.u32 8, %s19
      %p184 = scmp.lt.s32.totalorder %s18, 3
      %s185 = scalar_select %p184, %s18, 3
      %p186 = scmp.lt.s32.totalorder %s183, 15
      %s187 = scalar_select %p186, %s183, 15
      %s188 = smul.addr %s187, 2
      %s189 = smul.addr %s185, 32
      %s190 = sadd.s32 %s188, %s189
      %s191 = smul.addr %s190, 8
      %s192 = scalar_lea.vmem %s3, %s191
      %s193 = smul.u32 8, %s19
      %p194 = scmp.lt.s32.totalorder %s18, 3
      %s195 = scalar_select %p194, %s18, 3
      %p196 = scmp.lt.s32.totalorder %s193, 15
      %s197 = scalar_select %p196, %s193, 15
      %s198 = smul.addr %s197, 2
      %s199 = smul.addr %s195, 32
      %s200 = sadd.s32 %s198, %s199
      %s201 = smul.addr %s200, 4
      %s202 = scalar_lea.vmem %s0, %s201
      %s203 = smul.u32 8, %s19
      %s204 = smul.u32 8, %s19
      %p205 = scmp.lt.s32.totalorder %s18, 3
      %s206 = scalar_select %p205, %s18, 3
      %p207 = scmp.lt.s32.totalorder %s204, 15
      %s208 = scalar_select %p207, %s204, 15
      %s209 = smul.addr %s208, 2
      %s210 = smul.addr %s206, 32
      %s211 = sadd.s32 %s209, %s210
      %s212 = smul.addr %s211, 8
      %s213 = scalar_lea.vmem %s3, %s212
      %s214 = smul.u32 8, %s19
      %v216 = vld [vmem:[%s202] sm:$0xf]
      %v217 = vld [vmem:[%s202 + $0x4] sm:$0xf]
      %v218 = vld [vmem:[%s202 + $0x8] sm:$0xf]
      %v219 = vld [vmem:[%s202 + $0xc] sm:$0xf]
      %v220 = vld [vmem:[%s202 + $0x10] sm:$0xf]
      %v221 = vld [vmem:[%s202 + $0x14] sm:$0xf]
      %v222 = vld [vmem:[%s202 + $0x18] sm:$0xf]
      %v223 = vld [vmem:[%s202 + $0x1c] sm:$0xf]
      %v224 = vld [vmem:[%s202 + $0x20] sm:$0xf]
      %v225 = vld [vmem:[%s202 + $0x24] sm:$0xf]
      %v226 = vld [vmem:[%s202 + $0x28] sm:$0xf]
      %v227 = vld [vmem:[%s202 + $0x2c] sm:$0xf]
      %v228 = vld [vmem:[%s202 + $0x30] sm:$0xf]
      %v229 = vld [vmem:[%s202 + $0x34] sm:$0xf]
      %v230 = vld [vmem:[%s202 + $0x38] sm:$0xf]
      %v231 = vld [vmem:[%s202 + $0x3c] sm:$0xf]
      %v232 = vld [vmem:[%s1] sm:$0xf]
      %v233 = vld [vmem:[%s1 + $0x4] sm:$0xf]
      %v234 = vld [vmem:[%s1 + $0x8] sm:$0xf]
      %v235 = vld [vmem:[%s1 + $0xc] sm:$0x3]
      %v236 = vld [vmem:[%s2] sm:$0x1]
      %v238 = vlaneseq
      %v239 = vshrl.u32 %v238, 7
      %v240 = vsub.s32 0, %v239
      %v241 = vrot.slane %v236, %v240
      %v259 = vunpack.c.l.b16 %v216
      %v260 = vunpack.c.l.b16 %v217
      %v261 = vunpack.c.l.b16 %v218
      %v262 = vunpack.c.l.b16 %v219
      %v263 = vunpack.c.l.b16 %v220
      %v264 = vunpack.c.l.b16 %v221
      %v265 = vunpack.c.l.b16 %v222
      %v266 = vunpack.c.l.b16 %v223
      %v267 = vunpack.c.l.b16 %v224
      %v268 = vunpack.c.l.b16 %v225
      %v269 = vunpack.c.l.b16 %v226
      %v270 = vunpack.c.l.b16 %v227
      %v271 = vunpack.c.l.b16 %v228
      %v272 = vunpack.c.l.b16 %v229
      %v273 = vunpack.c.l.b16 %v230
      %v274 = vunpack.c.l.b16 %v231
      %v275 = vpack.c.b16 %v260, %v259
      %v276 = vpack.c.b16 %v262, %v261
      %v277 = vpack.c.b16 %v264, %v263
      %v278 = vpack.c.b16 %v266, %v265
      %v279 = vpack.c.b16 %v268, %v267
      %v280 = vpack.c.b16 %v270, %v269
      %v281 = vpack.c.b16 %v272, %v271
      %v282 = vpack.c.b16 %v274, %v273
      %v287 = vunpack.c.l.b16 %v232
      %v288 = vunpack.c.l.b16 %v233
      %v289 = vunpack.c.l.b16 %v234
      %v290 = vunpack.c.l.b16 %v235
      %v291 = vpack.c.b16 %v288, %v287
      %v292 = vpack.c.b16 %v290, %v289
      %vm294 = vcmask 220160
      %v296 = vsel %vm294, %v275, 0
      %v299 = vsel %vm294, %v276, 0
      %v302 = vsel %vm294, %v277, 0
      %v305 = vsel %vm294, %v278, 0
      %v308 = vsel %vm294, %v279, 0
      %v311 = vsel %vm294, %v280, 0
      %v314 = vsel %vm294, %v281, 0
      %v317 = vsel %vm294, %v282, 0
      %vm319 = vcmask 1044480
      %vm320 = vcmask 1045504
      %v321 = vsel %vm319, 4294967295, 65535
      %v322 = vsel %vm320, %v321, 0
      %v324 = vand.u32 %v292, %v322
      %326 = vmatprep.subr.bf16.mxu0 0
      %327 = vmatpush1.bf16.msra.mxu0 0
      %328 = vmatprep.subr.bf16.mxu0 0
      %329 = vmatpush1.bf16.msra.mxu0 0
      %330 = vmatprep.subr.bf16.mxu0 0
      %331 = vmatpush1.bf16.msra.mxu0 0
      %332 = vmatprep.subr.bf16.mxu0 0
      %333 = vmatpush1.bf16.msra.mxu0 0
      %334 = vmatprep.subr.bf16.mxu0 0
      %335 = vmatpush1.bf16.msra.mxu0 0
      %336 = vmatprep.subr.bf16.mxu0 0
      %337 = vmatpush1.bf16.msra.mxu0 0
      %338 = vmatprep.subr.bf16.mxu0 0
      %339 = vmatpush1.bf16.msra.mxu0 %v324
      %340 = vmatprep.subr.bf16.mxu0 0
      %341 = vmatpush1.bf16.msra.mxu0 %v291
      %342 = vmatprep.subr.bf16.mxu0 0
      %343 = vmatpush2.bf16.msra.mxu0 0
      %344 = vmatprep.subr.bf16.mxu0 0
      %345 = vmatpush2.bf16.msra.mxu0 0
      %346 = vmatprep.subr.bf16.mxu0 0
      %347 = vmatpush2.bf16.msra.mxu0 0
      %348 = vmatprep.subr.bf16.mxu0 0
      %349 = vmatpush2.bf16.msra.mxu0 0
      %350 = vmatprep.subr.bf16.mxu0 0
      %351 = vmatpush2.bf16.msra.mxu0 0
      %352 = vmatprep.subr.bf16.mxu0 0
      %353 = vmatpush2.bf16.msra.mxu0 0
      %354 = vmatprep.subr.bf16.mxu0 0
      %355 = vmatpush2.bf16.msra.mxu0 0
      %356 = vmatprep.subr.bf16.mxu0 0
      %357 = vmatpush2.bf16.msra.mxu0 0
      %358 = vmatprep.mubr.bf16.mxu0 0
      %359 = vmatmul.mubr.bf16.gmra.mxu0 %v296
      %v360 = vpop.f32.mrf.mxu0
      %v361 = vadd.f32 %v241, %v360
      %v362 = vpop.f32.mrf.mxu0
      %v363 = vpop.f32.mrf.mxu0
      %v364 = vadd.f32 %v241, %v363
      %v365 = vpop.f32.mrf.mxu0
      %366 = vmatprep.mubr.bf16.mxu0 0
      %367 = vmatmul.mubr.bf16.gmra.mxu0 %v299
      %v368 = vpop.f32.mrf.mxu0
      %v369 = vadd.f32 %v241, %v368
      %v370 = vpop.f32.mrf.mxu0
      %v371 = vpop.f32.mrf.mxu0
      %v372 = vadd.f32 %v241, %v371
      %v373 = vpop.f32.mrf.mxu0
      %374 = vmatprep.mubr.bf16.mxu0 0
      %375 = vmatmul.mubr.bf16.gmra.mxu0 %v302
      %v376 = vpop.f32.mrf.mxu0
      %v377 = vadd.f32 %v241, %v376
      %v378 = vpop.f32.mrf.mxu0
      %v379 = vpop.f32.mrf.mxu0
      %v380 = vadd.f32 %v241, %v379
      %v381 = vpop.f32.mrf.mxu0
      %382 = vmatprep.mubr.bf16.mxu0 0
      %383 = vmatmul.mubr.bf16.gmra.mxu0 %v305
      %v384 = vpop.f32.mrf.mxu0
      %v385 = vadd.f32 %v241, %v384
      %v386 = vpop.f32.mrf.mxu0
      %v387 = vpop.f32.mrf.mxu0
      %v388 = vadd.f32 %v241, %v387
      %v389 = vpop.f32.mrf.mxu0
      %390 = vmatprep.mubr.bf16.mxu0 0
      %391 = vmatmul.mubr.bf16.gmra.mxu0 %v308
      %v392 = vpop.f32.mrf.mxu0
      %v393 = vadd.f32 %v241, %v392
      %v394 = vpop.f32.mrf.mxu0
      %v395 = vpop.f32.mrf.mxu0
      %v396 = vadd.f32 %v241, %v395
      %v397 = vpop.f32.mrf.mxu0
      %398 = vmatprep.mubr.bf16.mxu0 0
      %399 = vmatmul.mubr.bf16.gmra.mxu0 %v311
      %v400 = vpop.f32.mrf.mxu0
      %v401 = vadd.f32 %v241, %v400
      %v402 = vpop.f32.mrf.mxu0
      %v403 = vpop.f32.mrf.mxu0
      %v404 = vadd.f32 %v241, %v403
      %v405 = vpop.f32.mrf.mxu0
      %406 = vmatprep.mubr.bf16.mxu0 0
      %407 = vmatmul.mubr.bf16.gmra.mxu0 %v314
      %v408 = vpop.f32.mrf.mxu0
      %v409 = vadd.f32 %v241, %v408
      %v410 = vpop.f32.mrf.mxu0
      %v411 = vpop.f32.mrf.mxu0
      %v412 = vadd.f32 %v241, %v411
      %v413 = vpop.f32.mrf.mxu0
      %414 = vmatprep.mubr.bf16.mxu0 0
      %415 = vmatmul.mubr.bf16.gmra.mxu0 %v317
      %v416 = vpop.f32.mrf.mxu0
      %v417 = vadd.f32 %v241, %v416
      %v418 = vpop.f32.mrf.mxu0
      %v419 = vpop.f32.mrf.mxu0
      %v420 = vadd.f32 %v241, %v419
      %v421 = vpop.f32.mrf.mxu0
      %422 = vdwg.mxu0
      %v423 = vmax.f32 %v361, 0.0
      %v424 = vmax.f32 %v364, 0.0
      %v425 = vmax.f32 %v369, 0.0
      %v426 = vmax.f32 %v372, 0.0
      %v427 = vmax.f32 %v377, 0.0
      %v428 = vmax.f32 %v380, 0.0
      %v429 = vmax.f32 %v385, 0.0
      %v430 = vmax.f32 %v388, 0.0
      %v431 = vmax.f32 %v393, 0.0
      %v432 = vmax.f32 %v396, 0.0
      %v433 = vmax.f32 %v401, 0.0
      %v434 = vmax.f32 %v404, 0.0
      %v435 = vmax.f32 %v409, 0.0
      %v436 = vmax.f32 %v412, 0.0
      %v437 = vmax.f32 %v417, 0.0
      %v438 = vmax.f32 %v420, 0.0
      %vm439 = vcmask 523264
      %440 = vst.msk [vmem:[%s213] sm:$0xff] %vm439, %v423
      %441 = vst.msk [vmem:[%s213 + $0x8] sm:$0xff] %vm439, %v424
      %442 = vst.msk [vmem:[%s213 + $0x10] sm:$0xff] %vm439, %v425
      %443 = vst.msk [vmem:[%s213 + $0x18] sm:$0xff] %vm439, %v426
      %444 = vst.msk [vmem:[%s213 + $0x20] sm:$0xff] %vm439, %v427
      %445 = vst.msk [vmem:[%s213 + $0x28] sm:$0xff] %vm439, %v428
      %446 = vst.msk [vmem:[%s213 + $0x30] sm:$0xff] %vm439, %v429
      %447 = vst.msk [vmem:[%s213 + $0x38] sm:$0xff] %vm439, %v430
      %448 = vst.msk [vmem:[%s213 + $0x40] sm:$0xff] %vm439, %v431
      %449 = vst.msk [vmem:[%s213 + $0x48] sm:$0xff] %vm439, %v432
      %450 = vst.msk [vmem:[%s213 + $0x50] sm:$0xff] %vm439, %v433
      %451 = vst.msk [vmem:[%s213 + $0x58] sm:$0xff] %vm439, %v434
      %452 = vst.msk [vmem:[%s213 + $0x60] sm:$0xff] %vm439, %v435
      %453 = vst.msk [vmem:[%s213 + $0x68] sm:$0xff] %vm439, %v436
      %454 = vst.msk [vmem:[%s213 + $0x70] sm:$0xff] %vm439, %v437
      %455 = vst.msk [vmem:[%s213 + $0x78] sm:$0xff] %vm439, %v438
      %s456 = smul.u32 8, %s19
      %p457 = scmp.lt.s32.totalorder %s18, 3
      %s458 = scalar_select %p457, %s18, 3
      %p459 = scmp.lt.s32.totalorder %s456, 15
      %s460 = scalar_select %p459, %s456, 15
      %s461 = smul.addr %s460, 2
      %s462 = smul.addr %s458, 32
      %s463 = sadd.s32 %s461, %s462
      %s464 = smul.addr %s463, 8
      %s465 = scalar_lea.vmem %s3, %s464
      // Predicated region
      $region33: #{a_call__.4} parent=31 // pred_check
        %p466 = pneg %p116
      $region34: #{a_call__.4} parent=31 // pred_check_branch
        %468 = sbr.rel (%p466) target = $region36
      $region35: #{a_call__.4} parent=31 // pred_region
        %s469 = smul.u32 8, %s19
      $region36: #{a_call__.4} parent=31 // pred_fallthru
        _
    $region32: #{a_call__.4} parent=5 // pred_fallthru
      _
    %p470 = scmp.le.s32.totalorder 2, %s9
    // Predicated region
    $region37: #{a_call__.4} parent=5 // pred_check
      %p471 = pneg %p470
    $region38: #{a_call__.4} parent=5 // pred_check_branch
      %473 = sbr.rel (%p471) target = $region40
    $region39: #{a_call__.4} parent=5 // pred_region
      %s474 = ssub.s32 %s9, 2
      // Predicated region
      $region41: #{a_call__.4} parent=39 // pred_check
        %p475 = pneg %p122
      $region42: #{a_call__.4} parent=39 // pred_check_branch
        %477 = sbr.rel (%p475) target = $region44
      $region43: #{a_call__.4} parent=39 // pred_region
        %s478 = smul.u32 8, %s21
        %p479 = scmp.lt.s32.totalorder %s20, 3
        %s480 = scalar_select %p479, %s20, 3
        %p481 = scmp.lt.s32.totalorder %s478, 15
        %s482 = scalar_select %p481, %s478, 15
        %s483 = smul.addr %s482, 2
        %s484 = smul.addr %s480, 32
        %s485 = sadd.s32 %s483, %s484
        %s486 = smul.addr %s485, 8
        %s487 = scalar_lea.vmem %s3, %s486
      $region44: #{a_call__.4} parent=39 // pred_fallthru
        _
    $region40: #{a_call__.4} parent=5 // pred_fallthru
      _
  $region6: #{a_call__.4} parent=0 // loop_footer
    %s13 = sadd.s32 1, %s9
  $region7: #{a_call__.4} parent=0 // loop_footer_branch
    %8 = sbr.rel target = $region3
  $region8: #{a_call__.4} parent=0 // loop_exit
    _

// kernel: a_call__.6
$region0: #{a_call__.6}
  #allocation0 [shape = 'u32[]', space=smem, size = 0x4, offset = 0x4, fixed_abs, tag = 'smem constant byte address 0x4 - core index']
  #allocation1 [shape = 'u32[144,128]{1,0:T(1,128)}', space=vmem, size = 0x12000, scoped, tag = 'internal scratch']
  #allocation2 [shape = 'bf16[10,10,64]{2,1,0:T(8,128)(2,1)}', space=vmem, size = 0xa000, scoped, tag = 'scratch operand']
  %s0 = inlined_call_operand.vmem [shape: f32[4,10,10,64], index: 0, kind: input, shape index: {}, may-alias: {0,1,2}]
  %s1 = inlined_call_operand.vmem [shape: f32[4,10,10,64], index: 1, kind: input, shape index: {}, may-alias: {0,1,2}]
  %s2 = inlined_call_operand.vmem [shape: f32[4,10,10,64], index: 2, kind: input, shape index: {}, may-alias: {0,1,2}]
  %s3 = inlined_call_operand.vmem [shape: bf16[3,3,64,128], index: 3, kind: input, shape index: {}]
  %s4 = inlined_call_operand.vmem [shape: f32[1,128], index: 4, kind: input, shape index: {}]
  %s5 = inlined_call_operand.vmem [shape: f32[4,8,8,128], index: 5, kind: output, shape index: {}]
  %s6 = sld [smem:[#allocation0]]
  $region53: #{a_call__.6} parent=0
    _
  %s8 = ssub.s32 1, %s6
  %s9 = scalar_select 0, %s8, %s6
  loop: start=0, step=1, limit=6
  $region2: #{a_call__.6} parent=0 // loop_pre_header
    _
  $region3: #{a_call__.6} parent=0 // loop_header
    %s11 = sphi 0, %s15
    %p12 = scmp.ge.s32.totalorder %s11, 6
    %s18 = sphi 0, %s30
    %s19 = sphi 0, %s26
    %s20 = sphi 0, %s18
    %s21 = sphi 0, %s19
    %s22 = sphi 0, %s20
    %s23 = sphi 0, %s21
    %s35 = sphi 0, %s37
    %s38 = sphi 0, %s35
    %s39 = sphi 0, %s38
    %s55 = sphi 0, %s39
    %s67 = sphi 0, %s69
    %s70 = sphi 0, %s67
    %s71 = sphi 0, %s70
    %s87 = sphi 0, %s71
    %s101 = sphi 0, %s103
    %s104 = sphi 0, %s101
    %s105 = sphi 0, %s104
    %s121 = sphi 0, %s105
    %s125 = sphi 0, %s125
    %s127 = sphi 0, %s125
    %s128 = sphi 0, %s127
    %s142 = sphi 0, %s128
    %s146 = sphi 0, %s146
    %s148 = sphi 0, %s146
    %s149 = sphi 0, %s148
    %s163 = sphi 0, %s149
    %s171 = sphi 0, %s173
    %s174 = sphi 0, %s171
    %s175 = sphi 0, %s174
    %s191 = sphi 0, %s175
  $region4: #{a_call__.6} parent=0 // loop_header_branch
    %14 = sbr.rel (%p12) target = $region8
  $region5: #{a_call__.6} parent=0 // loop_body
    %s16 = ssub.s32 %s11, 1
    %s17 = ssub.s32 %s11, 2
    %s24 = sadd.s32 1, %s19
    %p25 = scmp.ge.s32.totalorder %s24, 1
    %s26 = scalar_select %p25, 0, %s24
    %s27 = sadd.s32 1, %s18
    %s28 = scalar_select %p25, %s27, %s18
    %p29 = scmp.ge.s32.totalorder %s28, 4
    %s30 = scalar_select %p29, 0, %s28
    %s31 = ssub.s32 %s18, %s30
    %s32 = ssub.s32 %s19, %s26
    %s33 = sor.u32 %s31, %s32
    %p34 = scmp.eq.s32.totalorder %s33, 0
    %s36 = sadd.s32 %s35, 1
    %s37 = scalar_select %p34, %s35, %s36
    %p40 = pneg %p34
    %p41 = scmp.eq.s32.totalorder %s11, 3
    %p42 = por %p40, %p41
    %p43 = scmp.ne.s32.totalorder %s35, %s38
    %p44 = scmp.eq.s32.totalorder %s11, 0
    %p45 = por %p43, %p44
    %p46 = scmp.ne.s32.totalorder %s35, %s38
    %p47 = scmp.eq.s32.totalorder %s16, 3
    %p48 = por %p46, %p47
    %p49 = scmp.ne.s32.totalorder %s38, %s39
    %p50 = scmp.eq.s32.totalorder %s16, 0
    %p51 = por %p49, %p50
    %p52 = scmp.ne.s32.totalorder %s38, %s39
    %p53 = scmp.eq.s32.totalorder %s17, 3
    %p54 = por %p52, %p53
    %p56 = scmp.ne.s32.totalorder %s39, %s55
    %p57 = scmp.eq.s32.totalorder %s17, 0
    %p58 = por %p56, %p57
    %s59 = sadd.s32 %s19, 1
    %s60 = smul.u32 %s59, 8
    %s61 = sadd.s32 %s26, 1
    %s62 = smul.u32 %s61, 8
    %s63 = ssub.s32 %s18, %s30
    %s64 = ssub.s32 %s60, %s62
    %s65 = sor.u32 %s63, %s64
    %p66 = scmp.eq.s32.totalorder %s65, 0
    %s68 = sadd.s32 %s67, 1
    %s69 = scalar_select %p66, %s67, %s68
    %p72 = pneg %p66
    %p73 = scmp.eq.s32.totalorder %s11, 3
    %p74 = por %p72, %p73
    %p75 = scmp.ne.s32.totalorder %s67, %s70
    %p76 = scmp.eq.s32.totalorder %s11, 0
    %p77 = por %p75, %p76
    %p78 = scmp.ne.s32.totalorder %s67, %s70
    %p79 = scmp.eq.s32.totalorder %s16, 3
    %p80 = por %p78, %p79
    %p81 = scmp.ne.s32.totalorder %s70, %s71
    %p82 = scmp.eq.s32.totalorder %s16, 0
    %p83 = por %p81, %p82
    %p84 = scmp.ne.s32.totalorder %s70, %s71
    %p85 = scmp.eq.s32.totalorder %s17, 3
    %p86 = por %p84, %p85
    %p88 = scmp.ne.s32.totalorder %s71, %s87
    %p89 = scmp.eq.s32.totalorder %s17, 0
    %p90 = por %p88, %p89
    %s91 = sadd.s32 %s19, 1
    %s92 = smul.u32 %s91, 8
    %s93 = sadd.s32 %s92, 1
    %s94 = sadd.s32 %s26, 1
    %s95 = smul.u32 %s94, 8
    %s96 = sadd.s32 %s95, 1
    %s97 = ssub.s32 %s18, %s30
    %s98 = ssub.s32 %s93, %s96
    %s99 = sor.u32 %s97, %s98
    %p100 = scmp.eq.s32.totalorder %s99, 0
    %s102 = sadd.s32 %s101, 1
    %s103 = scalar_select %p100, %s101, %s102
    %p106 = pneg %p100
    %p107 = scmp.eq.s32.totalorder %s11, 3
    %p108 = por %p106, %p107
    %p109 = scmp.ne.s32.totalorder %s101, %s104
    %p110 = scmp.eq.s32.totalorder %s11, 0
    %p111 = por %p109, %p110
    %p112 = scmp.ne.s32.totalorder %s101, %s104
    %p113 = scmp.eq.s32.totalorder %s16, 3
    %p114 = por %p112, %p113
    %p115 = scmp.ne.s32.totalorder %s104, %s105
    %p116 = scmp.eq.s32.totalorder %s16, 0
    %p117 = por %p115, %p116
    %p118 = scmp.ne.s32.totalorder %s104, %s105
    %p119 = scmp.eq.s32.totalorder %s17, 3
    %p120 = por %p118, %p119
    %p122 = scmp.ne.s32.totalorder %s105, %s121
    %p123 = scmp.eq.s32.totalorder %s17, 0
    %p124 = por %p122, %p123
    %s126 = sadd.s32 %s125, 1
    %p129 = scmp.eq.s32.totalorder %s11, 3
    %p130 = scmp.ne.s32.totalorder %s125, %s127
    %p131 = scmp.eq.s32.totalorder %s11, 0
    %p132 = por %p130, %p131
    %p133 = scmp.ne.s32.totalorder %s125, %s127
    %p134 = scmp.eq.s32.totalorder %s16, 3
    %p135 = por %p133, %p134
    %p136 = scmp.ne.s32.totalorder %s127, %s128
    %p137 = scmp.eq.s32.totalorder %s16, 0
    %p138 = por %p136, %p137
    %p139 = scmp.ne.s32.totalorder %s127, %s128
    %p140 = scmp.eq.s32.totalorder %s17, 3
    %p141 = por %p139, %p140
    %p143 = scmp.ne.s32.totalorder %s128, %s142
    %p144 = scmp.eq.s32.totalorder %s17, 0
    %p145 = por %p143, %p144
    %s147 = sadd.s32 %s146, 1
    %p150 = scmp.eq.s32.totalorder %s11, 3
    %p151 = scmp.ne.s32.totalorder %s146, %s148
    %p152 = scmp.eq.s32.totalorder %s11, 0
    %p153 = por %p151, %p152
    %p154 = scmp.ne.s32.totalorder %s146, %s148
    %p155 = scmp.eq.s32.totalorder %s16, 3
    %p156 = por %p154, %p155
    %p157 = scmp.ne.s32.totalorder %s148, %s149
    %p158 = scmp.eq.s32.totalorder %s16, 0
    %p159 = por %p157, %p158
    %p160 = scmp.ne.s32.totalorder %s148, %s149
    %p161 = scmp.eq.s32.totalorder %s17, 3
    %p162 = por %p160, %p161
    %p164 = scmp.ne.s32.totalorder %s149, %s163
    %p165 = scmp.eq.s32.totalorder %s17, 0
    %p166 = por %p164, %p165
    %s167 = ssub.s32 %s18, %s30
    %s168 = ssub.s32 %s19, %s26
    %s169 = sor.u32 %s167, %s168
    %p170 = scmp.eq.s32.totalorder %s169, 0
    %s172 = sadd.s32 %s171, 1
    %s173 = scalar_select %p170, %s171, %s172
    %p176 = pneg %p170
    %p177 = scmp.eq.s32.totalorder %s11, 3
    %p178 = por %p176, %p177
    %p179 = scmp.ne.s32.totalorder %s171, %s174
    %p180 = scmp.eq.s32.totalorder %s11, 0
    %p181 = por %p179, %p180
    %p182 = scmp.ne.s32.totalorder %s171, %s174
    %p183 = scmp.eq.s32.totalorder %s16, 3
    %p184 = por %p182, %p183
    %p185 = scmp.ne.s32.totalorder %s174, %s175
    %p186 = scmp.eq.s32.totalorder %s16, 0
    %p187 = por %p185, %p186
    %p188 = scmp.ne.s32.totalorder %s174, %s175
    %p189 = scmp.eq.s32.totalorder %s17, 3
    %p190 = por %p188, %p189
    %p192 = scmp.ne.s32.totalorder %s175, %s191
    %p193 = scmp.eq.s32.totalorder %s17, 0
    %p194 = por %p192, %p193
    %p195 = scmp.le.s32.totalorder 1, %s11
    %p196 = scmp.lt.s32.totalorder %s11, 5
    %p197 = pnand %p195, %p196
    %p198 = pneg %p197
    // Predicated region
    $region9: #{a_call__.6} parent=5 // pred_check
      _
    $region10: #{a_call__.6} parent=5 // pred_check_branch
      %200 = sbr.rel (%p197) target = $region12
    $region11: #{a_call__.6} parent=5 // pred_region
      %s201 = ssub.s32 %s11, 1
      // Predicated region
      $region13: #{a_call__.6} parent=11 // pred_check
        %p202 = pneg %p138
      $region14: #{a_call__.6} parent=11 // pred_check_branch
        %204 = sbr.rel (%p202) target = $region16
      $region15: #{a_call__.6} parent=11 // pred_region
        _
      $region16: #{a_call__.6} parent=11 // pred_fallthru
        _
      // Predicated region
      $region17: #{a_call__.6} parent=11 // pred_check
        %p205 = pneg %p159
      $region18: #{a_call__.6} parent=11 // pred_check_branch
        %207 = sbr.rel (%p205) target = $region20
      $region19: #{a_call__.6} parent=11 // pred_region
        _
      $region20: #{a_call__.6} parent=11 // pred_fallthru
        _
    $region12: #{a_call__.6} parent=5 // pred_fallthru
      _
    %p208 = scmp.lt.s32.totalorder %s11, 4
    // Predicated region
    $region21: #{a_call__.6} parent=5 // pred_check
      %p209 = pneg %p208
    $region22: #{a_call__.6} parent=5 // pred_check_branch
      %211 = sbr.rel (%p209) target = $region24
    $region23: #{a_call__.6} parent=5 // pred_region
      // Predicated region
      $region25: #{a_call__.6} parent=23 // pred_check
        %p212 = pneg %p45
      $region26: #{a_call__.6} parent=23 // pred_check_branch
        %214 = sbr.rel (%p212) target = $region28
      $region27: #{a_call__.6} parent=23 // pred_region
        %s215 = smul.u32 8, %s19
        %s216 = ssub.s32 10, %s215
        %p217 = scmp.lt.s32.totalorder %s216, 8
        %s218 = scalar_select %p217, %s216, 8
        %s219 = smul.u32 128, %s218
        %s220 = smul.u32 %s219, 2
        %p221 = scmp.lt.s32.totalorder %s18, 3
        %s222 = scalar_select %p221, %s18, 3
        %p223 = scmp.lt.s32.totalorder %s215, 9
        %s224 = scalar_select %p223, %s215, 9
        %s225 = smul.addr %s224, 2
        %s226 = smul.addr %s222, 20
        %s227 = sadd.s32 %s225, %s226
        %s228 = smul.addr %s227, 8
        %s229 = scalar_lea.vmem %s0, %s228
        %s230 = smul.u32 8, %s19
        %s231 = ssub.s32 10, %s230
        %p232 = scmp.lt.s32.totalorder %s231, 8
        %s233 = scalar_select %p232, %s231, 8
        %s234 = smul.u32 128, %s233
        %s235 = smul.u32 %s234, 2
      $region28: #{a_call__.6} parent=23 // pred_fallthru
        _
      // Predicated region
      $region29: #{a_call__.6} parent=23 // pred_check
        %p236 = pneg %p77
      $region30: #{a_call__.6} parent=23 // pred_check_branch
        %238 = sbr.rel (%p236) target = $region32
      $region31: #{a_call__.6} parent=23 // pred_region
        %s239 = sadd.s32 %s19, 1
        %s240 = smul.u32 %s239, 8
        %p241 = scmp.lt.s32.totalorder %s18, 3
        %s242 = scalar_select %p241, %s18, 3
        %p243 = scmp.lt.s32.totalorder %s240, 9
        %s244 = scalar_select %p243, %s240, 9
        %s245 = smul.addr %s244, 2
        %s246 = smul.addr %s242, 20
        %s247 = sadd.s32 %s245, %s246
        %s248 = smul.addr %s247, 8
        %s249 = scalar_lea.vmem %s1, %s248
        %s250 = sadd.s32 %s19, 1
        %s251 = smul.u32 %s250, 8
      $region32: #{a_call__.6} parent=23 // pred_fallthru
        _
      // Predicated region
      $region33: #{a_call__.6} parent=23 // pred_check
        %p252 = pneg %p111
      $region34: #{a_call__.6} parent=23 // pred_check_branch
        %254 = sbr.rel (%p252) target = $region36
      $region35: #{a_call__.6} parent=23 // pred_region
        %s255 = sadd.s32 %s19, 1
        %s256 = smul.u32 %s255, 8
        %s257 = sadd.s32 %s256, 1
        %p258 = scmp.lt.s32.totalorder %s18, 3
        %s259 = scalar_select %p258, %s18, 3
        %p260 = scmp.lt.s32.totalorder %s257, 9
        %s261 = scalar_select %p260, %s257, 9
        %s262 = smul.addr %s261, 2
        %s263 = smul.addr %s259, 20
        %s264 = sadd.s32 %s262, %s263
        %s265 = smul.addr %s264, 8
        %s266 = scalar_lea.vmem %s2, %s265
        %s267 = sadd.s32 %s19, 1
        %s268 = smul.u32 %s267, 8
        %s269 = sadd.s32 %s268, 1
      $region36: #{a_call__.6} parent=23 // pred_fallthru
        _
    $region24: #{a_call__.6} parent=5 // pred_fallthru
      _
    %p270 = scmp.le.s32.totalorder 1, %s11
    %p271 = scmp.lt.s32.totalorder %s11, 5
    %p272 = pnand %p270, %p271
    %p273 = pneg %p272
    // Predicated region
    $region37: #{a_call__.6} parent=5 // pred_check
      _
    $region38: #{a_call__.6} parent=5 // pred_check_branch
      %275 = sbr.rel (%p272) target = $region40
    $region39: #{a_call__.6} parent=5 // pred_region
      %s276 = ssub.s32 %s11, 1
      %s277 = smul.u32 8, %s21
      %s278 = ssub.s32 10, %s277
      %p279 = scmp.lt.s32.totalorder %s278, 8
      %s280 = scalar_select %p279, %s278, 8
      %s281 = smul.u32 128, %s280
      %s282 = smul.u32 %s281, 2
      %p283 = scmp.lt.s32.totalorder %s20, 3
      %s284 = scalar_select %p283, %s20, 3
      %p285 = scmp.lt.s32.totalorder %s277, 9
      %s286 = scalar_select %p285, %s277, 9
      %s287 = smul.addr %s286, 2
      %s288 = smul.addr %s284, 20
      %s289 = sadd.s32 %s287, %s288
      %s290 = smul.addr %s289, 8
      %s291 = scalar_lea.vmem %s0, %s290
      %p292 = pneg %p51
      %p293 = pneg %p48
      %s294 = sadd.s32 %s21, 1
      %s295 = smul.u32 %s294, 8
      %p296 = scmp.lt.s32.totalorder %s20, 3
      %s297 = scalar_select %p296, %s20, 3
      %p298 = scmp.lt.s32.totalorder %s295, 9
      %s299 = scalar_select %p298, %s295, 9
      %s300 = smul.addr %s299, 2
      %s301 = smul.addr %s297, 20
      %s302 = sadd.s32 %s300, %s301
      %s303 = smul.addr %s302, 8
      %s304 = scalar_lea.vmem %s1, %s303
      %p305 = pneg %p83
      %p306 = pneg %p80
      %s307 = sadd.s32 %s21, 1
      %s308 = smul.u32 %s307, 8
      %s309 = sadd.s32 %s308, 1
      %p310 = scmp.lt.s32.totalorder %s20, 3
      %s311 = scalar_select %p310, %s20, 3
      %p312 = scmp.lt.s32.totalorder %s309, 9
      %s313 = scalar_select %p312, %s309, 9
      %s314 = smul.addr %s313, 2
      %s315 = smul.addr %s311, 20
      %s316 = sadd.s32 %s314, %s315
      %s317 = smul.addr %s316, 8
      %s318 = scalar_lea.vmem %s2, %s317
      %p319 = pneg %p117
      %p320 = pneg %p114
      %p321 = pneg %p138
      %p322 = pneg %p135
      %p323 = pneg %p159
      %p324 = pneg %p156
      %p325 = pneg %p187
      %p326 = pneg %p184
      %s327 = smul.u32 8, %s21
      %p328 = scmp.lt.s32.totalorder %s20, 3
      %s329 = scalar_select %p328, %s20, 3
      %p330 = scmp.lt.s32.totalorder %s327, 7
      %s331 = scalar_select %p330, %s327, 7
      %s332 = smul.addr %s329, 8
      %s333 = sadd.s32 %s331, %s332
      %s334 = smul.addr %s333, 8
      %s335 = scalar_lea.vmem %s5, %s334
      %s336 = smul.u32 8, %s21
      %s337 = ssub.s32 10, %s336
      %p338 = scmp.lt.s32.totalorder %s337, 8
      %s339 = scalar_select %p338, %s337, 8
      %s340 = smul.u32 128, %s339
      %s341 = smul.u32 %s340, 2
      %p342 = scmp.lt.s32.totalorder %s20, 3
      %s343 = scalar_select %p342, %s20, 3
      %p344 = scmp.lt.s32.totalorder %s336, 9
      %s345 = scalar_select %p344, %s336, 9
      %s346 = smul.addr %s345, 2
      %s347 = smul.addr %s343, 20
      %s348 = sadd.s32 %s346, %s347
      %s349 = smul.addr %s348, 8
      %s350 = scalar_lea.vmem %s0, %s349
      %s351 = smul.u32 8, %s21
      %s352 = ssub.s32 10, %s351
      %p353 = scmp.lt.s32.totalorder %s352, 8
      %s354 = scalar_select %p353, %s352, 8
      %s355 = smul.u32 128, %s354
      %s356 = smul.u32 %s355, 2
      %s357 = sadd.s32 %s21, 1
      %s358 = smul.u32 %s357, 8
      %p359 = scmp.lt.s32.totalorder %s20, 3
      %s360 = scalar_select %p359, %s20, 3
      %p361 = scmp.lt.s32.totalorder %s358, 9
      %s362 = scalar_select %p361, %s358, 9
      %s363 = smul.addr %s362, 2
      %s364 = smul.addr %s360, 20
      %s365 = sadd.s32 %s363, %s364
      %s366 = smul.addr %s365, 8
      %s367 = scalar_lea.vmem %s1, %s366
      %s368 = sadd.s32 %s21, 1
      %s369 = smul.u32 %s368, 8
      %s370 = sadd.s32 %s21, 1
      %s371 = smul.u32 %s370, 8
      %s372 = sadd.s32 %s371, 1
      %p373 = scmp.lt.s32.totalorder %s20, 3
      %s374 = scalar_select %p373, %s20, 3
      %p375 = scmp.lt.s32.totalorder %s372, 9
      %s376 = scalar_select %p375, %s372, 9
      %s377 = smul.addr %s376, 2
      %s378 = smul.addr %s374, 20
      %s379 = sadd.s32 %s377, %s378
      %s380 = smul.addr %s379, 8
      %s381 = scalar_lea.vmem %s2, %s380
      %s382 = sadd.s32 %s21, 1
      %s383 = smul.u32 %s382, 8
      %s384 = sadd.s32 %s383, 1
      %s385 = smul.u32 8, %s21
      %p386 = scmp.lt.s32.totalorder %s20, 3
      %s387 = scalar_select %p386, %s20, 3
      %p388 = scmp.lt.s32.totalorder %s385, 7
      %s389 = scalar_select %p388, %s385, 7
      %s390 = smul.addr %s387, 8
      %s391 = sadd.s32 %s389, %s390
      %s392 = smul.addr %s391, 8
      %s393 = scalar_lea.vmem %s5, %s392
      %s394 = smul.u32 8, %s21
      %v396 = vld [vmem:[%s350] sm:$0xff]
      %v397 = vld [vmem:[%s350 + $0x8] sm:$0x3]
      %v398 = vld [vmem:[%s350 + $0x10] sm:$0xff]
      %v399 = vld [vmem:[%s350 + $0x18] sm:$0x3]
      %v400 = vld [vmem:[%s350 + $0x20] sm:$0xff]
      %v401 = vld [vmem:[%s350 + $0x28] sm:$0x3]
      %v402 = vld [vmem:[%s350 + $0x30] sm:$0xff]
      %v403 = vld [vmem:[%s350 + $0x38] sm:$0x3]
      %v404 = vld [vmem:[%s350 + $0x40] sm:$0xff]
      %v405 = vld [vmem:[%s350 + $0x48] sm:$0x3]
      %v406 = vld [vmem:[%s350 + $0x50] sm:$0xff]
      %v407 = vld [vmem:[%s350 + $0x58] sm:$0x3]
      %v408 = vld [vmem:[%s350 + $0x60] sm:$0xff]
      %v409 = vld [vmem:[%s350 + $0x68] sm:$0x3]
      %v410 = vld [vmem:[%s350 + $0x70] sm:$0xff]
      %v411 = vld [vmem:[%s350 + $0x78] sm:$0x3]
      %v412 = vpack.c.bf16 %v397, %v396
      %v413 = vpack.c.bf16 %v399, %v398
      %v414 = vpack.c.bf16 %v401, %v400
      %v415 = vpack.c.bf16 %v403, %v402
      %v416 = vpack.c.bf16 %v405, %v404
      %v417 = vpack.c.bf16 %v407, %v406
      %v418 = vpack.c.bf16 %v409, %v408
      %v419 = vpack.c.bf16 %v411, %v410
      %v428 = vunpack.c.l.b16 %v412
      %v429 = vunpack.c.h.b16 %v412
      %v430 = vunpack.c.l.b16 %v413
      %v431 = vunpack.c.h.b16 %v413
      %v432 = vunpack.c.l.b16 %v414
      %v433 = vunpack.c.h.b16 %v414
      %v434 = vunpack.c.l.b16 %v415
      %v435 = vunpack.c.h.b16 %v415
      %v436 = vunpack.c.l.b16 %v416
      %v437 = vunpack.c.h.b16 %v416
      %v438 = vunpack.c.l.b16 %v417
      %v439 = vunpack.c.h.b16 %v417
      %v440 = vunpack.c.l.b16 %v418
      %v441 = vunpack.c.h.b16 %v418
      %v442 = vunpack.c.l.b16 %v419
      %v443 = vunpack.c.h.b16 %v419
      %v444 = vpack.c.b16 %v428, %v428
      %v445 = vpack.c.b16 %v429, %v429
      %v446 = vpack.c.b16 %v430, %v430
      %v447 = vpack.c.b16 %v431, %v431
      %v448 = vpack.c.b16 %v432, %v432
      %v449 = vpack.c.b16 %v433, %v433
      %v450 = vpack.c.b16 %v434, %v434
      %v451 = vpack.c.b16 %v435, %v435
      %v452 = vpack.c.b16 %v436, %v436
      %v453 = vpack.c.b16 %v437, %v437
      %v454 = vpack.c.b16 %v438, %v438
      %v455 = vpack.c.b16 %v439, %v439
      %v456 = vpack.c.b16 %v440, %v440
      %v457 = vpack.c.b16 %v441, %v441
      %v458 = vpack.c.b16 %v442, %v442
      %v459 = vpack.c.b16 %v443, %v443
      %vm476 = vcmask 519168
      %477 = vst.msk [vmem:[#allocation2] sm:$0xf] %vm476, %v444
      %vm478 = vcmask 516096
      %479 = vst.msk [vmem:[#allocation2 + $0x4] sm:$0x1] %vm478, %v445
      %480 = vst.msk [vmem:[#allocation2 + $0x8] sm:$0xf] %vm476, %v446
      %481 = vst.msk [vmem:[#allocation2 + $0xc] sm:$0x1] %vm478, %v447
      %482 = vst.msk [vmem:[#allocation2 + $0x10] sm:$0xf] %vm476, %v448
      %483 = vst.msk [vmem:[#allocation2 + $0x14] sm:$0x1] %vm478, %v449
      %484 = vst.msk [vmem:[#allocation2 + $0x18] sm:$0xf] %vm476, %v450
      %485 = vst.msk [vmem:[#allocation2 + $0x1c] sm:$0x1] %vm478, %v451
      %486 = vst.msk [vmem:[#allocation2 + $0x20] sm:$0xf] %vm476, %v452
      %487 = vst.msk [vmem:[#allocation2 + $0x24] sm:$0x1] %vm478, %v453
      %488 = vst.msk [vmem:[#allocation2 + $0x28] sm:$0xf] %vm476, %v454
      %489 = vst.msk [vmem:[#allocation2 + $0x2c] sm:$0x1] %vm478, %v455
      %490 = vst.msk [vmem:[#allocation2 + $0x30] sm:$0xf] %vm476, %v456
      %491 = vst.msk [vmem:[#allocation2 + $0x34] sm:$0x1] %vm478, %v457
      %492 = vst.msk [vmem:[#allocation2 + $0x38] sm:$0xf] %vm476, %v458
      %493 = vst.msk [vmem:[#allocation2 + $0x3c] sm:$0x1] %vm478, %v459
      %v494 = vld [vmem:[%s367] sm:$0xff]
      %v495 = vld [vmem:[%s367 + $0x8] sm:$0x3]
      %v496 = vpack.c.bf16 %v495, %v494
      %v498 = vunpack.c.l.b16 %v496
      %v499 = vunpack.c.h.b16 %v496
      %v500 = vpack.c.b16 %v498, %v498
      %v501 = vpack.c.b16 %v499, %v499
      %s504 = scalar_lea.vmem [#allocation2], 64
      %505 = vst.msk [vmem:[%s504] sm:$0xf] %vm476, %v500
      %506 = vst.msk [vmem:[%s504 + $0x4] sm:$0x1] %vm478, %v501
      %v507 = vld [vmem:[%s381] sm:$0xff]
      %v508 = vld [vmem:[%s381 + $0x8] sm:$0x3]
      %v509 = vpack.c.bf16 %v508, %v507
      %v511 = vunpack.c.l.b16 %v509
      %v512 = vunpack.c.h.b16 %v509
      %v513 = vpack.c.b16 %v511, %v511
      %v514 = vpack.c.b16 %v512, %v512
      %s517 = scalar_lea.vmem [#allocation2], 72
      %518 = vst.msk [vmem:[%s517] sm:$0xf] %vm476, %v513
      %519 = vst.msk [vmem:[%s517 + $0x4] sm:$0x1] %vm478, %v514
      %v520 = vld [vmem:[#allocation2] sm:$0xf]
      %v521 = vld [vmem:[#allocation2 + $0x4] sm:$0x1]
      %v522 = vld [vmem:[#allocation2 + $0x8] sm:$0xf]
      %v523 = vld [vmem:[#allocation2 + $0xc] sm:$0x1]
      %v524 = vld [vmem:[#allocation2 + $0x10] sm:$0xf]
      %v525 = vld [vmem:[#allocation2 + $0x14] sm:$0x1]
      %v526 = vld [vmem:[#allocation2 + $0x18] sm:$0xf]
      %v527 = vld [vmem:[#allocation2 + $0x1c] sm:$0x1]
      %v528 = vld [vmem:[#allocation2 + $0x20] sm:$0xf]
      %v529 = vld [vmem:[#allocation2 + $0x24] sm:$0x1]
      %v530 = vld [vmem:[#allocation2 + $0x28] sm:$0xf]
      %v531 = vld [vmem:[#allocation2 + $0x2c] sm:$0x1]
      %v532 = vld [vmem:[#allocation2 + $0x30] sm:$0xf]
      %v533 = vld [vmem:[#allocation2 + $0x34] sm:$0x1]
      %v534 = vld [vmem:[#allocation2 + $0x38] sm:$0xf]
      %v535 = vld [vmem:[#allocation2 + $0x3c] sm:$0x1]
      %v536 = vld [vmem:[#allocation2 + $0x40] sm:$0xf]
      %v537 = vld [vmem:[#allocation2 + $0x44] sm:$0x1]
      %v538 = vld [vmem:[#allocation2 + $0x48] sm:$0xf]
      %v539 = vld [vmem:[#allocation2 + $0x4c] sm:$0x1]
      %v540 = vld [vmem:[%s3] sm:$0xf]
      %v541 = vld [vmem:[%s3 + $0x4] sm:$0xf]
      %v542 = vld [vmem:[%s3 + $0x8] sm:$0xf]
      %v543 = vld [vmem:[%s3 + $0xc] sm:$0xf]
      %v544 = vld [vmem:[%s3 + $0x10] sm:$0xf]
      %v545 = vld [vmem:[%s3 + $0x14] sm:$0xf]
      %v546 = vld [vmem:[%s3 + $0x18] sm:$0xf]
      %v547 = vld [vmem:[%s3 + $0x1c] sm:$0xf]
      %s548 = scalar_lea.vmem %s3, 96
      %v549 = vld [vmem:[%s548] sm:$0xf]
      %v550 = vld [vmem:[%s548 + $0x4] sm:$0xf]
      %v551 = vld [vmem:[%s548 + $0x8] sm:$0xf]
      %v552 = vld [vmem:[%s548 + $0xc] sm:$0xf]
      %v553 = vld [vmem:[%s548 + $0x10] sm:$0xf]
      %v554 = vld [vmem:[%s548 + $0x14] sm:$0xf]
      %v555 = vld [vmem:[%s548 + $0x18] sm:$0xf]
      %v556 = vld [vmem:[%s548 + $0x1c] sm:$0xf]
      %v565 = vunpack.c.l.b16 %v522
      %v566 = vunpack.c.l.b16 %v524
      %v567 = vunpack.c.l.b16 %v526
      %v568 = vunpack.c.l.b16 %v528
      %v569 = vunpack.c.l.b16 %v530
      %v570 = vunpack.c.l.b16 %v532
      %v571 = vunpack.c.l.b16 %v534
      %v572 = vunpack.c.l.b16 %v536
      %v573 = vpack.c.b16 %v566, %v565
      %v574 = vpack.c.b16 %v568, %v567
      %v575 = vpack.c.b16 %v570, %v569
      %v576 = vpack.c.b16 %v572, %v571
      %v585 = vunpack.c.l.b16 %v549
      %v586 = vunpack.c.l.b16 %v550
      %v587 = vunpack.c.l.b16 %v551
      %v588 = vunpack.c.l.b16 %v552
      %v589 = vunpack.c.l.b16 %v553
      %v590 = vunpack.c.l.b16 %v554
      %v591 = vunpack.c.l.b16 %v555
      %v592 = vunpack.c.l.b16 %v556
      %v593 = vpack.c.b16 %v586, %v585
      %v594 = vpack.c.b16 %v588, %v587
      %v595 = vpack.c.b16 %v590, %v589
      %v596 = vpack.c.b16 %v592, %v591
      %vm601 = vcmask 523264
      %v603 = vsel %vm601, %v573, 0
      %v606 = vsel %vm601, %v574, 0
      %v609 = vsel %vm601, %v575, 0
      %v612 = vsel %vm601, %v576, 0
      %614 = vmatprep.subr.bf16.mxu0 0
      %615 = vmatpush1.bf16.msra.mxu0 0
      %616 = vmatprep.subr.bf16.mxu0 0
      %617 = vmatpush1.bf16.msra.mxu0 0
      %618 = vmatprep.subr.bf16.mxu0 0
      %619 = vmatpush1.bf16.msra.mxu0 0
      %620 = vmatprep.subr.bf16.mxu0 0
      %621 = vmatpush1.bf16.msra.mxu0 0
      %622 = vmatprep.subr.bf16.mxu0 0
      %623 = vmatpush1.bf16.msra.mxu0 %v596
      %624 = vmatprep.subr.bf16.mxu0 0
      %625 = vmatpush1.bf16.msra.mxu0 %v595
      %626 = vmatprep.subr.bf16.mxu0 0
      %627 = vmatpush1.bf16.msra.mxu0 %v594
      %628 = vmatprep.subr.bf16.mxu0 0
      %629 = vmatpush1.bf16.msra.mxu0 %v593
      %630 = vmatprep.subr.bf16.mxu0 0
      %631 = vmatpush2.bf16.msra.mxu0 0
      %632 = vmatprep.subr.bf16.mxu0 0
      %633 = vmatpush2.bf16.msra.mxu0 0
      %634 = vmatprep.subr.bf16.mxu0 0
      %635 = vmatpush2.bf16.msra.mxu0 0
      %636 = vmatprep.subr.bf16.mxu0 0
      %637 = vmatpush2.bf16.msra.mxu0 0
      %638 = vmatprep.subr.bf16.mxu0 0
      %639 = vmatpush2.bf16.msra.mxu0 0
      %640 = vmatprep.subr.bf16.mxu0 0
      %641 = vmatpush2.bf16.msra.mxu0 0
      %642 = vmatprep.subr.bf16.mxu0 0
      %643 = vmatpush2.bf16.msra.mxu0 0
      %644 = vmatprep.subr.bf16.mxu0 0
      %645 = vmatpush2.bf16.msra.mxu0 0
      %646 = vmatprep.mubr.bf16.mxu0 0
      %647 = vmatmul.mubr.bf16.gmra.mxu0 %v603
      %v648 = vpop.f32.mrf.mxu0
      %v649 = vadd.f32 0.0, %v648
      %v650 = vpop.f32.mrf.mxu0
      %v651 = vpop.f32.mrf.mxu0
      %v652 = vadd.f32 0.0, %v651
      %v653 = vpop.f32.mrf.mxu0
      %654 = vmatprep.mubr.bf16.mxu0 0
      %655 = vmatmul.mubr.bf16.gmra.mxu0 %v606
      %v656 = vpop.f32.mrf.mxu0
      %v657 = vadd.f32 0.0, %v656
      %v658 = vpop.f32.mrf.mxu0
      %v659 = vpop.f32.mrf.mxu0
      %v660 = vadd.f32 0.0, %v659
      %v661 = vpop.f32.mrf.mxu0
      %662 = vmatprep.mubr.bf16.mxu0 0
      %663 = vmatmul.mubr.bf16.gmra.mxu0 %v609
      %v664 = vpop.f32.mrf.mxu0
      %v665 = vadd.f32 0.0, %v664
      %v666 = vpop.f32.mrf.mxu0
      %v667 = vpop.f32.mrf.mxu0
      %v668 = vadd.f32 0.0, %v667
      %v669 = vpop.f32.mrf.mxu0
      %670 = vmatprep.mubr.bf16.mxu0 0
      %671 = vmatmul.mubr.bf16.gmra.mxu0 %v612
      %v672 = vpop.f32.mrf.mxu0
      %v673 = vadd.f32 0.0, %v672
      %v674 = vpop.f32.mrf.mxu0
      %v675 = vpop.f32.mrf.mxu0
      %v676 = vadd.f32 0.0, %v675
      %v677 = vpop.f32.mrf.mxu0
      %678 = vdwg.mxu0
      %v680 = vunpack.c.l.b16 %v520
      %v681 = vpack.c.b16 %v565, %v680
      %v682 = vpack.c.b16 %v567, %v566
      %v683 = vpack.c.b16 %v569, %v568
      %v684 = vpack.c.b16 %v571, %v570
      %v693 = vunpack.c.l.b16 %v540
      %v694 = vunpack.c.l.b16 %v541
      %v695 = vunpack.c.l.b16 %v542
      %v696 = vunpack.c.l.b16 %v543
      %v697 = vunpack.c.l.b16 %v544
      %v698 = vunpack.c.l.b16 %v545
      %v699 = vunpack.c.l.b16 %v546
      %v700 = vunpack.c.l.b16 %v547
      %v701 = vpack.c.b16 %v694, %v693
      %v702 = vpack.c.b16 %v696, %v695
      %v703 = vpack.c.b16 %v698, %v697
      %v704 = vpack.c.b16 %v700, %v699
      %v710 = vsel %vm601, %v681, 0
      %v713 = vsel %vm601, %v682, 0
      %v716 = vsel %vm601, %v683, 0
      %v719 = vsel %vm601, %v684, 0
      %721 = vmatprep.subr.bf16.mxu0 0
      %722 = vmatpush1.bf16.msra.mxu0 0
      %723 = vmatprep.subr.bf16.mxu0 0
      %724 = vmatpush1.bf16.msra.mxu0 0
      %725 = vmatprep.subr.bf16.mxu0 0
      %726 = vmatpush1.bf16.msra.mxu0 0
      %727 = vmatprep.subr.bf16.mxu0 0
      %728 = vmatpush1.bf16.msra.mxu0 0
      %729 = vmatprep.subr.bf16.mxu0 0
      %730 = vmatpush1.bf16.msra.mxu0 %v704
      %731 = vmatprep.subr.bf16.mxu0 0
      %732 = vmatpush1.bf16.msra.mxu0 %v703
      %733 = vmatprep.subr.bf16.mxu0 0
      %734 = vmatpush1.bf16.msra.mxu0 %v702
      %735 = vmatprep.subr.bf16.mxu0 0
      %736 = vmatpush1.bf16.msra.mxu0 %v701
      %737 = vmatprep.subr.bf16.mxu0 0
      %738 = vmatpush2.bf16.msra.mxu0 0
      %739 = vmatprep.subr.bf16.mxu0 0
      %740 = vmatpush2.bf16.msra.mxu0 0
      %741 = vmatprep.subr.bf16.mxu0 0
      %742 = vmatpush2.bf16.msra.mxu0 0
      %743 = vmatprep.subr.bf16.mxu0 0
      %744 = vmatpush2.bf16.msra.mxu0 0
      %745 = vmatprep.subr.bf16.mxu0 0
      %746 = vmatpush2.bf16.msra.mxu0 0
      %747 = vmatprep.subr.bf16.mxu0 0
      %748 = vmatpush2.bf16.msra.mxu0 0
      %749 = vmatprep.subr.bf16.mxu0 0
      %750 = vmatpush2.bf16.msra.mxu0 0
      %751 = vmatprep.subr.bf16.mxu0 0
      %752 = vmatpush2.bf16.msra.mxu0 0
      %753 = vmatprep.mubr.bf16.mxu0 0
      %754 = vmatmul.mubr.bf16.gmra.mxu0 %v710
      %v755 = vpop.f32.mrf.mxu0
      %v756 = vadd.f32 %v649, %v755
      %v757 = vpop.f32.mrf.mxu0
      %v758 = vpop.f32.mrf.mxu0
      %v759 = vadd.f32 %v652, %v758
      %v760 = vpop.f32.mrf.mxu0
      %761 = vmatprep.mubr.bf16.mxu0 0
      %762 = vmatmul.mubr.bf16.gmra.mxu0 %v713
      %v763 = vpop.f32.mrf.mxu0
      %v764 = vadd.f32 %v657, %v763
      %v765 = vpop.f32.mrf.mxu0
      %v766 = vpop.f32.mrf.mxu0
      %v767 = vadd.f32 %v660, %v766
      %v768 = vpop.f32.mrf.mxu0
      %769 = vmatprep.mubr.bf16.mxu0 0
      %770 = vmatmul.mubr.bf16.gmra.mxu0 %v716
      %v771 = vpop.f32.mrf.mxu0
      %v772 = vadd.f32 %v665, %v771
      %v773 = vpop.f32.mrf.mxu0
      %v774 = vpop.f32.mrf.mxu0
      %v775 = vadd.f32 %v668, %v774
      %v776 = vpop.f32.mrf.mxu0
      %777 = vmatprep.mubr.bf16.mxu0 0
      %778 = vmatmul.mubr.bf16.gmra.mxu0 %v719
      %v779 = vpop.f32.mrf.mxu0
      %v780 = vadd.f32 %v673, %v779
      %v781 = vpop.f32.mrf.mxu0
      %v782 = vpop.f32.mrf.mxu0
      %v783 = vadd.f32 %v676, %v782
      %v784 = vpop.f32.mrf.mxu0
      %785 = vdwg.mxu0
      %s786 = scalar_lea.vmem %s3, 192
      %v787 = vld [vmem:[%s786] sm:$0xf]
      %v788 = vld [vmem:[%s786 + $0x4] sm:$0xf]
      %v789 = vld [vmem:[%s786 + $0x8] sm:$0xf]
      %v790 = vld [vmem:[%s786 + $0xc] sm:$0xf]
      %v791 = vld [vmem:[%s786 + $0x10] sm:$0xf]
      %v792 = vld [vmem:[%s786 + $0x14] sm:$0xf]
      %v793 = vld [vmem:[%s786 + $0x18] sm:$0xf]
      %v794 = vld [vmem:[%s786 + $0x1c] sm:$0xf]
      %v796 = vunpack.c.l.b16 %v538
      %v797 = vpack.c.b16 %v796, %v572
      %v806 = vunpack.c.l.b16 %v787
      %v807 = vunpack.c.l.b16 %v788
      %v808 = vunpack.c.l.b16 %v789
      %v809 = vunpack.c.l.b16 %v790
      %v810 = vunpack.c.l.b16 %v791
      %v811 = vunpack.c.l.b16 %v792
      %v812 = vunpack.c.l.b16 %v793
      %v813 = vunpack.c.l.b16 %v794
      %v814 = vpack.c.b16 %v807, %v806
      %v815 = vpack.c.b16 %v809, %v808
      %v816 = vpack.c.b16 %v811, %v810
      %v817 = vpack.c.b16 %v813, %v812
      %v823 = vsel %vm601, %v797, 0
      %825 = vmatprep.subr.bf16.mxu0 0
      %826 = vmatpush1.bf16.msra.mxu0 0
      %827 = vmatprep.subr.bf16.mxu0 0
      %828 = vmatpush1.bf16.msra.mxu0 0
      %829 = vmatprep.subr.bf16.mxu0 0
      %830 = vmatpush1.bf16.msra.mxu0 0
      %831 = vmatprep.subr.bf16.mxu0 0
      %832 = vmatpush1.bf16.msra.mxu0 0
      %833 = vmatprep.subr.bf16.mxu0 0
      %834 = vmatpush1.bf16.msra.mxu0 %v817
      %835 = vmatprep.subr.bf16.mxu0 0
      %836 = vmatpush1.bf16.msra.mxu0 %v816
      %837 = vmatprep.subr.bf16.mxu0 0
      %838 = vmatpush1.bf16.msra.mxu0 %v815
      %839 = vmatprep.subr.bf16.mxu0 0
      %840 = vmatpush1.bf16.msra.mxu0 %v814
      %841 = vmatprep.subr.bf16.mxu0 0
      %842 = vmatpush2.bf16.msra.mxu0 0
      %843 = vmatprep.subr.bf16.mxu0 0
      %844 = vmatpush2.bf16.msra.mxu0 0
      %845 = vmatprep.subr.bf16.mxu0 0
      %846 = vmatpush2.bf16.msra.mxu0 0
      %847 = vmatprep.subr.bf16.mxu0 0
      %848 = vmatpush2.bf16.msra.mxu0 0
      %849 = vmatprep.subr.bf16.mxu0 0
      %850 = vmatpush2.bf16.msra.mxu0 0
      %851 = vmatprep.subr.bf16.mxu0 0
      %852 = vmatpush2.bf16.msra.mxu0 0
      %853 = vmatprep.subr.bf16.mxu0 0
      %854 = vmatpush2.bf16.msra.mxu0 0
      %855 = vmatprep.subr.bf16.mxu0 0
      %856 = vmatpush2.bf16.msra.mxu0 0
      %857 = vmatprep.mubr.bf16.mxu0 0
      %858 = vmatmul.mubr.bf16.gmra.mxu0 %v713
      %v859 = vpop.f32.mrf.mxu0
      %v860 = vadd.f32 0.0, %v859
      %v861 = vpop.f32.mrf.mxu0
      %v862 = vpop.f32.mrf.mxu0
      %v863 = vadd.f32 0.0, %v862
      %v864 = vpop.f32.mrf.mxu0
      %865 = vmatprep.mubr.bf16.mxu0 0
      %866 = vmatmul.mubr.bf16.gmra.mxu0 %v716
      %v867 = vpop.f32.mrf.mxu0
      %v868 = vadd.f32 0.0, %v867
      %v869 = vpop.f32.mrf.mxu0
      %v870 = vpop.f32.mrf.mxu0
      %v871 = vadd.f32 0.0, %v870
      %v872 = vpop.f32.mrf.mxu0
      %873 = vmatprep.mubr.bf16.mxu0 0
      %874 = vmatmul.mubr.bf16.gmra.mxu0 %v719
      %v875 = vpop.f32.mrf.mxu0
      %v876 = vadd.f32 0.0, %v875
      %v877 = vpop.f32.mrf.mxu0
      %v878 = vpop.f32.mrf.mxu0
      %v879 = vadd.f32 0.0, %v878
      %v880 = vpop.f32.mrf.mxu0
      %881 = vmatprep.mubr.bf16.mxu0 0
      %882 = vmatmul.mubr.bf16.gmra.mxu0 %v823
      %v883 = vpop.f32.mrf.mxu0
      %v884 = vadd.f32 0.0, %v883
      %v885 = vpop.f32.mrf.mxu0
      %v886 = vpop.f32.mrf.mxu0
      %v887 = vadd.f32 0.0, %v886
      %v888 = vpop.f32.mrf.mxu0
      %889 = vdwg.mxu0
      %v890 = vadd.f32 %v756, %v860
      %v891 = vadd.f32 %v759, %v863
      %v892 = vadd.f32 %v764, %v868
      %v893 = vadd.f32 %v767, %v871
      %v894 = vadd.f32 %v772, %v876
      %v895 = vadd.f32 %v775, %v879
      %v896 = vadd.f32 %v780, %v884
      %v897 = vadd.f32 %v783, %v887
      %vm898 = vsmask.f32 3328
      %vm899 = vsmask.f32 7440
      %vm900 = vmor %vm898, %vm899
      %v902 = vshrl.u32 %v520, 16
      %v904 = vrot.slane %v902, 4
      %v905 = vshll.u32 %v520, 16
      %v907 = vrot.slane %v905, 5
      %v908 = vor.u32 %v904, %v907
      %v909 = vrot.slane %v908, 4
      %v911 = vshll.u32 %v521, 16
      %v913 = vrot.slane %v911, 5
      %v914 = vsel %vm900, %v909, %v913
      %v916 = vshrl.u32 %v522, 16
      %v918 = vrot.slane %v916, 4
      %v919 = vshll.u32 %v522, 16
      %v921 = vrot.slane %v919, 5
      %v922 = vor.u32 %v918, %v921
      %v923 = vrot.slane %v922, 4
      %v925 = vshll.u32 %v523, 16
      %v927 = vrot.slane %v925, 5
      %v928 = vsel %vm900, %v923, %v927
      %v930 = vshrl.u32 %v524, 16
      %v932 = vrot.slane %v930, 4
      %v933 = vshll.u32 %v524, 16
      %v935 = vrot.slane %v933, 5
      %v936 = vor.u32 %v932, %v935
      %v937 = vrot.slane %v936, 4
      %v939 = vshll.u32 %v525, 16
      %v941 = vrot.slane %v939, 5
      %v942 = vsel %vm900, %v937, %v941
      %v944 = vshrl.u32 %v526, 16
      %v946 = vrot.slane %v944, 4
      %v947 = vshll.u32 %v526, 16
      %v949 = vrot.slane %v947, 5
      %v950 = vor.u32 %v946, %v949
      %v951 = vrot.slane %v950, 4
      %v953 = vshll.u32 %v527, 16
      %v955 = vrot.slane %v953, 5
      %v956 = vsel %vm900, %v951, %v955
      %v958 = vshrl.u32 %v528, 16
      %v960 = vrot.slane %v958, 4
      %v961 = vshll.u32 %v528, 16
      %v963 = vrot.slane %v961, 5
      %v964 = vor.u32 %v960, %v963
      %v965 = vrot.slane %v964, 4
      %v967 = vshll.u32 %v529, 16
      %v969 = vrot.slane %v967, 5
      %v970 = vsel %vm900, %v965, %v969
      %v972 = vshrl.u32 %v530, 16
      %v974 = vrot.slane %v972, 4
      %v975 = vshll.u32 %v530, 16
      %v977 = vrot.slane %v975, 5
      %v978 = vor.u32 %v974, %v977
      %v979 = vrot.slane %v978, 4
      %v981 = vshll.u32 %v531, 16
      %v983 = vrot.slane %v981, 5
      %v984 = vsel %vm900, %v979, %v983
      %v986 = vshrl.u32 %v532, 16
      %v988 = vrot.slane %v986, 4
      %v989 = vshll.u32 %v532, 16
      %v991 = vrot.slane %v989, 5
      %v992 = vor.u32 %v988, %v991
      %v993 = vrot.slane %v992, 4
      %v995 = vshll.u32 %v533, 16
      %v997 = vrot.slane %v995, 5
      %v998 = vsel %vm900, %v993, %v997
      %v1000 = vshrl.u32 %v534, 16
      %v1002 = vrot.slane %v1000, 4
      %v1003 = vshll.u32 %v534, 16
      %v1005 = vrot.slane %v1003, 5
      %v1006 = vor.u32 %v1002, %v1005
      %v1007 = vrot.slane %v1006, 4
      %v1009 = vshll.u32 %v535, 16
      %v1011 = vrot.slane %v1009, 5
      %v1012 = vsel %vm900, %v1007, %v1011
      %s1013 = scalar_lea.vmem %s3, 32
      %v1014 = vld [vmem:[%s1013] sm:$0xf]
      %v1015 = vld [vmem:[%s1013 + $0x4] sm:$0xf]
      %v1016 = vld [vmem:[%s1013 + $0x8] sm:$0xf]
      %v1017 = vld [vmem:[%s1013 + $0xc] sm:$0xf]
      %v1018 = vld [vmem:[%s1013 + $0x10] sm:$0xf]
      %v1019 = vld [vmem:[%s1013 + $0x14] sm:$0xf]
      %v1020 = vld [vmem:[%s1013 + $0x18] sm:$0xf]
      %v1021 = vld [vmem:[%s1013 + $0x1c] sm:$0xf]
      %v1022 = vunpack.c.l.b16 %v914
      %v1023 = vunpack.c.l.b16 %v928
      %v1024 = vunpack.c.l.b16 %v942
      %v1025 = vunpack.c.l.b16 %v956
      %v1026 = vunpack.c.l.b16 %v970
      %v1027 = vunpack.c.l.b16 %v984
      %v1028 = vunpack.c.l.b16 %v998
      %v1029 = vunpack.c.l.b16 %v1012
      %v1030 = vpack.c.b16 %v1023, %v1022
      %v1031 = vpack.c.b16 %v1025, %v1024
      %v1032 = vpack.c.b16 %v1027, %v1026
      %v1033 = vpack.c.b16 %v1029, %v1028
      %v1042 = vunpack.c.l.b16 %v1014
      %v1043 = vunpack.c.l.b16 %v1015
      %v1044 = vunpack.c.l.b16 %v1016
      %v1045 = vunpack.c.l.b16 %v1017
      %v1046 = vunpack.c.l.b16 %v1018
      %v1047 = vunpack.c.l.b16 %v1019
      %v1048 = vunpack.c.l.b16 %v1020
      %v1049 = vunpack.c.l.b16 %v1021
      %v1050 = vpack.c.b16 %v1043, %v1042
      %v1051 = vpack.c.b16 %v1045, %v1044
      %v1052 = vpack.c.b16 %v1047, %v1046
      %v1053 = vpack.c.b16 %v1049, %v1048
      %v1059 = vsel %vm601, %v1030, 0
      %v1062 = vsel %vm601, %v1031, 0
      %v1065 = vsel %vm601, %v1032, 0
      %v1068 = vsel %vm601, %v1033, 0
      %1070 = vmatprep.subr.bf16.mxu0 0
      %1071 = vmatpush1.bf16.msra.mxu0 0
      %1072 = vmatprep.subr.bf16.mxu0 0
      %1073 = vmatpush1.bf16.msra.mxu0 0
      %1074 = vmatprep.subr.bf16.mxu0 0
      %1075 = vmatpush1.bf16.msra.mxu0 0
      %1076 = vmatprep.subr.bf16.mxu0 0
      %1077 = vmatpush1.bf16.msra.mxu0 0
      %1078 = vmatprep.subr.bf16.mxu0 0
      %1079 = vmatpush1.bf16.msra.mxu0 %v1053
      %1080 = vmatprep.subr.bf16.mxu0 0
      %1081 = vmatpush1.bf16.msra.mxu0 %v1052
      %1082 = vmatprep.subr.bf16.mxu0 0
      %1083 = vmatpush1.bf16.msra.mxu0 %v1051
      %1084 = vmatprep.subr.bf16.mxu0 0
      %1085 = vmatpush1.bf16.msra.mxu0 %v1050
      %1086 = vmatprep.subr.bf16.mxu0 0
      %1087 = vmatpush2.bf16.msra.mxu0 0
      %1088 = vmatprep.subr.bf16.mxu0 0
      %1089 = vmatpush2.bf16.msra.mxu0 0
      %1090 = vmatprep.subr.bf16.mxu0 0
      %1091 = vmatpush2.bf16.msra.mxu0 0
      %1092 = vmatprep.subr.bf16.mxu0 0
      %1093 = vmatpush2.bf16.msra.mxu0 0
      %1094 = vmatprep.subr.bf16.mxu0 0
      %1095 = vmatpush2.bf16.msra.mxu0 0
      %1096 = vmatprep.subr.bf16.mxu0 0
      %1097 = vmatpush2.bf16.msra.mxu0 0
      %1098 = vmatprep.subr.bf16.mxu0 0
      %1099 = vmatpush2.bf16.msra.mxu0 0
      %1100 = vmatprep.subr.bf16.mxu0 0
      %1101 = vmatpush2.bf16.msra.mxu0 0
      %1102 = vmatprep.mubr.bf16.mxu0 0
      %1103 = vmatmul.mubr.bf16.gmra.mxu0 %v1059
      %v1104 = vpop.f32.mrf.mxu0
      %v1105 = vadd.f32 0.0, %v1104
      %v1106 = vpop.f32.mrf.mxu0
      %v1107 = vpop.f32.mrf.mxu0
      %v1108 = vadd.f32 0.0, %v1107
      %v1109 = vpop.f32.mrf.mxu0
      %1110 = vmatprep.mubr.bf16.mxu0 0
      %1111 = vmatmul.mubr.bf16.gmra.mxu0 %v1062
      %v1112 = vpop.f32.mrf.mxu0
      %v1113 = vadd.f32 0.0, %v1112
      %v1114 = vpop.f32.mrf.mxu0
      %v1115 = vpop.f32.mrf.mxu0
      %v1116 = vadd.f32 0.0, %v1115
      %v1117 = vpop.f32.mrf.mxu0
      %1118 = vmatprep.mubr.bf16.mxu0 0
      %1119 = vmatmul.mubr.bf16.gmra.mxu0 %v1065
      %v1120 = vpop.f32.mrf.mxu0
      %v1121 = vadd.f32 0.0, %v1120
      %v1122 = vpop.f32.mrf.mxu0
      %v1123 = vpop.f32.mrf.mxu0
      %v1124 = vadd.f32 0.0, %v1123
      %v1125 = vpop.f32.mrf.mxu0
      %1126 = vmatprep.mubr.bf16.mxu0 0
      %1127 = vmatmul.mubr.bf16.gmra.mxu0 %v1068
      %v1128 = vpop.f32.mrf.mxu0
      %v1129 = vadd.f32 0.0, %v1128
      %v1130 = vpop.f32.mrf.mxu0
      %v1131 = vpop.f32.mrf.mxu0
      %v1132 = vadd.f32 0.0, %v1131
      %v1133 = vpop.f32.mrf.mxu0
      %1134 = vdwg.mxu0
      %v1135 = vadd.f32 %v890, %v1105
      %v1136 = vadd.f32 %v891, %v1108
      %v1137 = vadd.f32 %v892, %v1113
      %v1138 = vadd.f32 %v893, %v1116
      %v1139 = vadd.f32 %v894, %v1121
      %v1140 = vadd.f32 %v895, %v1124
      %v1141 = vadd.f32 %v896, %v1129
      %v1142 = vadd.f32 %v897, %v1132
      %v1144 = vshrl.u32 %v536, 16
      %v1146 = vrot.slane %v1144, 4
      %v1147 = vshll.u32 %v536, 16
      %v1149 = vrot.slane %v1147, 5
      %v1150 = vor.u32 %v1146, %v1149
      %v1151 = vrot.slane %v1150, 4
      %v1153 = vshll.u32 %v537, 16
      %v1155 = vrot.slane %v1153, 5
      %v1156 = vsel %vm900, %v1151, %v1155
      %s1157 = scalar_lea.vmem %s3, 128
      %v1158 = vld [vmem:[%s1157] sm:$0xf]
      %v1159 = vld [vmem:[%s1157 + $0x4] sm:$0xf]
      %v1160 = vld [vmem:[%s1157 + $0x8] sm:$0xf]
      %v1161 = vld [vmem:[%s1157 + $0xc] sm:$0xf]
      %v1162 = vld [vmem:[%s1157 + $0x10] sm:$0xf]
      %v1163 = vld [vmem:[%s1157 + $0x14] sm:$0xf]
      %v1164 = vld [vmem:[%s1157 + $0x18] sm:$0xf]
      %v1165 = vld [vmem:[%s1157 + $0x1c] sm:$0xf]
      %v1166 = vunpack.c.l.b16 %v1156
      %v1167 = vpack.c.b16 %v1024, %v1023
      %v1168 = vpack.c.b16 %v1026, %v1025
      %v1169 = vpack.c.b16 %v1028, %v1027
      %v1170 = vpack.c.b16 %v1166, %v1029
      %v1179 = vunpack.c.l.b16 %v1158
      %v1180 = vunpack.c.l.b16 %v1159
      %v1181 = vunpack.c.l.b16 %v1160
      %v1182 = vunpack.c.l.b16 %v1161
      %v1183 = vunpack.c.l.b16 %v1162
      %v1184 = vunpack.c.l.b16 %v1163
      %v1185 = vunpack.c.l.b16 %v1164
      %v1186 = vunpack.c.l.b16 %v1165
      %v1187 = vpack.c.b16 %v1180, %v1179
      %v1188 = vpack.c.b16 %v1182, %v1181
      %v1189 = vpack.c.b16 %v1184, %v1183
      %v1190 = vpack.c.b16 %v1186, %v1185
      %v1196 = vsel %vm601, %v1167, 0
      %v1199 = vsel %vm601, %v1168, 0
      %v1202 = vsel %vm601, %v1169, 0
      %v1205 = vsel %vm601, %v1170, 0
      %1207 = vmatprep.subr.bf16.mxu0 0
      %1208 = vmatpush1.bf16.msra.mxu0 0
      %1209 = vmatprep.subr.bf16.mxu0 0
      %1210 = vmatpush1.bf16.msra.mxu0 0
      %1211 = vmatprep.subr.bf16.mxu0 0
      %1212 = vmatpush1.bf16.msra.mxu0 0
      %1213 = vmatprep.subr.bf16.mxu0 0
      %1214 = vmatpush1.bf16.msra.mxu0 0
      %1215 = vmatprep.subr.bf16.mxu0 0
      %1216 = vmatpush1.bf16.msra.mxu0 %v1190
      %1217 = vmatprep.subr.bf16.mxu0 0
      %1218 = vmatpush1.bf16.msra.mxu0 %v1189
      %1219 = vmatprep.subr.bf16.mxu0 0
      %1220 = vmatpush1.bf16.msra.mxu0 %v1188
      %1221 = vmatprep.subr.bf16.mxu0 0
      %1222 = vmatpush1.bf16.msra.mxu0 %v1187
      %1223 = vmatprep.subr.bf16.mxu0 0
      %1224 = vmatpush2.bf16.msra.mxu0 0
      %1225 = vmatprep.subr.bf16.mxu0 0
      %1226 = vmatpush2.bf16.msra.mxu0 0
      %1227 = vmatprep.subr.bf16.mxu0 0
      %1228 = vmatpush2.bf16.msra.mxu0 0
      %1229 = vmatprep.subr.bf16.mxu0 0
      %1230 = vmatpush2.bf16.msra.mxu0 0
      %1231 = vmatprep.subr.bf16.mxu0 0
      %1232 = vmatpush2.bf16.msra.mxu0 0
      %1233 = vmatprep.subr.bf16.mxu0 0
      %1234 = vmatpush2.bf16.msra.mxu0 0
      %1235 = vmatprep.subr.bf16.mxu0 0
      %1236 = vmatpush2.bf16.msra.mxu0 0
      %1237 = vmatprep.subr.bf16.mxu0 0
      %1238 = vmatpush2.bf16.msra.mxu0 0
      %1239 = vmatprep.mubr.bf16.mxu0 0
      %1240 = vmatmul.mubr.bf16.gmra.mxu0 %v1196
      %v1241 = vpop.f32.mrf.mxu0
      %v1242 = vadd.f32 0.0, %v1241
      %v1243 = vpop.f32.mrf.mxu0
      %v1244 = vpop.f32.mrf.mxu0
      %v1245 = vadd.f32 0.0, %v1244
      %v1246 = vpop.f32.mrf.mxu0
      %1247 = vmatprep.mubr.bf16.mxu0 0
      %1248 = vmatmul.mubr.bf16.gmra.mxu0 %v1199
      %v1249 = vpop.f32.mrf.mxu0
      %v1250 = vadd.f32 0.0, %v1249
      %v1251 = vpop.f32.mrf.mxu0
      %v1252 = vpop.f32.mrf.mxu0
      %v1253 = vadd.f32 0.0, %v1252
      %v1254 = vpop.f32.mrf.mxu0
      %1255 = vmatprep.mubr.bf16.mxu0 0
      %1256 = vmatmul.mubr.bf16.gmra.mxu0 %v1202
      %v1257 = vpop.f32.mrf.mxu0
      %v1258 = vadd.f32 0.0, %v1257
      %v1259 = vpop.f32.mrf.mxu0
      %v1260 = vpop.f32.mrf.mxu0
      %v1261 = vadd.f32 0.0, %v1260
      %v1262 = vpop.f32.mrf.mxu0
      %1263 = vmatprep.mubr.bf16.mxu0 0
      %1264 = vmatmul.mubr.bf16.gmra.mxu0 %v1205
      %v1265 = vpop.f32.mrf.mxu0
      %v1266 = vadd.f32 0.0, %v1265
      %v1267 = vpop.f32.mrf.mxu0
      %v1268 = vpop.f32.mrf.mxu0
      %v1269 = vadd.f32 0.0, %v1268
      %v1270 = vpop.f32.mrf.mxu0
      %1271 = vdwg.mxu0
      %v1272 = vadd.f32 %v1135, %v1242
      %v1273 = vadd.f32 %v1136, %v1245
      %v1274 = vadd.f32 %v1137, %v1250
      %v1275 = vadd.f32 %v1138, %v1253
      %v1276 = vadd.f32 %v1139, %v1258
      %v1277 = vadd.f32 %v1140, %v1261
      %v1278 = vadd.f32 %v1141, %v1266
      %v1279 = vadd.f32 %v1142, %v1269
      %v1281 = vshrl.u32 %v538, 16
      %v1283 = vrot.slane %v1281, 4
      %v1284 = vshll.u32 %v538, 16
      %v1286 = vrot.slane %v1284, 5
      %v1287 = vor.u32 %v1283, %v1286
      %v1288 = vrot.slane %v1287, 4
      %v1290 = vshll.u32 %v539, 16
      %v1292 = vrot.slane %v1290, 5
      %v1293 = vsel %vm900, %v1288, %v1292
      %s1294 = scalar_lea.vmem %s3, 224
      %v1295 = vld [vmem:[%s1294] sm:$0xf]
      %v1296 = vld [vmem:[%s1294 + $0x4] sm:$0xf]
      %v1297 = vld [vmem:[%s1294 + $0x8] sm:$0xf]
      %v1298 = vld [vmem:[%s1294 + $0xc] sm:$0xf]
      %v1299 = vld [vmem:[%s1294 + $0x10] sm:$0xf]
      %v1300 = vld [vmem:[%s1294 + $0x14] sm:$0xf]
      %v1301 = vld [vmem:[%s1294 + $0x18] sm:$0xf]
      %v1302 = vld [vmem:[%s1294 + $0x1c] sm:$0xf]
      %v1303 = vunpack.c.l.b16 %v1293
      %v1304 = vpack.c.b16 %v1303, %v1166
      %v1313 = vunpack.c.l.b16 %v1295
      %v1314 = vunpack.c.l.b16 %v1296
      %v1315 = vunpack.c.l.b16 %v1297
      %v1316 = vunpack.c.l.b16 %v1298
      %v1317 = vunpack.c.l.b16 %v1299
      %v1318 = vunpack.c.l.b16 %v1300
      %v1319 = vunpack.c.l.b16 %v1301
      %v1320 = vunpack.c.l.b16 %v1302
      %v1321 = vpack.c.b16 %v1314, %v1313
      %v1322 = vpack.c.b16 %v1316, %v1315
      %v1323 = vpack.c.b16 %v1318, %v1317
      %v1324 = vpack.c.b16 %v1320, %v1319
      %v1330 = vsel %vm601, %v1304, 0
      %1332 = vmatprep.subr.bf16.mxu0 0
      %1333 = vmatpush1.bf16.msra.mxu0 0
      %1334 = vmatprep.subr.bf16.mxu0 0
      %1335 = vmatpush1.bf16.msra.mxu0 0
      %1336 = vmatprep.subr.bf16.mxu0 0
      %1337 = vmatpush1.bf16.msra.mxu0 0
      %1338 = vmatprep.subr.bf16.mxu0 0
      %1339 = vmatpush1.bf16.msra.mxu0 0
      %1340 = vmatprep.subr.bf16.mxu0 0
      %1341 = vmatpush1.bf16.msra.mxu0 %v1324
      %1342 = vmatprep.subr.bf16.mxu0 0
      %1343 = vmatpush1.bf16.msra.mxu0 %v1323
      %1344 = vmatprep.subr.bf16.mxu0 0
      %1345 = vmatpush1.bf16.msra.mxu0 %v1322
      %1346 = vmatprep.subr.bf16.mxu0 0
      %1347 = vmatpush1.bf16.msra.mxu0 %v1321
      %1348 = vmatprep.subr.bf16.mxu0 0
      %1349 = vmatpush2.bf16.msra.mxu0 0
      %1350 = vmatprep.subr.bf16.mxu0 0
      %1351 = vmatpush2.bf16.msra.mxu0 0
      %1352 = vmatprep.subr.bf16.mxu0 0
      %1353 = vmatpush2.bf16.msra.mxu0 0
      %1354 = vmatprep.subr.bf16.mxu0 0
      %1355 = vmatpush2.bf16.msra.mxu0 0
      %1356 = vmatprep.subr.bf16.mxu0 0
      %1357 = vmatpush2.bf16.msra.mxu0 0
      %1358 = vmatprep.subr.bf16.mxu0 0
      %1359 = vmatpush2.bf16.msra.mxu0 0
      %1360 = vmatprep.subr.bf16.mxu0 0
      %1361 = vmatpush2.bf16.msra.mxu0 0
      %1362 = vmatprep.subr.bf16.mxu0 0
      %1363 = vmatpush2.bf16.msra.mxu0 0
      %1364 = vmatprep.mubr.bf16.mxu0 0
      %1365 = vmatmul.mubr.bf16.gmra.mxu0 %v1062
      %v1366 = vpop.f32.mrf.mxu0
      %v1367 = vadd.f32 0.0, %v1366
      %v1368 = vpop.f32.mrf.mxu0
      %v1369 = vpop.f32.mrf.mxu0
      %v1370 = vadd.f32 0.0, %v1369
      %v1371 = vpop.f32.mrf.mxu0
      %1372 = vmatprep.mubr.bf16.mxu0 0
      %1373 = vmatmul.mubr.bf16.gmra.mxu0 %v1065
      %v1374 = vpop.f32.mrf.mxu0
      %v1375 = vadd.f32 0.0, %v1374
      %v1376 = vpop.f32.mrf.mxu0
      %v1377 = vpop.f32.mrf.mxu0
      %v1378 = vadd.f32 0.0, %v1377
      %v1379 = vpop.f32.mrf.mxu0
      %1380 = vmatprep.mubr.bf16.mxu0 0
      %1381 = vmatmul.mubr.bf16.gmra.mxu0 %v1068
      %v1382 = vpop.f32.mrf.mxu0
      %v1383 = vadd.f32 0.0, %v1382
      %v1384 = vpop.f32.mrf.mxu0
      %v1385 = vpop.f32.mrf.mxu0
      %v1386 = vadd.f32 0.0, %v1385
      %v1387 = vpop.f32.mrf.mxu0
      %1388 = vmatprep.mubr.bf16.mxu0 0
      %1389 = vmatmul.mubr.bf16.gmra.mxu0 %v1330
      %v1390 = vpop.f32.mrf.mxu0
      %v1391 = vadd.f32 0.0, %v1390
      %v1392 = vpop.f32.mrf.mxu0
      %v1393 = vpop.f32.mrf.mxu0
      %v1394 = vadd.f32 0.0, %v1393
      %v1395 = vpop.f32.mrf.mxu0
      %1396 = vdwg.mxu0
      %v1397 = vadd.f32 %v1272, %v1367
      %v1398 = vadd.f32 %v1273, %v1370
      %v1399 = vadd.f32 %v1274, %v1375
      %v1400 = vadd.f32 %v1275, %v1378
      %v1401 = vadd.f32 %v1276, %v1383
      %v1402 = vadd.f32 %v1277, %v1386
      %v1403 = vadd.f32 %v1278, %v1391
      %v1404 = vadd.f32 %v1279, %v1394
      %vm1413 = vcmask 1042432
      %vm1414 = vcmask 1046532
      %vm1415 = vmor %vm1413, %vm1414
      %v1416 = vrot.slane %v520, 5
      %v1417 = vrot.slane %v1416, 4
      %v1418 = vrot.slane %v521, 5
      %v1419 = vsel %vm1415, %v1417, %v1418
      %v1420 = vrot.slane %v522, 5
      %v1421 = vrot.slane %v1420, 4
      %v1422 = vrot.slane %v523, 5
      %v1423 = vsel %vm1415, %v1421, %v1422
      %v1424 = vrot.slane %v524, 5
      %v1425 = vrot.slane %v1424, 4
      %v1426 = vrot.slane %v525, 5
      %v1427 = vsel %vm1415, %v1425, %v1426
      %v1428 = vrot.slane %v526, 5
      %v1429 = vrot.slane %v1428, 4
      %v1430 = vrot.slane %v527, 5
      %v1431 = vsel %vm1415, %v1429, %v1430
      %v1432 = vrot.slane %v528, 5
      %v1433 = vrot.slane %v1432, 4
      %v1434 = vrot.slane %v529, 5
      %v1435 = vsel %vm1415, %v1433, %v1434
      %v1436 = vrot.slane %v530, 5
      %v1437 = vrot.slane %v1436, 4
      %v1438 = vrot.slane %v531, 5
      %v1439 = vsel %vm1415, %v1437, %v1438
      %v1440 = vrot.slane %v532, 5
      %v1441 = vrot.slane %v1440, 4
      %v1442 = vrot.slane %v533, 5
      %v1443 = vsel %vm1415, %v1441, %v1442
      %v1444 = vrot.slane %v534, 5
      %v1445 = vrot.slane %v1444, 4
      %v1446 = vrot.slane %v535, 5
      %v1447 = vsel %vm1415, %v1445, %v1446
      %s1448 = scalar_lea.vmem %s3, 64
      %v1449 = vld [vmem:[%s1448] sm:$0xf]
      %v1450 = vld [vmem:[%s1448 + $0x4] sm:$0xf]
      %v1451 = vld [vmem:[%s1448 + $0x8] sm:$0xf]
      %v1452 = vld [vmem:[%s1448 + $0xc] sm:$0xf]
      %v1453 = vld [vmem:[%s1448 + $0x10] sm:$0xf]
      %v1454 = vld [vmem:[%s1448 + $0x14] sm:$0xf]
      %v1455 = vld [vmem:[%s1448 + $0x18] sm:$0xf]
      %v1456 = vld [vmem:[%s1448 + $0x1c] sm:$0xf]
      %v1457 = vunpack.c.l.b16 %v1419
      %v1458 = vunpack.c.l.b16 %v1423
      %v1459 = vunpack.c.l.b16 %v1427
      %v1460 = vunpack.c.l.b16 %v1431
      %v1461 = vunpack.c.l.b16 %v1435
      %v1462 = vunpack.c.l.b16 %v1439
      %v1463 = vunpack.c.l.b16 %v1443
      %v1464 = vunpack.c.l.b16 %v1447
      %v1465 = vpack.c.b16 %v1458, %v1457
      %v1466 = vpack.c.b16 %v1460, %v1459
      %v1467 = vpack.c.b16 %v1462, %v1461
      %v1468 = vpack.c.b16 %v1464, %v1463
      %v1477 = vunpack.c.l.b16 %v1449
      %v1478 = vunpack.c.l.b16 %v1450
      %v1479 = vunpack.c.l.b16 %v1451
      %v1480 = vunpack.c.l.b16 %v1452
      %v1481 = vunpack.c.l.b16 %v1453
      %v1482 = vunpack.c.l.b16 %v1454
      %v1483 = vunpack.c.l.b16 %v1455
      %v1484 = vunpack.c.l.b16 %v1456
      %v1485 = vpack.c.b16 %v1478, %v1477
      %v1486 = vpack.c.b16 %v1480, %v1479
      %v1487 = vpack.c.b16 %v1482, %v1481
      %v1488 = vpack.c.b16 %v1484, %v1483
      %v1494 = vsel %vm601, %v1465, 0
      %v1497 = vsel %vm601, %v1466, 0
      %v1500 = vsel %vm601, %v1467, 0
      %v1503 = vsel %vm601, %v1468, 0
      %1505 = vmatprep.subr.bf16.mxu0 0
      %1506 = vmatpush1.bf16.msra.mxu0 0
      %1507 = vmatprep.subr.bf16.mxu0 0
      %1508 = vmatpush1.bf16.msra.mxu0 0
      %1509 = vmatprep.subr.bf16.mxu0 0
      %1510 = vmatpush1.bf16.msra.mxu0 0
      %1511 = vmatprep.subr.bf16.mxu0 0
      %1512 = vmatpush1.bf16.msra.mxu0 0
      %1513 = vmatprep.subr.bf16.mxu0 0
      %1514 = vmatpush1.bf16.msra.mxu0 %v1488
      %1515 = vmatprep.subr.bf16.mxu0 0
      %1516 = vmatpush1.bf16.msra.mxu0 %v1487
      %1517 = vmatprep.subr.bf16.mxu0 0
      %1518 = vmatpush1.bf16.msra.mxu0 %v1486
      %1519 = vmatprep.subr.bf16.mxu0 0
      %1520 = vmatpush1.bf16.msra.mxu0 %v1485
      %1521 = vmatprep.subr.bf16.mxu0 0
      %1522 = vmatpush2.bf16.msra.mxu0 0
      %1523 = vmatprep.subr.bf16.mxu0 0
      %1524 = vmatpush2.bf16.msra.mxu0 0
      %1525 = vmatprep.subr.bf16.mxu0 0
      %1526 = vmatpush2.bf16.msra.mxu0 0
      %1527 = vmatprep.subr.bf16.mxu0 0
      %1528 = vmatpush2.bf16.msra.mxu0 0
      %1529 = vmatprep.subr.bf16.mxu0 0
      %1530 = vmatpush2.bf16.msra.mxu0 0
      %1531 = vmatprep.subr.bf16.mxu0 0
      %1532 = vmatpush2.bf16.msra.mxu0 0
      %1533 = vmatprep.subr.bf16.mxu0 0
      %1534 = vmatpush2.bf16.msra.mxu0 0
      %1535 = vmatprep.subr.bf16.mxu0 0
      %1536 = vmatpush2.bf16.msra.mxu0 0
      %1537 = vmatprep.mubr.bf16.mxu0 0
      %1538 = vmatmul.mubr.bf16.gmra.mxu0 %v1494
      %v1539 = vpop.f32.mrf.mxu0
      %v1540 = vadd.f32 0.0, %v1539
      %v1541 = vpop.f32.mrf.mxu0
      %v1542 = vpop.f32.mrf.mxu0
      %v1543 = vadd.f32 0.0, %v1542
      %v1544 = vpop.f32.mrf.mxu0
      %1545 = vmatprep.mubr.bf16.mxu0 0
      %1546 = vmatmul.mubr.bf16.gmra.mxu0 %v1497
      %v1547 = vpop.f32.mrf.mxu0
      %v1548 = vadd.f32 0.0, %v1547
      %v1549 = vpop.f32.mrf.mxu0
      %v1550 = vpop.f32.mrf.mxu0
      %v1551 = vadd.f32 0.0, %v1550
      %v1552 = vpop.f32.mrf.mxu0
      %1553 = vmatprep.mubr.bf16.mxu0 0
      %1554 = vmatmul.mubr.bf16.gmra.mxu0 %v1500
      %v1555 = vpop.f32.mrf.mxu0
      %v1556 = vadd.f32 0.0, %v1555
      %v1557 = vpop.f32.mrf.mxu0
      %v1558 = vpop.f32.mrf.mxu0
      %v1559 = vadd.f32 0.0, %v1558
      %v1560 = vpop.f32.mrf.mxu0
      %1561 = vmatprep.mubr.bf16.mxu0 0
      %1562 = vmatmul.mubr.bf16.gmra.mxu0 %v1503
      %v1563 = vpop.f32.mrf.mxu0
      %v1564 = vadd.f32 0.0, %v1563
      %v1565 = vpop.f32.mrf.mxu0
      %v1566 = vpop.f32.mrf.mxu0
      %v1567 = vadd.f32 0.0, %v1566
      %v1568 = vpop.f32.mrf.mxu0
      %1569 = vdwg.mxu0
      %v1570 = vadd.f32 %v1397, %v1540
      %v1571 = vadd.f32 %v1398, %v1543
      %v1572 = vadd.f32 %v1399, %v1548
      %v1573 = vadd.f32 %v1400, %v1551
      %v1574 = vadd.f32 %v1401, %v1556
      %v1575 = vadd.f32 %v1402, %v1559
      %v1576 = vadd.f32 %v1403, %v1564
      %v1577 = vadd.f32 %v1404, %v1567
      %v1579 = vrot.slane %v536, 5
      %v1580 = vrot.slane %v1579, 4
      %v1581 = vrot.slane %v537, 5
      %v1582 = vsel %vm1415, %v1580, %v1581
      %s1583 = scalar_lea.vmem %s3, 160
      %v1584 = vld [vmem:[%s1583] sm:$0xf]
      %v1585 = vld [vmem:[%s1583 + $0x4] sm:$0xf]
      %v1586 = vld [vmem:[%s1583 + $0x8] sm:$0xf]
      %v1587 = vld [vmem:[%s1583 + $0xc] sm:$0xf]
      %v1588 = vld [vmem:[%s1583 + $0x10] sm:$0xf]
      %v1589 = vld [vmem:[%s1583 + $0x14] sm:$0xf]
      %v1590 = vld [vmem:[%s1583 + $0x18] sm:$0xf]
      %v1591 = vld [vmem:[%s1583 + $0x1c] sm:$0xf]
      %v1592 = vunpack.c.l.b16 %v1582
      %v1593 = vpack.c.b16 %v1459, %v1458
      %v1594 = vpack.c.b16 %v1461, %v1460
      %v1595 = vpack.c.b16 %v1463, %v1462
      %v1596 = vpack.c.b16 %v1592, %v1464
      %v1605 = vunpack.c.l.b16 %v1584
      %v1606 = vunpack.c.l.b16 %v1585
      %v1607 = vunpack.c.l.b16 %v1586
      %v1608 = vunpack.c.l.b16 %v1587
      %v1609 = vunpack.c.l.b16 %v1588
      %v1610 = vunpack.c.l.b16 %v1589
      %v1611 = vunpack.c.l.b16 %v1590
      %v1612 = vunpack.c.l.b16 %v1591
      %v1613 = vpack.c.b16 %v1606, %v1605
      %v1614 = vpack.c.b16 %v1608, %v1607
      %v1615 = vpack.c.b16 %v1610, %v1609
      %v1616 = vpack.c.b16 %v1612, %v1611
      %v1622 = vsel %vm601, %v1593, 0
      %v1625 = vsel %vm601, %v1594, 0
      %v1628 = vsel %vm601, %v1595, 0
      %v1631 = vsel %vm601, %v1596, 0
      %1633 = vmatprep.subr.bf16.mxu0 0
      %1634 = vmatpush1.bf16.msra.mxu0 0
      %1635 = vmatprep.subr.bf16.mxu0 0
      %1636 = vmatpush1.bf16.msra.mxu0 0
      %1637 = vmatprep.subr.bf16.mxu0 0
      %1638 = vmatpush1.bf16.msra.mxu0 0
      %1639 = vmatprep.subr.bf16.mxu0 0
      %1640 = vmatpush1.bf16.msra.mxu0 0
      %1641 = vmatprep.subr.bf16.mxu0 0
      %1642 = vmatpush1.bf16.msra.mxu0 %v1616
      %1643 = vmatprep.subr.bf16.mxu0 0
      %1644 = vmatpush1.bf16.msra.mxu0 %v1615
      %1645 = vmatprep.subr.bf16.mxu0 0
      %1646 = vmatpush1.bf16.msra.mxu0 %v1614
      %1647 = vmatprep.subr.bf16.mxu0 0
      %1648 = vmatpush1.bf16.msra.mxu0 %v1613
      %1649 = vmatprep.subr.bf16.mxu0 0
      %1650 = vmatpush2.bf16.msra.mxu0 0
      %1651 = vmatprep.subr.bf16.mxu0 0
      %1652 = vmatpush2.bf16.msra.mxu0 0
      %1653 = vmatprep.subr.bf16.mxu0 0
      %1654 = vmatpush2.bf16.msra.mxu0 0
      %1655 = vmatprep.subr.bf16.mxu0 0
      %1656 = vmatpush2.bf16.msra.mxu0 0
      %1657 = vmatprep.subr.bf16.mxu0 0
      %1658 = vmatpush2.bf16.msra.mxu0 0
      %1659 = vmatprep.subr.bf16.mxu0 0
      %1660 = vmatpush2.bf16.msra.mxu0 0
      %1661 = vmatprep.subr.bf16.mxu0 0
      %1662 = vmatpush2.bf16.msra.mxu0 0
      %1663 = vmatprep.subr.bf16.mxu0 0
      %1664 = vmatpush2.bf16.msra.mxu0 0
      %1665 = vmatprep.mubr.bf16.mxu0 0
      %1666 = vmatmul.mubr.bf16.gmra.mxu0 %v1622
      %v1667 = vpop.f32.mrf.mxu0
      %v1668 = vadd.f32 0.0, %v1667
      %v1669 = vpop.f32.mrf.mxu0
      %v1670 = vpop.f32.mrf.mxu0
      %v1671 = vadd.f32 0.0, %v1670
      %v1672 = vpop.f32.mrf.mxu0
      %1673 = vmatprep.mubr.bf16.mxu0 0
      %1674 = vmatmul.mubr.bf16.gmra.mxu0 %v1625
      %v1675 = vpop.f32.mrf.mxu0
      %v1676 = vadd.f32 0.0, %v1675
      %v1677 = vpop.f32.mrf.mxu0
      %v1678 = vpop.f32.mrf.mxu0
      %v1679 = vadd.f32 0.0, %v1678
      %v1680 = vpop.f32.mrf.mxu0
      %1681 = vmatprep.mubr.bf16.mxu0 0
      %1682 = vmatmul.mubr.bf16.gmra.mxu0 %v1628
      %v1683 = vpop.f32.mrf.mxu0
      %v1684 = vadd.f32 0.0, %v1683
      %v1685 = vpop.f32.mrf.mxu0
      %v1686 = vpop.f32.mrf.mxu0
      %v1687 = vadd.f32 0.0, %v1686
      %v1688 = vpop.f32.mrf.mxu0
      %1689 = vmatprep.mubr.bf16.mxu0 0
      %1690 = vmatmul.mubr.bf16.gmra.mxu0 %v1631
      %v1691 = vpop.f32.mrf.mxu0
      %v1692 = vadd.f32 0.0, %v1691
      %v1693 = vpop.f32.mrf.mxu0
      %v1694 = vpop.f32.mrf.mxu0
      %v1695 = vadd.f32 0.0, %v1694
      %v1696 = vpop.f32.mrf.mxu0
      %1697 = vdwg.mxu0
      %v1698 = vadd.f32 %v1570, %v1668
      %v1699 = vadd.f32 %v1571, %v1671
      %v1700 = vadd.f32 %v1572, %v1676
      %v1701 = vadd.f32 %v1573, %v1679
      %v1702 = vadd.f32 %v1574, %v1684
      %v1703 = vadd.f32 %v1575, %v1687
      %v1704 = vadd.f32 %v1576, %v1692
      %v1705 = vadd.f32 %v1577, %v1695
      %v1707 = vrot.slane %v538, 5
      %v1708 = vrot.slane %v1707, 4
      %v1709 = vrot.slane %v539, 5
      %v1710 = vsel %vm1415, %v1708, %v1709
      %s1711 = scalar_lea.vmem %s3, 256
      %v1712 = vld [vmem:[%s1711] sm:$0xf]
      %v1713 = vld [vmem:[%s1711 + $0x4] sm:$0xf]
      %v1714 = vld [vmem:[%s1711 + $0x8] sm:$0xf]
      %v1715 = vld [vmem:[%s1711 + $0xc] sm:$0xf]
      %v1716 = vld [vmem:[%s1711 + $0x10] sm:$0xf]
      %v1717 = vld [vmem:[%s1711 + $0x14] sm:$0xf]
      %v1718 = vld [vmem:[%s1711 + $0x18] sm:$0xf]
      %v1719 = vld [vmem:[%s1711 + $0x1c] sm:$0xf]
      %v1720 = vunpack.c.l.b16 %v1710
      %v1721 = vpack.c.b16 %v1720, %v1592
      %v1730 = vunpack.c.l.b16 %v1712
      %v1731 = vunpack.c.l.b16 %v1713
      %v1732 = vunpack.c.l.b16 %v1714
      %v1733 = vunpack.c.l.b16 %v1715
      %v1734 = vunpack.c.l.b16 %v1716
      %v1735 = vunpack.c.l.b16 %v1717
      %v1736 = vunpack.c.l.b16 %v1718
      %v1737 = vunpack.c.l.b16 %v1719
      %v1738 = vpack.c.b16 %v1731, %v1730
      %v1739 = vpack.c.b16 %v1733, %v1732
      %v1740 = vpack.c.b16 %v1735, %v1734
      %v1741 = vpack.c.b16 %v1737, %v1736
      %v1747 = vsel %vm601, %v1721, 0
      %1749 = vmatprep.subr.bf16.mxu0 0
      %1750 = vmatpush1.bf16.msra.mxu0 0
      %1751 = vmatprep.subr.bf16.mxu0 0
      %1752 = vmatpush1.bf16.msra.mxu0 0
      %1753 = vmatprep.subr.bf16.mxu0 0
      %1754 = vmatpush1.bf16.msra.mxu0 0
      %1755 = vmatprep.subr.bf16.mxu0 0
      %1756 = vmatpush1.bf16.msra.mxu0 0
      %1757 = vmatprep.subr.bf16.mxu0 0
      %1758 = vmatpush1.bf16.msra.mxu0 %v1741
      %1759 = vmatprep.subr.bf16.mxu0 0
      %1760 = vmatpush1.bf16.msra.mxu0 %v1740
      %1761 = vmatprep.subr.bf16.mxu0 0
      %1762 = vmatpush1.bf16.msra.mxu0 %v1739
      %1763 = vmatprep.subr.bf16.mxu0 0
      %1764 = vmatpush1.bf16.msra.mxu0 %v1738
      %1765 = vmatprep.subr.bf16.mxu0 0
      %1766 = vmatpush2.bf16.msra.mxu0 0
      %1767 = vmatprep.subr.bf16.mxu0 0
      %1768 = vmatpush2.bf16.msra.mxu0 0
      %1769 = vmatprep.subr.bf16.mxu0 0
      %1770 = vmatpush2.bf16.msra.mxu0 0
      %1771 = vmatprep.subr.bf16.mxu0 0
      %1772 = vmatpush2.bf16.msra.mxu0 0
      %1773 = vmatprep.subr.bf16.mxu0 0
      %1774 = vmatpush2.bf16.msra.mxu0 0
      %1775 = vmatprep.subr.bf16.mxu0 0
      %1776 = vmatpush2.bf16.msra.mxu0 0
      %1777 = vmatprep.subr.bf16.mxu0 0
      %1778 = vmatpush2.bf16.msra.mxu0 0
      %1779 = vmatprep.subr.bf16.mxu0 0
      %1780 = vmatpush2.bf16.msra.mxu0 0
      %1781 = vmatprep.mubr.bf16.mxu0 0
      %1782 = vmatmul.mubr.bf16.gmra.mxu0 %v1497
      %v1783 = vpop.f32.mrf.mxu0
      %v1784 = vadd.f32 0.0, %v1783
      %v1785 = vpop.f32.mrf.mxu0
      %v1786 = vpop.f32.mrf.mxu0
      %v1787 = vadd.f32 0.0, %v1786
      %v1788 = vpop.f32.mrf.mxu0
      %1789 = vmatprep.mubr.bf16.mxu0 0
      %1790 = vmatmul.mubr.bf16.gmra.mxu0 %v1500
      %v1791 = vpop.f32.mrf.mxu0
      %v1792 = vadd.f32 0.0, %v1791
      %v1793 = vpop.f32.mrf.mxu0
      %v1794 = vpop.f32.mrf.mxu0
      %v1795 = vadd.f32 0.0, %v1794
      %v1796 = vpop.f32.mrf.mxu0
      %1797 = vmatprep.mubr.bf16.mxu0 0
      %1798 = vmatmul.mubr.bf16.gmra.mxu0 %v1503
      %v1799 = vpop.f32.mrf.mxu0
      %v1800 = vadd.f32 0.0, %v1799
      %v1801 = vpop.f32.mrf.mxu0
      %v1802 = vpop.f32.mrf.mxu0
      %v1803 = vadd.f32 0.0, %v1802
      %v1804 = vpop.f32.mrf.mxu0
      %1805 = vmatprep.mubr.bf16.mxu0 0
      %1806 = vmatmul.mubr.bf16.gmra.mxu0 %v1747
      %v1807 = vpop.f32.mrf.mxu0
      %v1808 = vadd.f32 0.0, %v1807
      %v1809 = vpop.f32.mrf.mxu0
      %v1810 = vpop.f32.mrf.mxu0
      %v1811 = vadd.f32 0.0, %v1810
      %v1812 = vpop.f32.mrf.mxu0
      %1813 = vdwg.mxu0
      %v1814 = vadd.f32 %v1698, %v1784
      %v1815 = vadd.f32 %v1699, %v1787
      %v1816 = vadd.f32 %v1700, %v1792
      %v1817 = vadd.f32 %v1701, %v1795
      %v1818 = vadd.f32 %v1702, %v1800
      %v1819 = vadd.f32 %v1703, %v1803
      %v1820 = vadd.f32 %v1704, %v1808
      %v1821 = vadd.f32 %v1705, %v1811
      %v1822 = vld [vmem:[%s4] sm:$0x1]
      %v1824 = vlaneseq
      %v1825 = vshrl.u32 %v1824, 7
      %v1826 = vsub.s32 0, %v1825
      %v1827 = vrot.slane %v1822, %v1826
      %v1829 = vadd.f32 %v1814, %v1827
      %v1830 = vadd.f32 %v1815, %v1827
      %v1831 = vadd.f32 %v1816, %v1827
      %v1832 = vadd.f32 %v1817, %v1827
      %v1833 = vadd.f32 %v1818, %v1827
      %v1834 = vadd.f32 %v1819, %v1827
      %v1835 = vadd.f32 %v1820, %v1827
      %v1836 = vadd.f32 %v1821, %v1827
      %1837 = vst [vmem:[%s393] sm:$0xff] %v1829
      %1838 = vst [vmem:[%s393 + $0x8] sm:$0xff] %v1830
      %1839 = vst [vmem:[%s393 + $0x10] sm:$0xff] %v1831
      %1840 = vst [vmem:[%s393 + $0x18] sm:$0xff] %v1832
      %1841 = vst [vmem:[%s393 + $0x20] sm:$0xff] %v1833
      %1842 = vst [vmem:[%s393 + $0x28] sm:$0xff] %v1834
      %1843 = vst [vmem:[%s393 + $0x30] sm:$0xff] %v1835
      %1844 = vst [vmem:[%s393 + $0x38] sm:$0xff] %v1836
      %s1845 = smul.u32 8, %s21
      %p1846 = scmp.lt.s32.totalorder %s20, 3
      %s1847 = scalar_select %p1846, %s20, 3
      %p1848 = scmp.lt.s32.totalorder %s1845, 7
      %s1849 = scalar_select %p1848, %s1845, 7
      %s1850 = smul.addr %s1847, 8
      %s1851 = sadd.s32 %s1849, %s1850
      %s1852 = smul.addr %s1851, 8
      %s1853 = scalar_lea.vmem %s5, %s1852
      // Predicated region
      $region41: #{a_call__.6} parent=39 // pred_check
        %p1854 = pneg %p184
      $region42: #{a_call__.6} parent=39 // pred_check_branch
        %1856 = sbr.rel (%p1854) target = $region44
      $region43: #{a_call__.6} parent=39 // pred_region
        %s1857 = smul.u32 8, %s21
      $region44: #{a_call__.6} parent=39 // pred_fallthru
        _
    $region40: #{a_call__.6} parent=5 // pred_fallthru
      _
    %p1858 = scmp.le.s32.totalorder 2, %s11
    // Predicated region
    $region45: #{a_call__.6} parent=5 // pred_check
      %p1859 = pneg %p1858
    $region46: #{a_call__.6} parent=5 // pred_check_branch
      %1861 = sbr.rel (%p1859) target = $region48
    $region47: #{a_call__.6} parent=5 // pred_region
      %s1862 = ssub.s32 %s11, 2
      // Predicated region
      $region49: #{a_call__.6} parent=47 // pred_check
        %p1863 = pneg %p190
      $region50: #{a_call__.6} parent=47 // pred_check_branch
        %1865 = sbr.rel (%p1863) target = $region52
      $region51: #{a_call__.6} parent=47 // pred_region
        %s1866 = smul.u32 8, %s23
        %p1867 = scmp.lt.s32.totalorder %s22, 3
        %s1868 = scalar_select %p1867, %s22, 3
        %p1869 = scmp.lt.s32.totalorder %s1866, 7
        %s1870 = scalar_select %p1869, %s1866, 7
        %s1871 = smul.addr %s1868, 8
        %s1872 = sadd.s32 %s1870, %s1871
        %s1873 = smul.addr %s1872, 8
        %s1874 = scalar_lea.vmem %s5, %s1873
      $region52: #{a_call__.6} parent=47 // pred_fallthru
        _
    $region48: #{a_call__.6} parent=5 // pred_fallthru
      _
  $region6: #{a_call__.6} parent=0 // loop_footer
    %s15 = sadd.s32 1, %s11
  $region7: #{a_call__.6} parent=0 // loop_footer_branch
    %10 = sbr.rel target = $region3
  $region8: #{a_call__.6} parent=0 // loop_exit
    _

// kernel: a_call__.5
$region0: #{a_call__.5}
  #allocation0 [shape = 'u32[]', space=smem, size = 0x4, offset = 0x4, fixed_abs, tag = 'smem constant byte address 0x4 - core index']
  #allocation1 [shape = 'u32[144,128]{1,0:T(1,128)}', space=vmem, size = 0x12000, scoped, tag = 'internal scratch']
  #allocation2 [shape = 'bf16[10,18,64]{2,1,0:T(8,128)(2,1)}', space=vmem, size = 0xf000, scoped, tag = 'scratch operand']
  #allocation3 [shape = 'f32[8,16,64]{2,1,0:T(8,128)}', space=vmem, size = 0x10000, scoped, tag = 'scratch operand']
  %s0 = inlined_call_operand.vmem [shape: f32[4,18,18,64], index: 0, kind: input, shape index: {}, may-alias: {0,1,2}]
  %s1 = inlined_call_operand.vmem [shape: f32[4,18,18,64], index: 1, kind: input, shape index: {}, may-alias: {0,1,2}]
  %s2 = inlined_call_operand.vmem [shape: f32[4,18,18,64], index: 2, kind: input, shape index: {}, may-alias: {0,1,2}]
  %s3 = inlined_call_operand.vmem [shape: bf16[3,3,64,64], index: 3, kind: input, shape index: {}]
  %s4 = inlined_call_operand.vmem [shape: f32[1,64], index: 4, kind: input, shape index: {}]
  %s5 = inlined_call_operand.vmem [shape: f32[4,8,8,64], index: 5, kind: output, shape index: {}]
  %s6 = sld [smem:[#allocation0]]
  $region53: #{a_call__.5} parent=0
    _
  %s8 = ssub.s32 1, %s6
  %s9 = scalar_select 0, %s8, %s6
  loop: start=0, step=1, limit=10
  $region2: #{a_call__.5} parent=0 // loop_pre_header
    _
  $region3: #{a_call__.5} parent=0 // loop_header
    %s11 = sphi 0, %s15
    %p12 = scmp.ge.s32.totalorder %s11, 10
    %s18 = sphi 0, %s30
    %s19 = sphi 0, %s26
    %s20 = sphi 0, %s18
    %s21 = sphi 0, %s19
    %s22 = sphi 0, %s20
    %s23 = sphi 0, %s21
    %s35 = sphi 0, %s37
    %s38 = sphi 0, %s35
    %s39 = sphi 0, %s38
    %s55 = sphi 0, %s39
    %s67 = sphi 0, %s69
    %s70 = sphi 0, %s67
    %s71 = sphi 0, %s70
    %s87 = sphi 0, %s71
    %s101 = sphi 0, %s103
    %s104 = sphi 0, %s101
    %s105 = sphi 0, %s104
    %s121 = sphi 0, %s105
    %s125 = sphi 0, %s125
    %s127 = sphi 0, %s125
    %s128 = sphi 0, %s127
    %s142 = sphi 0, %s128
    %s146 = sphi 0, %s146
    %s148 = sphi 0, %s146
    %s149 = sphi 0, %s148
    %s163 = sphi 0, %s149
    %s171 = sphi 0, %s173
    %s174 = sphi 0, %s171
    %s175 = sphi 0, %s174
    %s191 = sphi 0, %s175
  $region4: #{a_call__.5} parent=0 // loop_header_branch
    %14 = sbr.rel (%p12) target = $region8
  $region5: #{a_call__.5} parent=0 // loop_body
    %s16 = ssub.s32 %s11, 1
    %s17 = ssub.s32 %s11, 2
    %s24 = sadd.s32 1, %s19
    %p25 = scmp.ge.s32.totalorder %s24, 2
    %s26 = scalar_select %p25, 0, %s24
    %s27 = sadd.s32 1, %s18
    %s28 = scalar_select %p25, %s27, %s18
    %p29 = scmp.ge.s32.totalorder %s28, 4
    %s30 = scalar_select %p29, 0, %s28
    %s31 = ssub.s32 %s18, %s30
    %s32 = ssub.s32 %s19, %s26
    %s33 = sor.u32 %s31, %s32
    %p34 = scmp.eq.s32.totalorder %s33, 0
    %s36 = sadd.s32 %s35, 1
    %s37 = scalar_select %p34, %s35, %s36
    %p40 = pneg %p34
    %p41 = scmp.eq.s32.totalorder %s11, 7
    %p42 = por %p40, %p41
    %p43 = scmp.ne.s32.totalorder %s35, %s38
    %p44 = scmp.eq.s32.totalorder %s11, 0
    %p45 = por %p43, %p44
    %p46 = scmp.ne.s32.totalorder %s35, %s38
    %p47 = scmp.eq.s32.totalorder %s16, 7
    %p48 = por %p46, %p47
    %p49 = scmp.ne.s32.totalorder %s38, %s39
    %p50 = scmp.eq.s32.totalorder %s16, 0
    %p51 = por %p49, %p50
    %p52 = scmp.ne.s32.totalorder %s38, %s39
    %p53 = scmp.eq.s32.totalorder %s17, 7
    %p54 = por %p52, %p53
    %p56 = scmp.ne.s32.totalorder %s39, %s55
    %p57 = scmp.eq.s32.totalorder %s17, 0
    %p58 = por %p56, %p57
    %s59 = sadd.s32 %s19, 1
    %s60 = smul.u32 %s59, 8
    %s61 = sadd.s32 %s26, 1
    %s62 = smul.u32 %s61, 8
    %s63 = ssub.s32 %s18, %s30
    %s64 = ssub.s32 %s60, %s62
    %s65 = sor.u32 %s63, %s64
    %p66 = scmp.eq.s32.totalorder %s65, 0
    %s68 = sadd.s32 %s67, 1
    %s69 = scalar_select %p66, %s67, %s68
    %p72 = pneg %p66
    %p73 = scmp.eq.s32.totalorder %s11, 7
    %p74 = por %p72, %p73
    %p75 = scmp.ne.s32.totalorder %s67, %s70
    %p76 = scmp.eq.s32.totalorder %s11, 0
    %p77 = por %p75, %p76
    %p78 = scmp.ne.s32.totalorder %s67, %s70
    %p79 = scmp.eq.s32.totalorder %s16, 7
    %p80 = por %p78, %p79
    %p81 = scmp.ne.s32.totalorder %s70, %s71
    %p82 = scmp.eq.s32.totalorder %s16, 0
    %p83 = por %p81, %p82
    %p84 = scmp.ne.s32.totalorder %s70, %s71
    %p85 = scmp.eq.s32.totalorder %s17, 7
    %p86 = por %p84, %p85
    %p88 = scmp.ne.s32.totalorder %s71, %s87
    %p89 = scmp.eq.s32.totalorder %s17, 0
    %p90 = por %p88, %p89
    %s91 = sadd.s32 %s19, 1
    %s92 = smul.u32 %s91, 8
    %s93 = sadd.s32 %s92, 1
    %s94 = sadd.s32 %s26, 1
    %s95 = smul.u32 %s94, 8
    %s96 = sadd.s32 %s95, 1
    %s97 = ssub.s32 %s18, %s30
    %s98 = ssub.s32 %s93, %s96
    %s99 = sor.u32 %s97, %s98
    %p100 = scmp.eq.s32.totalorder %s99, 0
    %s102 = sadd.s32 %s101, 1
    %s103 = scalar_select %p100, %s101, %s102
    %p106 = pneg %p100
    %p107 = scmp.eq.s32.totalorder %s11, 7
    %p108 = por %p106, %p107
    %p109 = scmp.ne.s32.totalorder %s101, %s104
    %p110 = scmp.eq.s32.totalorder %s11, 0
    %p111 = por %p109, %p110
    %p112 = scmp.ne.s32.totalorder %s101, %s104
    %p113 = scmp.eq.s32.totalorder %s16, 7
    %p114 = por %p112, %p113
    %p115 = scmp.ne.s32.totalorder %s104, %s105
    %p116 = scmp.eq.s32.totalorder %s16, 0
    %p117 = por %p115, %p116
    %p118 = scmp.ne.s32.totalorder %s104, %s105
    %p119 = scmp.eq.s32.totalorder %s17, 7
    %p120 = por %p118, %p119
    %p122 = scmp.ne.s32.totalorder %s105, %s121
    %p123 = scmp.eq.s32.totalorder %s17, 0
    %p124 = por %p122, %p123
    %s126 = sadd.s32 %s125, 1
    %p129 = scmp.eq.s32.totalorder %s11, 7
    %p130 = scmp.ne.s32.totalorder %s125, %s127
    %p131 = scmp.eq.s32.totalorder %s11, 0
    %p132 = por %p130, %p131
    %p133 = scmp.ne.s32.totalorder %s125, %s127
    %p134 = scmp.eq.s32.totalorder %s16, 7
    %p135 = por %p133, %p134
    %p136 = scmp.ne.s32.totalorder %s127, %s128
    %p137 = scmp.eq.s32.totalorder %s16, 0
    %p138 = por %p136, %p137
    %p139 = scmp.ne.s32.totalorder %s127, %s128
    %p140 = scmp.eq.s32.totalorder %s17, 7
    %p141 = por %p139, %p140
    %p143 = scmp.ne.s32.totalorder %s128, %s142
    %p144 = scmp.eq.s32.totalorder %s17, 0
    %p145 = por %p143, %p144
    %s147 = sadd.s32 %s146, 1
    %p150 = scmp.eq.s32.totalorder %s11, 7
    %p151 = scmp.ne.s32.totalorder %s146, %s148
    %p152 = scmp.eq.s32.totalorder %s11, 0
    %p153 = por %p151, %p152
    %p154 = scmp.ne.s32.totalorder %s146, %s148
    %p155 = scmp.eq.s32.totalorder %s16, 7
    %p156 = por %p154, %p155
    %p157 = scmp.ne.s32.totalorder %s148, %s149
    %p158 = scmp.eq.s32.totalorder %s16, 0
    %p159 = por %p157, %p158
    %p160 = scmp.ne.s32.totalorder %s148, %s149
    %p161 = scmp.eq.s32.totalorder %s17, 7
    %p162 = por %p160, %p161
    %p164 = scmp.ne.s32.totalorder %s149, %s163
    %p165 = scmp.eq.s32.totalorder %s17, 0
    %p166 = por %p164, %p165
    %s167 = ssub.s32 %s18, %s30
    %s168 = ssub.s32 %s19, %s26
    %s169 = sor.u32 %s167, %s168
    %p170 = scmp.eq.s32.totalorder %s169, 0
    %s172 = sadd.s32 %s171, 1
    %s173 = scalar_select %p170, %s171, %s172
    %p176 = pneg %p170
    %p177 = scmp.eq.s32.totalorder %s11, 7
    %p178 = por %p176, %p177
    %p179 = scmp.ne.s32.totalorder %s171, %s174
    %p180 = scmp.eq.s32.totalorder %s11, 0
    %p181 = por %p179, %p180
    %p182 = scmp.ne.s32.totalorder %s171, %s174
    %p183 = scmp.eq.s32.totalorder %s16, 7
    %p184 = por %p182, %p183
    %p185 = scmp.ne.s32.totalorder %s174, %s175
    %p186 = scmp.eq.s32.totalorder %s16, 0
    %p187 = por %p185, %p186
    %p188 = scmp.ne.s32.totalorder %s174, %s175
    %p189 = scmp.eq.s32.totalorder %s17, 7
    %p190 = por %p188, %p189
    %p192 = scmp.ne.s32.totalorder %s175, %s191
    %p193 = scmp.eq.s32.totalorder %s17, 0
    %p194 = por %p192, %p193
    %p195 = scmp.le.s32.totalorder 1, %s11
    %p196 = scmp.lt.s32.totalorder %s11, 9
    %p197 = pnand %p195, %p196
    %p198 = pneg %p197
    // Predicated region
    $region9: #{a_call__.5} parent=5 // pred_check
      _
    $region10: #{a_call__.5} parent=5 // pred_check_branch
      %200 = sbr.rel (%p197) target = $region12
    $region11: #{a_call__.5} parent=5 // pred_region
      %s201 = ssub.s32 %s11, 1
      // Predicated region
      $region13: #{a_call__.5} parent=11 // pred_check
        %p202 = pneg %p138
      $region14: #{a_call__.5} parent=11 // pred_check_branch
        %204 = sbr.rel (%p202) target = $region16
      $region15: #{a_call__.5} parent=11 // pred_region
        _
      $region16: #{a_call__.5} parent=11 // pred_fallthru
        _
      // Predicated region
      $region17: #{a_call__.5} parent=11 // pred_check
        %p205 = pneg %p159
      $region18: #{a_call__.5} parent=11 // pred_check_branch
        %207 = sbr.rel (%p205) target = $region20
      $region19: #{a_call__.5} parent=11 // pred_region
        _
      $region20: #{a_call__.5} parent=11 // pred_fallthru
        _
    $region12: #{a_call__.5} parent=5 // pred_fallthru
      _
    %p208 = scmp.lt.s32.totalorder %s11, 8
    // Predicated region
    $region21: #{a_call__.5} parent=5 // pred_check
      %p209 = pneg %p208
    $region22: #{a_call__.5} parent=5 // pred_check_branch
      %211 = sbr.rel (%p209) target = $region24
    $region23: #{a_call__.5} parent=5 // pred_region
      // Predicated region
      $region25: #{a_call__.5} parent=23 // pred_check
        %p212 = pneg %p45
      $region26: #{a_call__.5} parent=23 // pred_check_branch
        %214 = sbr.rel (%p212) target = $region28
      $region27: #{a_call__.5} parent=23 // pred_region
        %s215 = smul.u32 8, %s19
        %s216 = ssub.s32 18, %s215
        %p217 = scmp.lt.s32.totalorder %s216, 8
        %s218 = scalar_select %p217, %s216, 8
        %s219 = smul.u32 128, %s218
        %s220 = smul.u32 %s219, 3
        %p221 = scmp.lt.s32.totalorder %s18, 3
        %s222 = scalar_select %p221, %s18, 3
        %p223 = scmp.lt.s32.totalorder %s215, 17
        %s224 = scalar_select %p223, %s215, 17
        %s225 = smul.addr %s224, 3
        %s226 = smul.addr %s222, 54
        %s227 = sadd.s32 %s225, %s226
        %s228 = smul.addr %s227, 8
        %s229 = scalar_lea.vmem %s0, %s228
        %s230 = smul.u32 8, %s19
        %s231 = ssub.s32 18, %s230
        %p232 = scmp.lt.s32.totalorder %s231, 8
        %s233 = scalar_select %p232, %s231, 8
        %s234 = smul.u32 128, %s233
        %s235 = smul.u32 %s234, 3
      $region28: #{a_call__.5} parent=23 // pred_fallthru
        _
      // Predicated region
      $region29: #{a_call__.5} parent=23 // pred_check
        %p236 = pneg %p77
      $region30: #{a_call__.5} parent=23 // pred_check_branch
        %238 = sbr.rel (%p236) target = $region32
      $region31: #{a_call__.5} parent=23 // pred_region
        %s239 = sadd.s32 %s19, 1
        %s240 = smul.u32 %s239, 8
        %p241 = scmp.lt.s32.totalorder %s18, 3
        %s242 = scalar_select %p241, %s18, 3
        %p243 = scmp.lt.s32.totalorder %s240, 17
        %s244 = scalar_select %p243, %s240, 17
        %s245 = smul.addr %s244, 3
        %s246 = smul.addr %s242, 54
        %s247 = sadd.s32 %s245, %s246
        %s248 = smul.addr %s247, 8
        %s249 = scalar_lea.vmem %s1, %s248
        %s250 = sadd.s32 %s19, 1
        %s251 = smul.u32 %s250, 8
      $region32: #{a_call__.5} parent=23 // pred_fallthru
        _
      // Predicated region
      $region33: #{a_call__.5} parent=23 // pred_check
        %p252 = pneg %p111
      $region34: #{a_call__.5} parent=23 // pred_check_branch
        %254 = sbr.rel (%p252) target = $region36
      $region35: #{a_call__.5} parent=23 // pred_region
        %s255 = sadd.s32 %s19, 1
        %s256 = smul.u32 %s255, 8
        %s257 = sadd.s32 %s256, 1
        %p258 = scmp.lt.s32.totalorder %s18, 3
        %s259 = scalar_select %p258, %s18, 3
        %p260 = scmp.lt.s32.totalorder %s257, 17
        %s261 = scalar_select %p260, %s257, 17
        %s262 = smul.addr %s261, 3
        %s263 = smul.addr %s259, 54
        %s264 = sadd.s32 %s262, %s263
        %s265 = smul.addr %s264, 8
        %s266 = scalar_lea.vmem %s2, %s265
        %s267 = sadd.s32 %s19, 1
        %s268 = smul.u32 %s267, 8
        %s269 = sadd.s32 %s268, 1
      $region36: #{a_call__.5} parent=23 // pred_fallthru
        _
    $region24: #{a_call__.5} parent=5 // pred_fallthru
      _
    %p270 = scmp.le.s32.totalorder 1, %s11
    %p271 = scmp.lt.s32.totalorder %s11, 9
    %p272 = pnand %p270, %p271
    %p273 = pneg %p272
    // Predicated region
    $region37: #{a_call__.5} parent=5 // pred_check
      _
    $region38: #{a_call__.5} parent=5 // pred_check_branch
      %275 = sbr.rel (%p272) target = $region40
    $region39: #{a_call__.5} parent=5 // pred_region
      %s276 = ssub.s32 %s11, 1
      %s277 = smul.u32 8, %s21
      %s278 = ssub.s32 18, %s277
      %p279 = scmp.lt.s32.totalorder %s278, 8
      %s280 = scalar_select %p279, %s278, 8
      %s281 = smul.u32 128, %s280
      %s282 = smul.u32 %s281, 3
      %p283 = scmp.lt.s32.totalorder %s20, 3
      %s284 = scalar_select %p283, %s20, 3
      %p285 = scmp.lt.s32.totalorder %s277, 17
      %s286 = scalar_select %p285, %s277, 17
      %s287 = smul.addr %s286, 3
      %s288 = smul.addr %s284, 54
      %s289 = sadd.s32 %s287, %s288
      %s290 = smul.addr %s289, 8
      %s291 = scalar_lea.vmem %s0, %s290
      %p292 = pneg %p51
      %p293 = pneg %p48
      %s294 = sadd.s32 %s21, 1
      %s295 = smul.u32 %s294, 8
      %p296 = scmp.lt.s32.totalorder %s20, 3
      %s297 = scalar_select %p296, %s20, 3
      %p298 = scmp.lt.s32.totalorder %s295, 17
      %s299 = scalar_select %p298, %s295, 17
      %s300 = smul.addr %s299, 3
      %s301 = smul.addr %s297, 54
      %s302 = sadd.s32 %s300, %s301
      %s303 = smul.addr %s302, 8
      %s304 = scalar_lea.vmem %s1, %s303
      %p305 = pneg %p83
      %p306 = pneg %p80
      %s307 = sadd.s32 %s21, 1
      %s308 = smul.u32 %s307, 8
      %s309 = sadd.s32 %s308, 1
      %p310 = scmp.lt.s32.totalorder %s20, 3
      %s311 = scalar_select %p310, %s20, 3
      %p312 = scmp.lt.s32.totalorder %s309, 17
      %s313 = scalar_select %p312, %s309, 17
      %s314 = smul.addr %s313, 3
      %s315 = smul.addr %s311, 54
      %s316 = sadd.s32 %s314, %s315
      %s317 = smul.addr %s316, 8
      %s318 = scalar_lea.vmem %s2, %s317
      %p319 = pneg %p117
      %p320 = pneg %p114
      %p321 = pneg %p138
      %p322 = pneg %p135
      %p323 = pneg %p159
      %p324 = pneg %p156
      %p325 = pneg %p187
      %p326 = pneg %p184
      %s327 = smul.u32 4, %s21
      %p328 = scmp.lt.s32.totalorder %s20, 3
      %s329 = scalar_select %p328, %s20, 3
      %p330 = scmp.lt.s32.totalorder %s327, 7
      %s331 = scalar_select %p330, %s327, 7
      %s332 = smul.addr %s329, 8
      %s333 = sadd.s32 %s331, %s332
      %s334 = smul.addr %s333, 8
      %s335 = scalar_lea.vmem %s5, %s334
      %s336 = smul.u32 8, %s21
      %s337 = ssub.s32 18, %s336
      %p338 = scmp.lt.s32.totalorder %s337, 8
      %s339 = scalar_select %p338, %s337, 8
      %s340 = smul.u32 128, %s339
      %s341 = smul.u32 %s340, 3
      %p342 = scmp.lt.s32.totalorder %s20, 3
      %s343 = scalar_select %p342, %s20, 3
      %p344 = scmp.lt.s32.totalorder %s336, 17
      %s345 = scalar_select %p344, %s336, 17
      %s346 = smul.addr %s345, 3
      %s347 = smul.addr %s343, 54
      %s348 = sadd.s32 %s346, %s347
      %s349 = smul.addr %s348, 8
      %s350 = scalar_lea.vmem %s0, %s349
      %s351 = smul.u32 8, %s21
      %s352 = ssub.s32 18, %s351
      %p353 = scmp.lt.s32.totalorder %s352, 8
      %s354 = scalar_select %p353, %s352, 8
      %s355 = smul.u32 128, %s354
      %s356 = smul.u32 %s355, 3
      %s357 = sadd.s32 %s21, 1
      %s358 = smul.u32 %s357, 8
      %p359 = scmp.lt.s32.totalorder %s20, 3
      %s360 = scalar_select %p359, %s20, 3
      %p361 = scmp.lt.s32.totalorder %s358, 17
      %s362 = scalar_select %p361, %s358, 17
      %s363 = smul.addr %s362, 3
      %s364 = smul.addr %s360, 54
      %s365 = sadd.s32 %s363, %s364
      %s366 = smul.addr %s365, 8
      %s367 = scalar_lea.vmem %s1, %s366
      %s368 = sadd.s32 %s21, 1
      %s369 = smul.u32 %s368, 8
      %s370 = sadd.s32 %s21, 1
      %s371 = smul.u32 %s370, 8
      %s372 = sadd.s32 %s371, 1
      %p373 = scmp.lt.s32.totalorder %s20, 3
      %s374 = scalar_select %p373, %s20, 3
      %p375 = scmp.lt.s32.totalorder %s372, 17
      %s376 = scalar_select %p375, %s372, 17
      %s377 = smul.addr %s376, 3
      %s378 = smul.addr %s374, 54
      %s379 = sadd.s32 %s377, %s378
      %s380 = smul.addr %s379, 8
      %s381 = scalar_lea.vmem %s2, %s380
      %s382 = sadd.s32 %s21, 1
      %s383 = smul.u32 %s382, 8
      %s384 = sadd.s32 %s383, 1
      %s385 = smul.u32 4, %s21
      %p386 = scmp.lt.s32.totalorder %s20, 3
      %s387 = scalar_select %p386, %s20, 3
      %p388 = scmp.lt.s32.totalorder %s385, 7
      %s389 = scalar_select %p388, %s385, 7
      %s390 = smul.addr %s387, 8
      %s391 = sadd.s32 %s389, %s390
      %s392 = smul.addr %s391, 8
      %s393 = scalar_lea.vmem %s5, %s392
      %s394 = smul.u32 4, %s21
      %v396 = vld [vmem:[%s350] sm:$0xff]
      %v397 = vld [vmem:[%s350 + $0x8] sm:$0xff]
      %v398 = vld [vmem:[%s350 + $0x10] sm:$0x3]
      %v399 = vld [vmem:[%s350 + $0x18] sm:$0xff]
      %v400 = vld [vmem:[%s350 + $0x20] sm:$0xff]
      %v401 = vld [vmem:[%s350 + $0x28] sm:$0x3]
      %v402 = vld [vmem:[%s350 + $0x30] sm:$0xff]
      %v403 = vld [vmem:[%s350 + $0x38] sm:$0xff]
      %v404 = vld [vmem:[%s350 + $0x40] sm:$0x3]
      %v405 = vld [vmem:[%s350 + $0x48] sm:$0xff]
      %v406 = vld [vmem:[%s350 + $0x50] sm:$0xff]
      %v407 = vld [vmem:[%s350 + $0x58] sm:$0x3]
      %v408 = vld [vmem:[%s350 + $0x60] sm:$0xff]
      %v409 = vld [vmem:[%s350 + $0x68] sm:$0xff]
      %v410 = vld [vmem:[%s350 + $0x70] sm:$0x3]
      %v411 = vld [vmem:[%s350 + $0x78] sm:$0xff]
      %v412 = vld [vmem:[%s350 + $0x80] sm:$0xff]
      %v413 = vld [vmem:[%s350 + $0x88] sm:$0x3]
      %v414 = vld [vmem:[%s350 + $0x90] sm:$0xff]
      %v415 = vld [vmem:[%s350 + $0x98] sm:$0xff]
      %v416 = vld [vmem:[%s350 + $0xa0] sm:$0x3]
      %v417 = vld [vmem:[%s350 + $0xa8] sm:$0xff]
      %v418 = vld [vmem:[%s350 + $0xb0] sm:$0xff]
      %v419 = vld [vmem:[%s350 + $0xb8] sm:$0x3]
      %v420 = vpack.c.bf16 %v397, %v396
      %v421 = vpack.c.bf16 %v398, %v398
      %v422 = vpack.c.bf16 %v400, %v399
      %v423 = vpack.c.bf16 %v401, %v401
      %v424 = vpack.c.bf16 %v403, %v402
      %v425 = vpack.c.bf16 %v404, %v404
      %v426 = vpack.c.bf16 %v406, %v405
      %v427 = vpack.c.bf16 %v407, %v407
      %v428 = vpack.c.bf16 %v409, %v408
      %v429 = vpack.c.bf16 %v410, %v410
      %v430 = vpack.c.bf16 %v412, %v411
      %v431 = vpack.c.bf16 %v413, %v413
      %v432 = vpack.c.bf16 %v415, %v414
      %v433 = vpack.c.bf16 %v416, %v416
      %v434 = vpack.c.bf16 %v418, %v417
      %v435 = vpack.c.bf16 %v419, %v419
      %v452 = vunpack.c.l.b16 %v420
      %v453 = vunpack.c.h.b16 %v420
      %v454 = vunpack.c.l.b16 %v421
      %v455 = vunpack.c.l.b16 %v422
      %v456 = vunpack.c.h.b16 %v422
      %v457 = vunpack.c.l.b16 %v423
      %v458 = vunpack.c.l.b16 %v424
      %v459 = vunpack.c.h.b16 %v424
      %v460 = vunpack.c.l.b16 %v425
      %v461 = vunpack.c.l.b16 %v426
      %v462 = vunpack.c.h.b16 %v426
      %v463 = vunpack.c.l.b16 %v427
      %v464 = vunpack.c.l.b16 %v428
      %v465 = vunpack.c.h.b16 %v428
      %v466 = vunpack.c.l.b16 %v429
      %v467 = vunpack.c.l.b16 %v430
      %v468 = vunpack.c.h.b16 %v430
      %v469 = vunpack.c.l.b16 %v431
      %v470 = vunpack.c.l.b16 %v432
      %v471 = vunpack.c.h.b16 %v432
      %v472 = vunpack.c.l.b16 %v433
      %v473 = vunpack.c.l.b16 %v434
      %v474 = vunpack.c.h.b16 %v434
      %v475 = vunpack.c.l.b16 %v435
      %v476 = vpack.c.b16 %v452, %v452
      %v477 = vpack.c.b16 %v453, %v453
      %v478 = vpack.c.b16 %v454, %v454
      %v479 = vpack.c.b16 %v455, %v455
      %v480 = vpack.c.b16 %v456, %v456
      %v481 = vpack.c.b16 %v457, %v457
      %v482 = vpack.c.b16 %v458, %v458
      %v483 = vpack.c.b16 %v459, %v459
      %v484 = vpack.c.b16 %v460, %v460
      %v485 = vpack.c.b16 %v461, %v461
      %v486 = vpack.c.b16 %v462, %v462
      %v487 = vpack.c.b16 %v463, %v463
      %v488 = vpack.c.b16 %v464, %v464
      %v489 = vpack.c.b16 %v465, %v465
      %v490 = vpack.c.b16 %v466, %v466
      %v491 = vpack.c.b16 %v467, %v467
      %v492 = vpack.c.b16 %v468, %v468
      %v493 = vpack.c.b16 %v469, %v469
      %v494 = vpack.c.b16 %v470, %v470
      %v495 = vpack.c.b16 %v471, %v471
      %v496 = vpack.c.b16 %v472, %v472
      %v497 = vpack.c.b16 %v473, %v473
      %v498 = vpack.c.b16 %v474, %v474
      %v499 = vpack.c.b16 %v475, %v475
      %vm524 = vcmask 519168
      %525 = vst.msk [vmem:[#allocation2] sm:$0xf] %vm524, %v476
      %526 = vst.msk [vmem:[#allocation2 + $0x4] sm:$0xf] %vm524, %v477
      %vm527 = vcmask 516096
      %528 = vst.msk [vmem:[#allocation2 + $0x8] sm:$0x1] %vm527, %v478
      %529 = vst.msk [vmem:[#allocation2 + $0xc] sm:$0xf] %vm524, %v479
      %530 = vst.msk [vmem:[#allocation2 + $0x10] sm:$0xf] %vm524, %v480
      %531 = vst.msk [vmem:[#allocation2 + $0x14] sm:$0x1] %vm527, %v481
      %532 = vst.msk [vmem:[#allocation2 + $0x18] sm:$0xf] %vm524, %v482
      %533 = vst.msk [vmem:[#allocation2 + $0x1c] sm:$0xf] %vm524, %v483
      %534 = vst.msk [vmem:[#allocation2 + $0x20] sm:$0x1] %vm527, %v484
      %535 = vst.msk [vmem:[#allocation2 + $0x24] sm:$0xf] %vm524, %v485
      %536 = vst.msk [vmem:[#allocation2 + $0x28] sm:$0xf] %vm524, %v486
      %537 = vst.msk [vmem:[#allocation2 + $0x2c] sm:$0x1] %vm527, %v487
      %538 = vst.msk [vmem:[#allocation2 + $0x30] sm:$0xf] %vm524, %v488
      %539 = vst.msk [vmem:[#allocation2 + $0x34] sm:$0xf] %vm524, %v489
      %540 = vst.msk [vmem:[#allocation2 + $0x38] sm:$0x1] %vm527, %v490
      %541 = vst.msk [vmem:[#allocation2 + $0x3c] sm:$0xf] %vm524, %v491
      %542 = vst.msk [vmem:[#allocation2 + $0x40] sm:$0xf] %vm524, %v492
      %543 = vst.msk [vmem:[#allocation2 + $0x44] sm:$0x1] %vm527, %v493
      %544 = vst.msk [vmem:[#allocation2 + $0x48] sm:$0xf] %vm524, %v494
      %545 = vst.msk [vmem:[#allocation2 + $0x4c] sm:$0xf] %vm524, %v495
      %546 = vst.msk [vmem:[#allocation2 + $0x50] sm:$0x1] %vm527, %v496
      %547 = vst.msk [vmem:[#allocation2 + $0x54] sm:$0xf] %vm524, %v497
      %548 = vst.msk [vmem:[#allocation2 + $0x58] sm:$0xf] %vm524, %v498
      %549 = vst.msk [vmem:[#allocation2 + $0x5c] sm:$0x1] %vm527, %v499
      %v550 = vld [vmem:[%s367] sm:$0xff]
      %v551 = vld [vmem:[%s367 + $0x8] sm:$0xff]
      %v552 = vld [vmem:[%s367 + $0x10] sm:$0x3]
      %v553 = vpack.c.bf16 %v551, %v550
      %v554 = vpack.c.bf16 %v552, %v552
      %v557 = vunpack.c.l.b16 %v553
      %v558 = vunpack.c.h.b16 %v553
      %v559 = vunpack.c.l.b16 %v554
      %v560 = vpack.c.b16 %v557, %v557
      %v561 = vpack.c.b16 %v558, %v558
      %v562 = vpack.c.b16 %v559, %v559
      %s566 = scalar_lea.vmem [#allocation2], 96
      %567 = vst.msk [vmem:[%s566] sm:$0xf] %vm524, %v560
      %568 = vst.msk [vmem:[%s566 + $0x4] sm:$0xf] %vm524, %v561
      %569 = vst.msk [vmem:[%s566 + $0x8] sm:$0x1] %vm527, %v562
      %v570 = vld [vmem:[%s381] sm:$0xff]
      %v571 = vld [vmem:[%s381 + $0x8] sm:$0xff]
      %v572 = vld [vmem:[%s381 + $0x10] sm:$0x3]
      %v573 = vpack.c.bf16 %v571, %v570
      %v574 = vpack.c.bf16 %v572, %v572
      %v577 = vunpack.c.l.b16 %v573
      %v578 = vunpack.c.h.b16 %v573
      %v579 = vunpack.c.l.b16 %v574
      %v580 = vpack.c.b16 %v577, %v577
      %v581 = vpack.c.b16 %v578, %v578
      %v582 = vpack.c.b16 %v579, %v579
      %s586 = scalar_lea.vmem [#allocation2], 108
      %587 = vst.msk [vmem:[%s586] sm:$0xf] %vm524, %v580
      %588 = vst.msk [vmem:[%s586 + $0x4] sm:$0xf] %vm524, %v581
      %589 = vst.msk [vmem:[%s586 + $0x8] sm:$0x1] %vm527, %v582
      %v590 = vld [vmem:[#allocation2] sm:$0xf]
      %v591 = vld [vmem:[#allocation2 + $0x4] sm:$0xf]
      %v592 = vld [vmem:[#allocation2 + $0x8] sm:$0x1]
      %v593 = vld [vmem:[#allocation2 + $0xc] sm:$0xf]
      %v594 = vld [vmem:[#allocation2 + $0x10] sm:$0xf]
      %v595 = vld [vmem:[#allocation2 + $0x14] sm:$0x1]
      %v596 = vld [vmem:[#allocation2 + $0x18] sm:$0xf]
      %v597 = vld [vmem:[#allocation2 + $0x1c] sm:$0xf]
      %v598 = vld [vmem:[#allocation2 + $0x20] sm:$0x1]
      %v599 = vld [vmem:[#allocation2 + $0x24] sm:$0xf]
      %v600 = vld [vmem:[#allocation2 + $0x28] sm:$0xf]
      %v601 = vld [vmem:[#allocation2 + $0x2c] sm:$0x1]
      %v602 = vld [vmem:[#allocation2 + $0x30] sm:$0xf]
      %v603 = vld [vmem:[#allocation2 + $0x34] sm:$0xf]
      %v604 = vld [vmem:[#allocation2 + $0x38] sm:$0x1]
      %v605 = vld [vmem:[#allocation2 + $0x3c] sm:$0xf]
      %v606 = vld [vmem:[#allocation2 + $0x40] sm:$0xf]
      %v607 = vld [vmem:[#allocation2 + $0x44] sm:$0x1]
      %v608 = vld [vmem:[#allocation2 + $0x48] sm:$0xf]
      %v609 = vld [vmem:[#allocation2 + $0x4c] sm:$0xf]
      %v610 = vld [vmem:[#allocation2 + $0x50] sm:$0x1]
      %v611 = vld [vmem:[#allocation2 + $0x54] sm:$0xf]
      %v612 = vld [vmem:[#allocation2 + $0x58] sm:$0xf]
      %v613 = vld [vmem:[#allocation2 + $0x5c] sm:$0x1]
      %v614 = vld [vmem:[#allocation2 + $0x60] sm:$0xf]
      %v615 = vld [vmem:[#allocation2 + $0x64] sm:$0xf]
      %v616 = vld [vmem:[#allocation2 + $0x68] sm:$0x1]
      %v617 = vld [vmem:[#allocation2 + $0x6c] sm:$0xf]
      %v618 = vld [vmem:[#allocation2 + $0x70] sm:$0xf]
      %v619 = vld [vmem:[#allocation2 + $0x74] sm:$0x1]
      %v620 = vld [vmem:[%s3] sm:$0xf]
      %v621 = vld [vmem:[%s3 + $0x4] sm:$0xf]
      %v622 = vld [vmem:[%s3 + $0x8] sm:$0xf]
      %v623 = vld [vmem:[%s3 + $0xc] sm:$0xf]
      %v624 = vld [vmem:[%s3 + $0x10] sm:$0xf]
      %v625 = vld [vmem:[%s3 + $0x14] sm:$0xf]
      %v626 = vld [vmem:[%s3 + $0x18] sm:$0xf]
      %v627 = vld [vmem:[%s3 + $0x1c] sm:$0xf]
      %s628 = scalar_lea.vmem %s3, 96
      %v629 = vld [vmem:[%s628] sm:$0xf]
      %v630 = vld [vmem:[%s628 + $0x4] sm:$0xf]
      %v631 = vld [vmem:[%s628 + $0x8] sm:$0xf]
      %v632 = vld [vmem:[%s628 + $0xc] sm:$0xf]
      %v633 = vld [vmem:[%s628 + $0x10] sm:$0xf]
      %v634 = vld [vmem:[%s628 + $0x14] sm:$0xf]
      %v635 = vld [vmem:[%s628 + $0x18] sm:$0xf]
      %v636 = vld [vmem:[%s628 + $0x1c] sm:$0xf]
      %v653 = vunpack.c.l.b16 %v593
      %v654 = vunpack.c.l.b16 %v594
      %v655 = vunpack.c.l.b16 %v596
      %v656 = vunpack.c.l.b16 %v597
      %v657 = vunpack.c.l.b16 %v599
      %v658 = vunpack.c.l.b16 %v600
      %v659 = vunpack.c.l.b16 %v602
      %v660 = vunpack.c.l.b16 %v603
      %v661 = vunpack.c.l.b16 %v605
      %v662 = vunpack.c.l.b16 %v606
      %v663 = vunpack.c.l.b16 %v608
      %v664 = vunpack.c.l.b16 %v609
      %v665 = vunpack.c.l.b16 %v611
      %v666 = vunpack.c.l.b16 %v612
      %v667 = vunpack.c.l.b16 %v614
      %v668 = vunpack.c.l.b16 %v615
      %v669 = vpack.c.b16 %v654, %v653
      %v670 = vpack.c.b16 %v656, %v655
      %v671 = vpack.c.b16 %v658, %v657
      %v672 = vpack.c.b16 %v660, %v659
      %v673 = vpack.c.b16 %v662, %v661
      %v674 = vpack.c.b16 %v664, %v663
      %v675 = vpack.c.b16 %v666, %v665
      %v676 = vpack.c.b16 %v668, %v667
      %v685 = vunpack.c.l.b16 %v629
      %v686 = vunpack.c.l.b16 %v630
      %v687 = vunpack.c.l.b16 %v631
      %v688 = vunpack.c.l.b16 %v632
      %v689 = vunpack.c.l.b16 %v633
      %v690 = vunpack.c.l.b16 %v634
      %v691 = vunpack.c.l.b16 %v635
      %v692 = vunpack.c.l.b16 %v636
      %v693 = vpack.c.b16 %v686, %v685
      %v694 = vpack.c.b16 %v688, %v687
      %v695 = vpack.c.b16 %v690, %v689
      %v696 = vpack.c.b16 %v692, %v691
      %vm701 = vcmask 523264
      %v703 = vsel %vm701, %v669, 0
      %v706 = vsel %vm701, %v670, 0
      %v709 = vsel %vm701, %v671, 0
      %v712 = vsel %vm701, %v672, 0
      %v715 = vsel %vm701, %v673, 0
      %v718 = vsel %vm701, %v674, 0
      %v721 = vsel %vm701, %v675, 0
      %v724 = vsel %vm701, %v676, 0
      %726 = vmatprep.subr.bf16.mxu0 0
      %727 = vmatpush1.bf16.msra.mxu0 0
      %728 = vmatprep.subr.bf16.mxu0 0
      %729 = vmatpush1.bf16.msra.mxu0 0
      %730 = vmatprep.subr.bf16.mxu0 0
      %731 = vmatpush1.bf16.msra.mxu0 0
      %732 = vmatprep.subr.bf16.mxu0 0
      %733 = vmatpush1.bf16.msra.mxu0 0
      %734 = vmatprep.subr.bf16.mxu0 0
      %735 = vmatpush1.bf16.msra.mxu0 %v696
      %736 = vmatprep.subr.bf16.mxu0 0
      %737 = vmatpush1.bf16.msra.mxu0 %v695
      %738 = vmatprep.subr.bf16.mxu0 0
      %739 = vmatpush1.bf16.msra.mxu0 %v694
      %740 = vmatprep.subr.bf16.mxu0 0
      %741 = vmatpush1.bf16.msra.mxu0 %v693
      %742 = vmatprep.subr.bf16.mxu0 0
      %743 = vmatpush2.bf16.msra.mxu0 0
      %744 = vmatprep.subr.bf16.mxu0 0
      %745 = vmatpush2.bf16.msra.mxu0 0
      %746 = vmatprep.subr.bf16.mxu0 0
      %747 = vmatpush2.bf16.msra.mxu0 0
      %748 = vmatprep.subr.bf16.mxu0 0
      %749 = vmatpush2.bf16.msra.mxu0 0
      %750 = vmatprep.subr.bf16.mxu0 0
      %751 = vmatpush2.bf16.msra.mxu0 0
      %752 = vmatprep.subr.bf16.mxu0 0
      %753 = vmatpush2.bf16.msra.mxu0 0
      %754 = vmatprep.subr.bf16.mxu0 0
      %755 = vmatpush2.bf16.msra.mxu0 0
      %756 = vmatprep.subr.bf16.mxu0 0
      %757 = vmatpush2.bf16.msra.mxu0 0
      %758 = vmatprep.mubr.bf16.mxu0 0
      %759 = vmatmul.mubr.bf16.gmra.mxu0 %v703
      %v760 = vpop.f32.mrf.mxu0
      %v761 = vadd.f32 0.0, %v760
      %v762 = vpop.f32.mrf.mxu0
      %v763 = vpop.f32.mrf.mxu0
      %v764 = vadd.f32 0.0, %v763
      %v765 = vpop.f32.mrf.mxu0
      %766 = vmatprep.mubr.bf16.mxu0 0
      %767 = vmatmul.mubr.bf16.gmra.mxu0 %v706
      %v768 = vpop.f32.mrf.mxu0
      %v769 = vadd.f32 0.0, %v768
      %v770 = vpop.f32.mrf.mxu0
      %v771 = vpop.f32.mrf.mxu0
      %v772 = vadd.f32 0.0, %v771
      %v773 = vpop.f32.mrf.mxu0
      %774 = vmatprep.mubr.bf16.mxu0 0
      %775 = vmatmul.mubr.bf16.gmra.mxu0 %v709
      %v776 = vpop.f32.mrf.mxu0
      %v777 = vadd.f32 0.0, %v776
      %v778 = vpop.f32.mrf.mxu0
      %v779 = vpop.f32.mrf.mxu0
      %v780 = vadd.f32 0.0, %v779
      %v781 = vpop.f32.mrf.mxu0
      %782 = vmatprep.mubr.bf16.mxu0 0
      %783 = vmatmul.mubr.bf16.gmra.mxu0 %v712
      %v784 = vpop.f32.mrf.mxu0
      %v785 = vadd.f32 0.0, %v784
      %v786 = vpop.f32.mrf.mxu0
      %v787 = vpop.f32.mrf.mxu0
      %v788 = vadd.f32 0.0, %v787
      %v789 = vpop.f32.mrf.mxu0
      %790 = vmatprep.mubr.bf16.mxu0 0
      %791 = vmatmul.mubr.bf16.gmra.mxu0 %v715
      %v792 = vpop.f32.mrf.mxu0
      %v793 = vadd.f32 0.0, %v792
      %v794 = vpop.f32.mrf.mxu0
      %v795 = vpop.f32.mrf.mxu0
      %v796 = vadd.f32 0.0, %v795
      %v797 = vpop.f32.mrf.mxu0
      %798 = vmatprep.mubr.bf16.mxu0 0
      %799 = vmatmul.mubr.bf16.gmra.mxu0 %v718
      %v800 = vpop.f32.mrf.mxu0
      %v801 = vadd.f32 0.0, %v800
      %v802 = vpop.f32.mrf.mxu0
      %v803 = vpop.f32.mrf.mxu0
      %v804 = vadd.f32 0.0, %v803
      %v805 = vpop.f32.mrf.mxu0
      %806 = vmatprep.mubr.bf16.mxu0 0
      %807 = vmatmul.mubr.bf16.gmra.mxu0 %v721
      %v808 = vpop.f32.mrf.mxu0
      %v809 = vadd.f32 0.0, %v808
      %v810 = vpop.f32.mrf.mxu0
      %v811 = vpop.f32.mrf.mxu0
      %v812 = vadd.f32 0.0, %v811
      %v813 = vpop.f32.mrf.mxu0
      %814 = vmatprep.mubr.bf16.mxu0 0
      %815 = vmatmul.mubr.bf16.gmra.mxu0 %v724
      %v816 = vpop.f32.mrf.mxu0
      %v817 = vadd.f32 0.0, %v816
      %v818 = vpop.f32.mrf.mxu0
      %v819 = vpop.f32.mrf.mxu0
      %v820 = vadd.f32 0.0, %v819
      %v821 = vpop.f32.mrf.mxu0
      %822 = vdwg.mxu0
      %v825 = vunpack.c.l.b16 %v590
      %v826 = vunpack.c.l.b16 %v591
      %v827 = vpack.c.b16 %v826, %v825
      %v836 = vunpack.c.l.b16 %v620
      %v837 = vunpack.c.l.b16 %v621
      %v838 = vunpack.c.l.b16 %v622
      %v839 = vunpack.c.l.b16 %v623
      %v840 = vunpack.c.l.b16 %v624
      %v841 = vunpack.c.l.b16 %v625
      %v842 = vunpack.c.l.b16 %v626
      %v843 = vunpack.c.l.b16 %v627
      %v844 = vpack.c.b16 %v837, %v836
      %v845 = vpack.c.b16 %v839, %v838
      %v846 = vpack.c.b16 %v841, %v840
      %v847 = vpack.c.b16 %v843, %v842
      %v853 = vsel %vm701, %v827, 0
      %855 = vmatprep.subr.bf16.mxu0 0
      %856 = vmatpush1.bf16.msra.mxu0 0
      %857 = vmatprep.subr.bf16.mxu0 0
      %858 = vmatpush1.bf16.msra.mxu0 0
      %859 = vmatprep.subr.bf16.mxu0 0
      %860 = vmatpush1.bf16.msra.mxu0 0
      %861 = vmatprep.subr.bf16.mxu0 0
      %862 = vmatpush1.bf16.msra.mxu0 0
      %863 = vmatprep.subr.bf16.mxu0 0
      %864 = vmatpush1.bf16.msra.mxu0 %v847
      %865 = vmatprep.subr.bf16.mxu0 0
      %866 = vmatpush1.bf16.msra.mxu0 %v846
      %867 = vmatprep.subr.bf16.mxu0 0
      %868 = vmatpush1.bf16.msra.mxu0 %v845
      %869 = vmatprep.subr.bf16.mxu0 0
      %870 = vmatpush1.bf16.msra.mxu0 %v844
      %871 = vmatprep.subr.bf16.mxu0 0
      %872 = vmatpush2.bf16.msra.mxu0 0
      %873 = vmatprep.subr.bf16.mxu0 0
      %874 = vmatpush2.bf16.msra.mxu0 0
      %875 = vmatprep.subr.bf16.mxu0 0
      %876 = vmatpush2.bf16.msra.mxu0 0
      %877 = vmatprep.subr.bf16.mxu0 0
      %878 = vmatpush2.bf16.msra.mxu0 0
      %879 = vmatprep.subr.bf16.mxu0 0
      %880 = vmatpush2.bf16.msra.mxu0 0
      %881 = vmatprep.subr.bf16.mxu0 0
      %882 = vmatpush2.bf16.msra.mxu0 0
      %883 = vmatprep.subr.bf16.mxu0 0
      %884 = vmatpush2.bf16.msra.mxu0 0
      %885 = vmatprep.subr.bf16.mxu0 0
      %886 = vmatpush2.bf16.msra.mxu0 0
      %887 = vmatprep.mubr.bf16.mxu0 0
      %888 = vmatmul.mubr.bf16.gmra.mxu0 %v853
      %v889 = vpop.f32.mrf.mxu0
      %v890 = vadd.f32 %v761, %v889
      %v891 = vpop.f32.mrf.mxu0
      %v892 = vpop.f32.mrf.mxu0
      %v893 = vadd.f32 %v764, %v892
      %v894 = vpop.f32.mrf.mxu0
      %895 = vmatprep.mubr.bf16.mxu0 0
      %896 = vmatmul.mubr.bf16.gmra.mxu0 %v703
      %v897 = vpop.f32.mrf.mxu0
      %v898 = vadd.f32 %v769, %v897
      %v899 = vpop.f32.mrf.mxu0
      %v900 = vpop.f32.mrf.mxu0
      %v901 = vadd.f32 %v772, %v900
      %v902 = vpop.f32.mrf.mxu0
      %903 = vmatprep.mubr.bf16.mxu0 0
      %904 = vmatmul.mubr.bf16.gmra.mxu0 %v706
      %v905 = vpop.f32.mrf.mxu0
      %v906 = vadd.f32 %v777, %v905
      %v907 = vpop.f32.mrf.mxu0
      %v908 = vpop.f32.mrf.mxu0
      %v909 = vadd.f32 %v780, %v908
      %v910 = vpop.f32.mrf.mxu0
      %911 = vmatprep.mubr.bf16.mxu0 0
      %912 = vmatmul.mubr.bf16.gmra.mxu0 %v709
      %v913 = vpop.f32.mrf.mxu0
      %v914 = vadd.f32 %v785, %v913
      %v915 = vpop.f32.mrf.mxu0
      %v916 = vpop.f32.mrf.mxu0
      %v917 = vadd.f32 %v788, %v916
      %v918 = vpop.f32.mrf.mxu0
      %919 = vmatprep.mubr.bf16.mxu0 0
      %920 = vmatmul.mubr.bf16.gmra.mxu0 %v712
      %v921 = vpop.f32.mrf.mxu0
      %v922 = vadd.f32 %v793, %v921
      %v923 = vpop.f32.mrf.mxu0
      %v924 = vpop.f32.mrf.mxu0
      %v925 = vadd.f32 %v796, %v924
      %v926 = vpop.f32.mrf.mxu0
      %927 = vmatprep.mubr.bf16.mxu0 0
      %928 = vmatmul.mubr.bf16.gmra.mxu0 %v715
      %v929 = vpop.f32.mrf.mxu0
      %v930 = vadd.f32 %v801, %v929
      %v931 = vpop.f32.mrf.mxu0
      %v932 = vpop.f32.mrf.mxu0
      %v933 = vadd.f32 %v804, %v932
      %v934 = vpop.f32.mrf.mxu0
      %935 = vmatprep.mubr.bf16.mxu0 0
      %936 = vmatmul.mubr.bf16.gmra.mxu0 %v718
      %v937 = vpop.f32.mrf.mxu0
      %v938 = vadd.f32 %v809, %v937
      %v939 = vpop.f32.mrf.mxu0
      %v940 = vpop.f32.mrf.mxu0
      %v941 = vadd.f32 %v812, %v940
      %v942 = vpop.f32.mrf.mxu0
      %943 = vmatprep.mubr.bf16.mxu0 0
      %944 = vmatmul.mubr.bf16.gmra.mxu0 %v721
      %v945 = vpop.f32.mrf.mxu0
      %v946 = vadd.f32 %v817, %v945
      %v947 = vpop.f32.mrf.mxu0
      %v948 = vpop.f32.mrf.mxu0
      %v949 = vadd.f32 %v820, %v948
      %v950 = vpop.f32.mrf.mxu0
      %951 = vdwg.mxu0
      %s952 = scalar_lea.vmem %s3, 192
      %v953 = vld [vmem:[%s952] sm:$0xf]
      %v954 = vld [vmem:[%s952 + $0x4] sm:$0xf]
      %v955 = vld [vmem:[%s952 + $0x8] sm:$0xf]
      %v956 = vld [vmem:[%s952 + $0xc] sm:$0xf]
      %v957 = vld [vmem:[%s952 + $0x10] sm:$0xf]
      %v958 = vld [vmem:[%s952 + $0x14] sm:$0xf]
      %v959 = vld [vmem:[%s952 + $0x18] sm:$0xf]
      %v960 = vld [vmem:[%s952 + $0x1c] sm:$0xf]
      %v963 = vunpack.c.l.b16 %v617
      %v964 = vunpack.c.l.b16 %v618
      %v965 = vpack.c.b16 %v964, %v963
      %v974 = vunpack.c.l.b16 %v953
      %v975 = vunpack.c.l.b16 %v954
      %v976 = vunpack.c.l.b16 %v955
      %v977 = vunpack.c.l.b16 %v956
      %v978 = vunpack.c.l.b16 %v957
      %v979 = vunpack.c.l.b16 %v958
      %v980 = vunpack.c.l.b16 %v959
      %v981 = vunpack.c.l.b16 %v960
      %v982 = vpack.c.b16 %v975, %v974
      %v983 = vpack.c.b16 %v977, %v976
      %v984 = vpack.c.b16 %v979, %v978
      %v985 = vpack.c.b16 %v981, %v980
      %v991 = vsel %vm701, %v965, 0
      %993 = vmatprep.subr.bf16.mxu0 0
      %994 = vmatpush1.bf16.msra.mxu0 0
      %995 = vmatprep.subr.bf16.mxu0 0
      %996 = vmatpush1.bf16.msra.mxu0 0
      %997 = vmatprep.subr.bf16.mxu0 0
      %998 = vmatpush1.bf16.msra.mxu0 0
      %999 = vmatprep.subr.bf16.mxu0 0
      %1000 = vmatpush1.bf16.msra.mxu0 0
      %1001 = vmatprep.subr.bf16.mxu0 0
      %1002 = vmatpush1.bf16.msra.mxu0 %v985
      %1003 = vmatprep.subr.bf16.mxu0 0
      %1004 = vmatpush1.bf16.msra.mxu0 %v984
      %1005 = vmatprep.subr.bf16.mxu0 0
      %1006 = vmatpush1.bf16.msra.mxu0 %v983
      %1007 = vmatprep.subr.bf16.mxu0 0
      %1008 = vmatpush1.bf16.msra.mxu0 %v982
      %1009 = vmatprep.subr.bf16.mxu0 0
      %1010 = vmatpush2.bf16.msra.mxu0 0
      %1011 = vmatprep.subr.bf16.mxu0 0
      %1012 = vmatpush2.bf16.msra.mxu0 0
      %1013 = vmatprep.subr.bf16.mxu0 0
      %1014 = vmatpush2.bf16.msra.mxu0 0
      %1015 = vmatprep.subr.bf16.mxu0 0
      %1016 = vmatpush2.bf16.msra.mxu0 0
      %1017 = vmatprep.subr.bf16.mxu0 0
      %1018 = vmatpush2.bf16.msra.mxu0 0
      %1019 = vmatprep.subr.bf16.mxu0 0
      %1020 = vmatpush2.bf16.msra.mxu0 0
      %1021 = vmatprep.subr.bf16.mxu0 0
      %1022 = vmatpush2.bf16.msra.mxu0 0
      %1023 = vmatprep.subr.bf16.mxu0 0
      %1024 = vmatpush2.bf16.msra.mxu0 0
      %1025 = vmatprep.mubr.bf16.mxu0 0
      %1026 = vmatmul.mubr.bf16.gmra.mxu0 %v706
      %v1027 = vpop.f32.mrf.mxu0
      %v1028 = vadd.f32 0.0, %v1027
      %v1029 = vpop.f32.mrf.mxu0
      %v1030 = vpop.f32.mrf.mxu0
      %v1031 = vadd.f32 0.0, %v1030
      %v1032 = vpop.f32.mrf.mxu0
      %1033 = vmatprep.mubr.bf16.mxu0 0
      %1034 = vmatmul.mubr.bf16.gmra.mxu0 %v709
      %v1035 = vpop.f32.mrf.mxu0
      %v1036 = vadd.f32 0.0, %v1035
      %v1037 = vpop.f32.mrf.mxu0
      %v1038 = vpop.f32.mrf.mxu0
      %v1039 = vadd.f32 0.0, %v1038
      %v1040 = vpop.f32.mrf.mxu0
      %1041 = vmatprep.mubr.bf16.mxu0 0
      %1042 = vmatmul.mubr.bf16.gmra.mxu0 %v712
      %v1043 = vpop.f32.mrf.mxu0
      %v1044 = vadd.f32 0.0, %v1043
      %v1045 = vpop.f32.mrf.mxu0
      %v1046 = vpop.f32.mrf.mxu0
      %v1047 = vadd.f32 0.0, %v1046
      %v1048 = vpop.f32.mrf.mxu0
      %1049 = vmatprep.mubr.bf16.mxu0 0
      %1050 = vmatmul.mubr.bf16.gmra.mxu0 %v715
      %v1051 = vpop.f32.mrf.mxu0
      %v1052 = vadd.f32 0.0, %v1051
      %v1053 = vpop.f32.mrf.mxu0
      %v1054 = vpop.f32.mrf.mxu0
      %v1055 = vadd.f32 0.0, %v1054
      %v1056 = vpop.f32.mrf.mxu0
      %1057 = vmatprep.mubr.bf16.mxu0 0
      %1058 = vmatmul.mubr.bf16.gmra.mxu0 %v718
      %v1059 = vpop.f32.mrf.mxu0
      %v1060 = vadd.f32 0.0, %v1059
      %v1061 = vpop.f32.mrf.mxu0
      %v1062 = vpop.f32.mrf.mxu0
      %v1063 = vadd.f32 0.0, %v1062
      %v1064 = vpop.f32.mrf.mxu0
      %1065 = vmatprep.mubr.bf16.mxu0 0
      %1066 = vmatmul.mubr.bf16.gmra.mxu0 %v721
      %v1067 = vpop.f32.mrf.mxu0
      %v1068 = vadd.f32 0.0, %v1067
      %v1069 = vpop.f32.mrf.mxu0
      %v1070 = vpop.f32.mrf.mxu0
      %v1071 = vadd.f32 0.0, %v1070
      %v1072 = vpop.f32.mrf.mxu0
      %1073 = vmatprep.mubr.bf16.mxu0 0
      %1074 = vmatmul.mubr.bf16.gmra.mxu0 %v724
      %v1075 = vpop.f32.mrf.mxu0
      %v1076 = vadd.f32 0.0, %v1075
      %v1077 = vpop.f32.mrf.mxu0
      %v1078 = vpop.f32.mrf.mxu0
      %v1079 = vadd.f32 0.0, %v1078
      %v1080 = vpop.f32.mrf.mxu0
      %1081 = vmatprep.mubr.bf16.mxu0 0
      %1082 = vmatmul.mubr.bf16.gmra.mxu0 %v991
      %v1083 = vpop.f32.mrf.mxu0
      %v1084 = vadd.f32 0.0, %v1083
      %v1085 = vpop.f32.mrf.mxu0
      %v1086 = vpop.f32.mrf.mxu0
      %v1087 = vadd.f32 0.0, %v1086
      %v1088 = vpop.f32.mrf.mxu0
      %1089 = vdwg.mxu0
      %v1090 = vadd.f32 %v890, %v1028
      %v1091 = vadd.f32 %v893, %v1031
      %v1092 = vadd.f32 %v898, %v1036
      %v1093 = vadd.f32 %v901, %v1039
      %v1094 = vadd.f32 %v906, %v1044
      %v1095 = vadd.f32 %v909, %v1047
      %v1096 = vadd.f32 %v914, %v1052
      %v1097 = vadd.f32 %v917, %v1055
      %v1098 = vadd.f32 %v922, %v1060
      %v1099 = vadd.f32 %v925, %v1063
      %v1100 = vadd.f32 %v930, %v1068
      %v1101 = vadd.f32 %v933, %v1071
      %v1102 = vadd.f32 %v938, %v1076
      %v1103 = vadd.f32 %v941, %v1079
      %v1104 = vadd.f32 %v946, %v1084
      %v1105 = vadd.f32 %v949, %v1087
      %vm1106 = vsmask.f32 3328
      %vm1107 = vsmask.f32 7440
      %vm1108 = vmor %vm1106, %vm1107
      %v1110 = vshrl.u32 %v590, 16
      %v1112 = vrot.slane %v1110, 4
      %v1113 = vshll.u32 %v590, 16
      %v1115 = vrot.slane %v1113, 5
      %v1116 = vor.u32 %v1112, %v1115
      %v1117 = vrot.slane %v1116, 4
      %v1119 = vshll.u32 %v591, 16
      %v1121 = vrot.slane %v1119, 5
      %v1122 = vsel %vm1108, %v1117, %v1121
      %v1123 = vshrl.u32 %v591, 16
      %v1125 = vrot.slane %v1123, 4
      %v1126 = vor.u32 %v1125, %v1121
      %v1127 = vrot.slane %v1126, 4
      %v1129 = vshll.u32 %v592, 16
      %v1131 = vrot.slane %v1129, 5
      %v1132 = vsel %vm1108, %v1127, %v1131
      %v1134 = vshrl.u32 %v593, 16
      %v1136 = vrot.slane %v1134, 4
      %v1137 = vshll.u32 %v593, 16
      %v1139 = vrot.slane %v1137, 5
      %v1140 = vor.u32 %v1136, %v1139
      %v1141 = vrot.slane %v1140, 4
      %v1143 = vshll.u32 %v594, 16
      %v1145 = vrot.slane %v1143, 5
      %v1146 = vsel %vm1108, %v1141, %v1145
      %v1147 = vshrl.u32 %v594, 16
      %v1149 = vrot.slane %v1147, 4
      %v1150 = vor.u32 %v1149, %v1145
      %v1151 = vrot.slane %v1150, 4
      %v1153 = vshll.u32 %v595, 16
      %v1155 = vrot.slane %v1153, 5
      %v1156 = vsel %vm1108, %v1151, %v1155
      %v1158 = vshrl.u32 %v596, 16
      %v1160 = vrot.slane %v1158, 4
      %v1161 = vshll.u32 %v596, 16
      %v1163 = vrot.slane %v1161, 5
      %v1164 = vor.u32 %v1160, %v1163
      %v1165 = vrot.slane %v1164, 4
      %v1167 = vshll.u32 %v597, 16
      %v1169 = vrot.slane %v1167, 5
      %v1170 = vsel %vm1108, %v1165, %v1169
      %v1171 = vshrl.u32 %v597, 16
      %v1173 = vrot.slane %v1171, 4
      %v1174 = vor.u32 %v1173, %v1169
      %v1175 = vrot.slane %v1174, 4
      %v1177 = vshll.u32 %v598, 16
      %v1179 = vrot.slane %v1177, 5
      %v1180 = vsel %vm1108, %v1175, %v1179
      %v1182 = vshrl.u32 %v599, 16
      %v1184 = vrot.slane %v1182, 4
      %v1185 = vshll.u32 %v599, 16
      %v1187 = vrot.slane %v1185, 5
      %v1188 = vor.u32 %v1184, %v1187
      %v1189 = vrot.slane %v1188, 4
      %v1191 = vshll.u32 %v600, 16
      %v1193 = vrot.slane %v1191, 5
      %v1194 = vsel %vm1108, %v1189, %v1193
      %v1195 = vshrl.u32 %v600, 16
      %v1197 = vrot.slane %v1195, 4
      %v1198 = vor.u32 %v1197, %v1193
      %v1199 = vrot.slane %v1198, 4
      %v1201 = vshll.u32 %v601, 16
      %v1203 = vrot.slane %v1201, 5
      %v1204 = vsel %vm1108, %v1199, %v1203
      %v1206 = vshrl.u32 %v602, 16
      %v1208 = vrot.slane %v1206, 4
      %v1209 = vshll.u32 %v602, 16
      %v1211 = vrot.slane %v1209, 5
      %v1212 = vor.u32 %v1208, %v1211
      %v1213 = vrot.slane %v1212, 4
      %v1215 = vshll.u32 %v603, 16
      %v1217 = vrot.slane %v1215, 5
      %v1218 = vsel %vm1108, %v1213, %v1217
      %v1219 = vshrl.u32 %v603, 16
      %v1221 = vrot.slane %v1219, 4
      %v1222 = vor.u32 %v1221, %v1217
      %v1223 = vrot.slane %v1222, 4
      %v1225 = vshll.u32 %v604, 16
      %v1227 = vrot.slane %v1225, 5
      %v1228 = vsel %vm1108, %v1223, %v1227
      %v1230 = vshrl.u32 %v605, 16
      %v1232 = vrot.slane %v1230, 4
      %v1233 = vshll.u32 %v605, 16
      %v1235 = vrot.slane %v1233, 5
      %v1236 = vor.u32 %v1232, %v1235
      %v1237 = vrot.slane %v1236, 4
      %v1239 = vshll.u32 %v606, 16
      %v1241 = vrot.slane %v1239, 5
      %v1242 = vsel %vm1108, %v1237, %v1241
      %v1243 = vshrl.u32 %v606, 16
      %v1245 = vrot.slane %v1243, 4
      %v1246 = vor.u32 %v1245, %v1241
      %v1247 = vrot.slane %v1246, 4
      %v1249 = vshll.u32 %v607, 16
      %v1251 = vrot.slane %v1249, 5
      %v1252 = vsel %vm1108, %v1247, %v1251
      %v1254 = vshrl.u32 %v608, 16
      %v1256 = vrot.slane %v1254, 4
      %v1257 = vshll.u32 %v608, 16
      %v1259 = vrot.slane %v1257, 5
      %v1260 = vor.u32 %v1256, %v1259
      %v1261 = vrot.slane %v1260, 4
      %v1263 = vshll.u32 %v609, 16
      %v1265 = vrot.slane %v1263, 5
      %v1266 = vsel %vm1108, %v1261, %v1265
      %v1267 = vshrl.u32 %v609, 16
      %v1269 = vrot.slane %v1267, 4
      %v1270 = vor.u32 %v1269, %v1265
      %v1271 = vrot.slane %v1270, 4
      %v1273 = vshll.u32 %v610, 16
      %v1275 = vrot.slane %v1273, 5
      %v1276 = vsel %vm1108, %v1271, %v1275
      %v1278 = vshrl.u32 %v611, 16
      %v1280 = vrot.slane %v1278, 4
      %v1281 = vshll.u32 %v611, 16
      %v1283 = vrot.slane %v1281, 5
      %v1284 = vor.u32 %v1280, %v1283
      %v1285 = vrot.slane %v1284, 4
      %v1287 = vshll.u32 %v612, 16
      %v1289 = vrot.slane %v1287, 5
      %v1290 = vsel %vm1108, %v1285, %v1289
      %v1291 = vshrl.u32 %v612, 16
      %v1293 = vrot.slane %v1291, 4
      %v1294 = vor.u32 %v1293, %v1289
      %v1295 = vrot.slane %v1294, 4
      %v1297 = vshll.u32 %v613, 16
      %v1299 = vrot.slane %v1297, 5
      %v1300 = vsel %vm1108, %v1295, %v1299
      %s1301 = scalar_lea.vmem %s3, 32
      %v1302 = vld [vmem:[%s1301] sm:$0xf]
      %v1303 = vld [vmem:[%s1301 + $0x4] sm:$0xf]
      %v1304 = vld [vmem:[%s1301 + $0x8] sm:$0xf]
      %v1305 = vld [vmem:[%s1301 + $0xc] sm:$0xf]
      %v1306 = vld [vmem:[%s1301 + $0x10] sm:$0xf]
      %v1307 = vld [vmem:[%s1301 + $0x14] sm:$0xf]
      %v1308 = vld [vmem:[%s1301 + $0x18] sm:$0xf]
      %v1309 = vld [vmem:[%s1301 + $0x1c] sm:$0xf]
      %v1310 = vunpack.c.l.b16 %v1122
      %v1311 = vunpack.c.l.b16 %v1132
      %v1312 = vunpack.c.l.b16 %v1146
      %v1313 = vunpack.c.l.b16 %v1156
      %v1314 = vunpack.c.l.b16 %v1170
      %v1315 = vunpack.c.l.b16 %v1180
      %v1316 = vunpack.c.l.b16 %v1194
      %v1317 = vunpack.c.l.b16 %v1204
      %v1318 = vunpack.c.l.b16 %v1218
      %v1319 = vunpack.c.l.b16 %v1228
      %v1320 = vunpack.c.l.b16 %v1242
      %v1321 = vunpack.c.l.b16 %v1252
      %v1322 = vunpack.c.l.b16 %v1266
      %v1323 = vunpack.c.l.b16 %v1276
      %v1324 = vunpack.c.l.b16 %v1290
      %v1325 = vunpack.c.l.b16 %v1300
      %v1326 = vpack.c.b16 %v1311, %v1310
      %v1327 = vpack.c.b16 %v1313, %v1312
      %v1328 = vpack.c.b16 %v1315, %v1314
      %v1329 = vpack.c.b16 %v1317, %v1316
      %v1330 = vpack.c.b16 %v1319, %v1318
      %v1331 = vpack.c.b16 %v1321, %v1320
      %v1332 = vpack.c.b16 %v1323, %v1322
      %v1333 = vpack.c.b16 %v1325, %v1324
      %v1342 = vunpack.c.l.b16 %v1302
      %v1343 = vunpack.c.l.b16 %v1303
      %v1344 = vunpack.c.l.b16 %v1304
      %v1345 = vunpack.c.l.b16 %v1305
      %v1346 = vunpack.c.l.b16 %v1306
      %v1347 = vunpack.c.l.b16 %v1307
      %v1348 = vunpack.c.l.b16 %v1308
      %v1349 = vunpack.c.l.b16 %v1309
      %v1350 = vpack.c.b16 %v1343, %v1342
      %v1351 = vpack.c.b16 %v1345, %v1344
      %v1352 = vpack.c.b16 %v1347, %v1346
      %v1353 = vpack.c.b16 %v1349, %v1348
      %v1359 = vsel %vm701, %v1326, 0
      %v1362 = vsel %vm701, %v1327, 0
      %v1365 = vsel %vm701, %v1328, 0
      %v1368 = vsel %vm701, %v1329, 0
      %v1371 = vsel %vm701, %v1330, 0
      %v1374 = vsel %vm701, %v1331, 0
      %v1377 = vsel %vm701, %v1332, 0
      %v1380 = vsel %vm701, %v1333, 0
      %1382 = vmatprep.subr.bf16.mxu0 0
      %1383 = vmatpush1.bf16.msra.mxu0 0
      %1384 = vmatprep.subr.bf16.mxu0 0
      %1385 = vmatpush1.bf16.msra.mxu0 0
      %1386 = vmatprep.subr.bf16.mxu0 0
      %1387 = vmatpush1.bf16.msra.mxu0 0
      %1388 = vmatprep.subr.bf16.mxu0 0
      %1389 = vmatpush1.bf16.msra.mxu0 0
      %1390 = vmatprep.subr.bf16.mxu0 0
      %1391 = vmatpush1.bf16.msra.mxu0 %v1353
      %1392 = vmatprep.subr.bf16.mxu0 0
      %1393 = vmatpush1.bf16.msra.mxu0 %v1352
      %1394 = vmatprep.subr.bf16.mxu0 0
      %1395 = vmatpush1.bf16.msra.mxu0 %v1351
      %1396 = vmatprep.subr.bf16.mxu0 0
      %1397 = vmatpush1.bf16.msra.mxu0 %v1350
      %1398 = vmatprep.subr.bf16.mxu0 0
      %1399 = vmatpush2.bf16.msra.mxu0 0
      %1400 = vmatprep.subr.bf16.mxu0 0
      %1401 = vmatpush2.bf16.msra.mxu0 0
      %1402 = vmatprep.subr.bf16.mxu0 0
      %1403 = vmatpush2.bf16.msra.mxu0 0
      %1404 = vmatprep.subr.bf16.mxu0 0
      %1405 = vmatpush2.bf16.msra.mxu0 0
      %1406 = vmatprep.subr.bf16.mxu0 0
      %1407 = vmatpush2.bf16.msra.mxu0 0
      %1408 = vmatprep.subr.bf16.mxu0 0
      %1409 = vmatpush2.bf16.msra.mxu0 0
      %1410 = vmatprep.subr.bf16.mxu0 0
      %1411 = vmatpush2.bf16.msra.mxu0 0
      %1412 = vmatprep.subr.bf16.mxu0 0
      %1413 = vmatpush2.bf16.msra.mxu0 0
      %1414 = vmatprep.mubr.bf16.mxu0 0
      %1415 = vmatmul.mubr.bf16.gmra.mxu0 %v1359
      %v1416 = vpop.f32.mrf.mxu0
      %v1417 = vadd.f32 0.0, %v1416
      %v1418 = vpop.f32.mrf.mxu0
      %v1419 = vpop.f32.mrf.mxu0
      %v1420 = vadd.f32 0.0, %v1419
      %v1421 = vpop.f32.mrf.mxu0
      %1422 = vmatprep.mubr.bf16.mxu0 0
      %1423 = vmatmul.mubr.bf16.gmra.mxu0 %v1362
      %v1424 = vpop.f32.mrf.mxu0
      %v1425 = vadd.f32 0.0, %v1424
      %v1426 = vpop.f32.mrf.mxu0
      %v1427 = vpop.f32.mrf.mxu0
      %v1428 = vadd.f32 0.0, %v1427
      %v1429 = vpop.f32.mrf.mxu0
      %1430 = vmatprep.mubr.bf16.mxu0 0
      %1431 = vmatmul.mubr.bf16.gmra.mxu0 %v1365
      %v1432 = vpop.f32.mrf.mxu0
      %v1433 = vadd.f32 0.0, %v1432
      %v1434 = vpop.f32.mrf.mxu0
      %v1435 = vpop.f32.mrf.mxu0
      %v1436 = vadd.f32 0.0, %v1435
      %v1437 = vpop.f32.mrf.mxu0
      %1438 = vmatprep.mubr.bf16.mxu0 0
      %1439 = vmatmul.mubr.bf16.gmra.mxu0 %v1368
      %v1440 = vpop.f32.mrf.mxu0
      %v1441 = vadd.f32 0.0, %v1440
      %v1442 = vpop.f32.mrf.mxu0
      %v1443 = vpop.f32.mrf.mxu0
      %v1444 = vadd.f32 0.0, %v1443
      %v1445 = vpop.f32.mrf.mxu0
      %1446 = vmatprep.mubr.bf16.mxu0 0
      %1447 = vmatmul.mubr.bf16.gmra.mxu0 %v1371
      %v1448 = vpop.f32.mrf.mxu0
      %v1449 = vadd.f32 0.0, %v1448
      %v1450 = vpop.f32.mrf.mxu0
      %v1451 = vpop.f32.mrf.mxu0
      %v1452 = vadd.f32 0.0, %v1451
      %v1453 = vpop.f32.mrf.mxu0
      %1454 = vmatprep.mubr.bf16.mxu0 0
      %1455 = vmatmul.mubr.bf16.gmra.mxu0 %v1374
      %v1456 = vpop.f32.mrf.mxu0
      %v1457 = vadd.f32 0.0, %v1456
      %v1458 = vpop.f32.mrf.mxu0
      %v1459 = vpop.f32.mrf.mxu0
      %v1460 = vadd.f32 0.0, %v1459
      %v1461 = vpop.f32.mrf.mxu0
      %1462 = vmatprep.mubr.bf16.mxu0 0
      %1463 = vmatmul.mubr.bf16.gmra.mxu0 %v1377
      %v1464 = vpop.f32.mrf.mxu0
      %v1465 = vadd.f32 0.0, %v1464
      %v1466 = vpop.f32.mrf.mxu0
      %v1467 = vpop.f32.mrf.mxu0
      %v1468 = vadd.f32 0.0, %v1467
      %v1469 = vpop.f32.mrf.mxu0
      %1470 = vmatprep.mubr.bf16.mxu0 0
      %1471 = vmatmul.mubr.bf16.gmra.mxu0 %v1380
      %v1472 = vpop.f32.mrf.mxu0
      %v1473 = vadd.f32 0.0, %v1472
      %v1474 = vpop.f32.mrf.mxu0
      %v1475 = vpop.f32.mrf.mxu0
      %v1476 = vadd.f32 0.0, %v1475
      %v1477 = vpop.f32.mrf.mxu0
      %1478 = vdwg.mxu0
      %v1479 = vadd.f32 %v1090, %v1417
      %v1480 = vadd.f32 %v1091, %v1420
      %v1481 = vadd.f32 %v1092, %v1425
      %v1482 = vadd.f32 %v1093, %v1428
      %v1483 = vadd.f32 %v1094, %v1433
      %v1484 = vadd.f32 %v1095, %v1436
      %v1485 = vadd.f32 %v1096, %v1441
      %v1486 = vadd.f32 %v1097, %v1444
      %v1487 = vadd.f32 %v1098, %v1449
      %v1488 = vadd.f32 %v1099, %v1452
      %v1489 = vadd.f32 %v1100, %v1457
      %v1490 = vadd.f32 %v1101, %v1460
      %v1491 = vadd.f32 %v1102, %v1465
      %v1492 = vadd.f32 %v1103, %v1468
      %v1493 = vadd.f32 %v1104, %v1473
      %v1494 = vadd.f32 %v1105, %v1476
      %v1496 = vshrl.u32 %v614, 16
      %v1498 = vrot.slane %v1496, 4
      %v1499 = vshll.u32 %v614, 16
      %v1501 = vrot.slane %v1499, 5
      %v1502 = vor.u32 %v1498, %v1501
      %v1503 = vrot.slane %v1502, 4
      %v1505 = vshll.u32 %v615, 16
      %v1507 = vrot.slane %v1505, 5
      %v1508 = vsel %vm1108, %v1503, %v1507
      %v1509 = vshrl.u32 %v615, 16
      %v1511 = vrot.slane %v1509, 4
      %v1512 = vor.u32 %v1511, %v1507
      %v1513 = vrot.slane %v1512, 4
      %v1515 = vshll.u32 %v616, 16
      %v1517 = vrot.slane %v1515, 5
      %v1518 = vsel %vm1108, %v1513, %v1517
      %s1519 = scalar_lea.vmem %s3, 128
      %v1520 = vld [vmem:[%s1519] sm:$0xf]
      %v1521 = vld [vmem:[%s1519 + $0x4] sm:$0xf]
      %v1522 = vld [vmem:[%s1519 + $0x8] sm:$0xf]
      %v1523 = vld [vmem:[%s1519 + $0xc] sm:$0xf]
      %v1524 = vld [vmem:[%s1519 + $0x10] sm:$0xf]
      %v1525 = vld [vmem:[%s1519 + $0x14] sm:$0xf]
      %v1526 = vld [vmem:[%s1519 + $0x18] sm:$0xf]
      %v1527 = vld [vmem:[%s1519 + $0x1c] sm:$0xf]
      %v1528 = vunpack.c.l.b16 %v1508
      %v1529 = vunpack.c.l.b16 %v1518
      %v1530 = vpack.c.b16 %v1529, %v1528
      %v1539 = vunpack.c.l.b16 %v1520
      %v1540 = vunpack.c.l.b16 %v1521
      %v1541 = vunpack.c.l.b16 %v1522
      %v1542 = vunpack.c.l.b16 %v1523
      %v1543 = vunpack.c.l.b16 %v1524
      %v1544 = vunpack.c.l.b16 %v1525
      %v1545 = vunpack.c.l.b16 %v1526
      %v1546 = vunpack.c.l.b16 %v1527
      %v1547 = vpack.c.b16 %v1540, %v1539
      %v1548 = vpack.c.b16 %v1542, %v1541
      %v1549 = vpack.c.b16 %v1544, %v1543
      %v1550 = vpack.c.b16 %v1546, %v1545
      %v1556 = vsel %vm701, %v1530, 0
      %1558 = vmatprep.subr.bf16.mxu0 0
      %1559 = vmatpush1.bf16.msra.mxu0 0
      %1560 = vmatprep.subr.bf16.mxu0 0
      %1561 = vmatpush1.bf16.msra.mxu0 0
      %1562 = vmatprep.subr.bf16.mxu0 0
      %1563 = vmatpush1.bf16.msra.mxu0 0
      %1564 = vmatprep.subr.bf16.mxu0 0
      %1565 = vmatpush1.bf16.msra.mxu0 0
      %1566 = vmatprep.subr.bf16.mxu0 0
      %1567 = vmatpush1.bf16.msra.mxu0 %v1550
      %1568 = vmatprep.subr.bf16.mxu0 0
      %1569 = vmatpush1.bf16.msra.mxu0 %v1549
      %1570 = vmatprep.subr.bf16.mxu0 0
      %1571 = vmatpush1.bf16.msra.mxu0 %v1548
      %1572 = vmatprep.subr.bf16.mxu0 0
      %1573 = vmatpush1.bf16.msra.mxu0 %v1547
      %1574 = vmatprep.subr.bf16.mxu0 0
      %1575 = vmatpush2.bf16.msra.mxu0 0
      %1576 = vmatprep.subr.bf16.mxu0 0
      %1577 = vmatpush2.bf16.msra.mxu0 0
      %1578 = vmatprep.subr.bf16.mxu0 0
      %1579 = vmatpush2.bf16.msra.mxu0 0
      %1580 = vmatprep.subr.bf16.mxu0 0
      %1581 = vmatpush2.bf16.msra.mxu0 0
      %1582 = vmatprep.subr.bf16.mxu0 0
      %1583 = vmatpush2.bf16.msra.mxu0 0
      %1584 = vmatprep.subr.bf16.mxu0 0
      %1585 = vmatpush2.bf16.msra.mxu0 0
      %1586 = vmatprep.subr.bf16.mxu0 0
      %1587 = vmatpush2.bf16.msra.mxu0 0
      %1588 = vmatprep.subr.bf16.mxu0 0
      %1589 = vmatpush2.bf16.msra.mxu0 0
      %1590 = vmatprep.mubr.bf16.mxu0 0
      %1591 = vmatmul.mubr.bf16.gmra.mxu0 %v1362
      %v1592 = vpop.f32.mrf.mxu0
      %v1593 = vadd.f32 0.0, %v1592
      %v1594 = vpop.f32.mrf.mxu0
      %v1595 = vpop.f32.mrf.mxu0
      %v1596 = vadd.f32 0.0, %v1595
      %v1597 = vpop.f32.mrf.mxu0
      %1598 = vmatprep.mubr.bf16.mxu0 0
      %1599 = vmatmul.mubr.bf16.gmra.mxu0 %v1365
      %v1600 = vpop.f32.mrf.mxu0
      %v1601 = vadd.f32 0.0, %v1600
      %v1602 = vpop.f32.mrf.mxu0
      %v1603 = vpop.f32.mrf.mxu0
      %v1604 = vadd.f32 0.0, %v1603
      %v1605 = vpop.f32.mrf.mxu0
      %1606 = vmatprep.mubr.bf16.mxu0 0
      %1607 = vmatmul.mubr.bf16.gmra.mxu0 %v1368
      %v1608 = vpop.f32.mrf.mxu0
      %v1609 = vadd.f32 0.0, %v1608
      %v1610 = vpop.f32.mrf.mxu0
      %v1611 = vpop.f32.mrf.mxu0
      %v1612 = vadd.f32 0.0, %v1611
      %v1613 = vpop.f32.mrf.mxu0
      %1614 = vmatprep.mubr.bf16.mxu0 0
      %1615 = vmatmul.mubr.bf16.gmra.mxu0 %v1371
      %v1616 = vpop.f32.mrf.mxu0
      %v1617 = vadd.f32 0.0, %v1616
      %v1618 = vpop.f32.mrf.mxu0
      %v1619 = vpop.f32.mrf.mxu0
      %v1620 = vadd.f32 0.0, %v1619
      %v1621 = vpop.f32.mrf.mxu0
      %1622 = vmatprep.mubr.bf16.mxu0 0
      %1623 = vmatmul.mubr.bf16.gmra.mxu0 %v1374
      %v1624 = vpop.f32.mrf.mxu0
      %v1625 = vadd.f32 0.0, %v1624
      %v1626 = vpop.f32.mrf.mxu0
      %v1627 = vpop.f32.mrf.mxu0
      %v1628 = vadd.f32 0.0, %v1627
      %v1629 = vpop.f32.mrf.mxu0
      %1630 = vmatprep.mubr.bf16.mxu0 0
      %1631 = vmatmul.mubr.bf16.gmra.mxu0 %v1377
      %v1632 = vpop.f32.mrf.mxu0
      %v1633 = vadd.f32 0.0, %v1632
      %v1634 = vpop.f32.mrf.mxu0
      %v1635 = vpop.f32.mrf.mxu0
      %v1636 = vadd.f32 0.0, %v1635
      %v1637 = vpop.f32.mrf.mxu0
      %1638 = vmatprep.mubr.bf16.mxu0 0
      %1639 = vmatmul.mubr.bf16.gmra.mxu0 %v1380
      %v1640 = vpop.f32.mrf.mxu0
      %v1641 = vadd.f32 0.0, %v1640
      %v1642 = vpop.f32.mrf.mxu0
      %v1643 = vpop.f32.mrf.mxu0
      %v1644 = vadd.f32 0.0, %v1643
      %v1645 = vpop.f32.mrf.mxu0
      %1646 = vmatprep.mubr.bf16.mxu0 0
      %1647 = vmatmul.mubr.bf16.gmra.mxu0 %v1556
      %v1648 = vpop.f32.mrf.mxu0
      %v1649 = vadd.f32 0.0, %v1648
      %v1650 = vpop.f32.mrf.mxu0
      %v1651 = vpop.f32.mrf.mxu0
      %v1652 = vadd.f32 0.0, %v1651
      %v1653 = vpop.f32.mrf.mxu0
      %1654 = vdwg.mxu0
      %v1655 = vadd.f32 %v1479, %v1593
      %v1656 = vadd.f32 %v1480, %v1596
      %v1657 = vadd.f32 %v1481, %v1601
      %v1658 = vadd.f32 %v1482, %v1604
      %v1659 = vadd.f32 %v1483, %v1609
      %v1660 = vadd.f32 %v1484, %v1612
      %v1661 = vadd.f32 %v1485, %v1617
      %v1662 = vadd.f32 %v1486, %v1620
      %v1663 = vadd.f32 %v1487, %v1625
      %v1664 = vadd.f32 %v1488, %v1628
      %v1665 = vadd.f32 %v1489, %v1633
      %v1666 = vadd.f32 %v1490, %v1636
      %v1667 = vadd.f32 %v1491, %v1641
      %v1668 = vadd.f32 %v1492, %v1644
      %v1669 = vadd.f32 %v1493, %v1649
      %v1670 = vadd.f32 %v1494, %v1652
      %v1672 = vshrl.u32 %v617, 16
      %v1674 = vrot.slane %v1672, 4
      %v1675 = vshll.u32 %v617, 16
      %v1677 = vrot.slane %v1675, 5
      %v1678 = vor.u32 %v1674, %v1677
      %v1679 = vrot.slane %v1678, 4
      %v1681 = vshll.u32 %v618, 16
      %v1683 = vrot.slane %v1681, 5
      %v1684 = vsel %vm1108, %v1679, %v1683
      %v1685 = vshrl.u32 %v618, 16
      %v1687 = vrot.slane %v1685, 4
      %v1688 = vor.u32 %v1687, %v1683
      %v1689 = vrot.slane %v1688, 4
      %v1691 = vshll.u32 %v619, 16
      %v1693 = vrot.slane %v1691, 5
      %v1694 = vsel %vm1108, %v1689, %v1693
      %s1695 = scalar_lea.vmem %s3, 224
      %v1696 = vld [vmem:[%s1695] sm:$0xf]
      %v1697 = vld [vmem:[%s1695 + $0x4] sm:$0xf]
      %v1698 = vld [vmem:[%s1695 + $0x8] sm:$0xf]
      %v1699 = vld [vmem:[%s1695 + $0xc] sm:$0xf]
      %v1700 = vld [vmem:[%s1695 + $0x10] sm:$0xf]
      %v1701 = vld [vmem:[%s1695 + $0x14] sm:$0xf]
      %v1702 = vld [vmem:[%s1695 + $0x18] sm:$0xf]
      %v1703 = vld [vmem:[%s1695 + $0x1c] sm:$0xf]
      %v1704 = vunpack.c.l.b16 %v1684
      %v1705 = vunpack.c.l.b16 %v1694
      %v1706 = vpack.c.b16 %v1705, %v1704
      %v1715 = vunpack.c.l.b16 %v1696
      %v1716 = vunpack.c.l.b16 %v1697
      %v1717 = vunpack.c.l.b16 %v1698
      %v1718 = vunpack.c.l.b16 %v1699
      %v1719 = vunpack.c.l.b16 %v1700
      %v1720 = vunpack.c.l.b16 %v1701
      %v1721 = vunpack.c.l.b16 %v1702
      %v1722 = vunpack.c.l.b16 %v1703
      %v1723 = vpack.c.b16 %v1716, %v1715
      %v1724 = vpack.c.b16 %v1718, %v1717
      %v1725 = vpack.c.b16 %v1720, %v1719
      %v1726 = vpack.c.b16 %v1722, %v1721
      %v1732 = vsel %vm701, %v1706, 0
      %1734 = vmatprep.subr.bf16.mxu0 0
      %1735 = vmatpush1.bf16.msra.mxu0 0
      %1736 = vmatprep.subr.bf16.mxu0 0
      %1737 = vmatpush1.bf16.msra.mxu0 0
      %1738 = vmatprep.subr.bf16.mxu0 0
      %1739 = vmatpush1.bf16.msra.mxu0 0
      %1740 = vmatprep.subr.bf16.mxu0 0
      %1741 = vmatpush1.bf16.msra.mxu0 0
      %1742 = vmatprep.subr.bf16.mxu0 0
      %1743 = vmatpush1.bf16.msra.mxu0 %v1726
      %1744 = vmatprep.subr.bf16.mxu0 0
      %1745 = vmatpush1.bf16.msra.mxu0 %v1725
      %1746 = vmatprep.subr.bf16.mxu0 0
      %1747 = vmatpush1.bf16.msra.mxu0 %v1724
      %1748 = vmatprep.subr.bf16.mxu0 0
      %1749 = vmatpush1.bf16.msra.mxu0 %v1723
      %1750 = vmatprep.subr.bf16.mxu0 0
      %1751 = vmatpush2.bf16.msra.mxu0 0
      %1752 = vmatprep.subr.bf16.mxu0 0
      %1753 = vmatpush2.bf16.msra.mxu0 0
      %1754 = vmatprep.subr.bf16.mxu0 0
      %1755 = vmatpush2.bf16.msra.mxu0 0
      %1756 = vmatprep.subr.bf16.mxu0 0
      %1757 = vmatpush2.bf16.msra.mxu0 0
      %1758 = vmatprep.subr.bf16.mxu0 0
      %1759 = vmatpush2.bf16.msra.mxu0 0
      %1760 = vmatprep.subr.bf16.mxu0 0
      %1761 = vmatpush2.bf16.msra.mxu0 0
      %1762 = vmatprep.subr.bf16.mxu0 0
      %1763 = vmatpush2.bf16.msra.mxu0 0
      %1764 = vmatprep.subr.bf16.mxu0 0
      %1765 = vmatpush2.bf16.msra.mxu0 0
      %1766 = vmatprep.mubr.bf16.mxu0 0
      %1767 = vmatmul.mubr.bf16.gmra.mxu0 %v1365
      %v1768 = vpop.f32.mrf.mxu0
      %v1769 = vadd.f32 0.0, %v1768
      %v1770 = vpop.f32.mrf.mxu0
      %v1771 = vpop.f32.mrf.mxu0
      %v1772 = vadd.f32 0.0, %v1771
      %v1773 = vpop.f32.mrf.mxu0
      %1774 = vmatprep.mubr.bf16.mxu0 0
      %1775 = vmatmul.mubr.bf16.gmra.mxu0 %v1368
      %v1776 = vpop.f32.mrf.mxu0
      %v1777 = vadd.f32 0.0, %v1776
      %v1778 = vpop.f32.mrf.mxu0
      %v1779 = vpop.f32.mrf.mxu0
      %v1780 = vadd.f32 0.0, %v1779
      %v1781 = vpop.f32.mrf.mxu0
      %1782 = vmatprep.mubr.bf16.mxu0 0
      %1783 = vmatmul.mubr.bf16.gmra.mxu0 %v1371
      %v1784 = vpop.f32.mrf.mxu0
      %v1785 = vadd.f32 0.0, %v1784
      %v1786 = vpop.f32.mrf.mxu0
      %v1787 = vpop.f32.mrf.mxu0
      %v1788 = vadd.f32 0.0, %v1787
      %v1789 = vpop.f32.mrf.mxu0
      %1790 = vmatprep.mubr.bf16.mxu0 0
      %1791 = vmatmul.mubr.bf16.gmra.mxu0 %v1374
      %v1792 = vpop.f32.mrf.mxu0
      %v1793 = vadd.f32 0.0, %v1792
      %v1794 = vpop.f32.mrf.mxu0
      %v1795 = vpop.f32.mrf.mxu0
      %v1796 = vadd.f32 0.0, %v1795
      %v1797 = vpop.f32.mrf.mxu0
      %1798 = vmatprep.mubr.bf16.mxu0 0
      %1799 = vmatmul.mubr.bf16.gmra.mxu0 %v1377
      %v1800 = vpop.f32.mrf.mxu0
      %v1801 = vadd.f32 0.0, %v1800
      %v1802 = vpop.f32.mrf.mxu0
      %v1803 = vpop.f32.mrf.mxu0
      %v1804 = vadd.f32 0.0, %v1803
      %v1805 = vpop.f32.mrf.mxu0
      %1806 = vmatprep.mubr.bf16.mxu0 0
      %1807 = vmatmul.mubr.bf16.gmra.mxu0 %v1380
      %v1808 = vpop.f32.mrf.mxu0
      %v1809 = vadd.f32 0.0, %v1808
      %v1810 = vpop.f32.mrf.mxu0
      %v1811 = vpop.f32.mrf.mxu0
      %v1812 = vadd.f32 0.0, %v1811
      %v1813 = vpop.f32.mrf.mxu0
      %1814 = vmatprep.mubr.bf16.mxu0 0
      %1815 = vmatmul.mubr.bf16.gmra.mxu0 %v1556
      %v1816 = vpop.f32.mrf.mxu0
      %v1817 = vadd.f32 0.0, %v1816
      %v1818 = vpop.f32.mrf.mxu0
      %v1819 = vpop.f32.mrf.mxu0
      %v1820 = vadd.f32 0.0, %v1819
      %v1821 = vpop.f32.mrf.mxu0
      %1822 = vmatprep.mubr.bf16.mxu0 0
      %1823 = vmatmul.mubr.bf16.gmra.mxu0 %v1732
      %v1824 = vpop.f32.mrf.mxu0
      %v1825 = vadd.f32 0.0, %v1824
      %v1826 = vpop.f32.mrf.mxu0
      %v1827 = vpop.f32.mrf.mxu0
      %v1828 = vadd.f32 0.0, %v1827
      %v1829 = vpop.f32.mrf.mxu0
      %1830 = vdwg.mxu0
      %v1831 = vadd.f32 %v1655, %v1769
      %v1832 = vadd.f32 %v1656, %v1772
      %v1833 = vadd.f32 %v1657, %v1777
      %v1834 = vadd.f32 %v1658, %v1780
      %v1835 = vadd.f32 %v1659, %v1785
      %v1836 = vadd.f32 %v1660, %v1788
      %v1837 = vadd.f32 %v1661, %v1793
      %v1838 = vadd.f32 %v1662, %v1796
      %v1839 = vadd.f32 %v1663, %v1801
      %v1840 = vadd.f32 %v1664, %v1804
      %v1841 = vadd.f32 %v1665, %v1809
      %v1842 = vadd.f32 %v1666, %v1812
      %v1843 = vadd.f32 %v1667, %v1817
      %v1844 = vadd.f32 %v1668, %v1820
      %v1845 = vadd.f32 %v1669, %v1825
      %v1846 = vadd.f32 %v1670, %v1828
      %vm1855 = vcmask 1042432
      %vm1856 = vcmask 1046532
      %vm1857 = vmor %vm1855, %vm1856
      %v1858 = vrot.slane %v590, 5
      %v1859 = vrot.slane %v1858, 4
      %v1860 = vrot.slane %v591, 5
      %v1861 = vsel %vm1857, %v1859, %v1860
      %v1862 = vrot.slane %v1860, 4
      %v1863 = vrot.slane %v592, 5
      %v1864 = vsel %vm1857, %v1862, %v1863
      %v1865 = vrot.slane %v593, 5
      %v1866 = vrot.slane %v1865, 4
      %v1867 = vrot.slane %v594, 5
      %v1868 = vsel %vm1857, %v1866, %v1867
      %v1869 = vrot.slane %v1867, 4
      %v1870 = vrot.slane %v595, 5
      %v1871 = vsel %vm1857, %v1869, %v1870
      %v1872 = vrot.slane %v596, 5
      %v1873 = vrot.slane %v1872, 4
      %v1874 = vrot.slane %v597, 5
      %v1875 = vsel %vm1857, %v1873, %v1874
      %v1876 = vrot.slane %v1874, 4
      %v1877 = vrot.slane %v598, 5
      %v1878 = vsel %vm1857, %v1876, %v1877
      %v1879 = vrot.slane %v599, 5
      %v1880 = vrot.slane %v1879, 4
      %v1881 = vrot.slane %v600, 5
      %v1882 = vsel %vm1857, %v1880, %v1881
      %v1883 = vrot.slane %v1881, 4
      %v1884 = vrot.slane %v601, 5
      %v1885 = vsel %vm1857, %v1883, %v1884
      %v1886 = vrot.slane %v602, 5
      %v1887 = vrot.slane %v1886, 4
      %v1888 = vrot.slane %v603, 5
      %v1889 = vsel %vm1857, %v1887, %v1888
      %v1890 = vrot.slane %v1888, 4
      %v1891 = vrot.slane %v604, 5
      %v1892 = vsel %vm1857, %v1890, %v1891
      %v1893 = vrot.slane %v605, 5
      %v1894 = vrot.slane %v1893, 4
      %v1895 = vrot.slane %v606, 5
      %v1896 = vsel %vm1857, %v1894, %v1895
      %v1897 = vrot.slane %v1895, 4
      %v1898 = vrot.slane %v607, 5
      %v1899 = vsel %vm1857, %v1897, %v1898
      %v1900 = vrot.slane %v608, 5
      %v1901 = vrot.slane %v1900, 4
      %v1902 = vrot.slane %v609, 5
      %v1903 = vsel %vm1857, %v1901, %v1902
      %v1904 = vrot.slane %v1902, 4
      %v1905 = vrot.slane %v610, 5
      %v1906 = vsel %vm1857, %v1904, %v1905
      %v1907 = vrot.slane %v611, 5
      %v1908 = vrot.slane %v1907, 4
      %v1909 = vrot.slane %v612, 5
      %v1910 = vsel %vm1857, %v1908, %v1909
      %v1911 = vrot.slane %v1909, 4
      %v1912 = vrot.slane %v613, 5
      %v1913 = vsel %vm1857, %v1911, %v1912
      %s1914 = scalar_lea.vmem %s3, 64
      %v1915 = vld [vmem:[%s1914] sm:$0xf]
      %v1916 = vld [vmem:[%s1914 + $0x4] sm:$0xf]
      %v1917 = vld [vmem:[%s1914 + $0x8] sm:$0xf]
      %v1918 = vld [vmem:[%s1914 + $0xc] sm:$0xf]
      %v1919 = vld [vmem:[%s1914 + $0x10] sm:$0xf]
      %v1920 = vld [vmem:[%s1914 + $0x14] sm:$0xf]
      %v1921 = vld [vmem:[%s1914 + $0x18] sm:$0xf]
      %v1922 = vld [vmem:[%s1914 + $0x1c] sm:$0xf]
      %v1923 = vunpack.c.l.b16 %v1861
      %v1924 = vunpack.c.l.b16 %v1864
      %v1925 = vunpack.c.l.b16 %v1868
      %v1926 = vunpack.c.l.b16 %v1871
      %v1927 = vunpack.c.l.b16 %v1875
      %v1928 = vunpack.c.l.b16 %v1878
      %v1929 = vunpack.c.l.b16 %v1882
      %v1930 = vunpack.c.l.b16 %v1885
      %v1931 = vunpack.c.l.b16 %v1889
      %v1932 = vunpack.c.l.b16 %v1892
      %v1933 = vunpack.c.l.b16 %v1896
      %v1934 = vunpack.c.l.b16 %v1899
      %v1935 = vunpack.c.l.b16 %v1903
      %v1936 = vunpack.c.l.b16 %v1906
      %v1937 = vunpack.c.l.b16 %v1910
      %v1938 = vunpack.c.l.b16 %v1913
      %v1939 = vpack.c.b16 %v1924, %v1923
      %v1940 = vpack.c.b16 %v1926, %v1925
      %v1941 = vpack.c.b16 %v1928, %v1927
      %v1942 = vpack.c.b16 %v1930, %v1929
      %v1943 = vpack.c.b16 %v1932, %v1931
      %v1944 = vpack.c.b16 %v1934, %v1933
      %v1945 = vpack.c.b16 %v1936, %v1935
      %v1946 = vpack.c.b16 %v1938, %v1937
      %v1955 = vunpack.c.l.b16 %v1915
      %v1956 = vunpack.c.l.b16 %v1916
      %v1957 = vunpack.c.l.b16 %v1917
      %v1958 = vunpack.c.l.b16 %v1918
      %v1959 = vunpack.c.l.b16 %v1919
      %v1960 = vunpack.c.l.b16 %v1920
      %v1961 = vunpack.c.l.b16 %v1921
      %v1962 = vunpack.c.l.b16 %v1922
      %v1963 = vpack.c.b16 %v1956, %v1955
      %v1964 = vpack.c.b16 %v1958, %v1957
      %v1965 = vpack.c.b16 %v1960, %v1959
      %v1966 = vpack.c.b16 %v1962, %v1961
      %v1972 = vsel %vm701, %v1939, 0
      %v1975 = vsel %vm701, %v1940, 0
      %v1978 = vsel %vm701, %v1941, 0
      %v1981 = vsel %vm701, %v1942, 0
      %v1984 = vsel %vm701, %v1943, 0
      %v1987 = vsel %vm701, %v1944, 0
      %v1990 = vsel %vm701, %v1945, 0
      %v1993 = vsel %vm701, %v1946, 0
      %1995 = vmatprep.subr.bf16.mxu0 0
      %1996 = vmatpush1.bf16.msra.mxu0 0
      %1997 = vmatprep.subr.bf16.mxu0 0
      %1998 = vmatpush1.bf16.msra.mxu0 0
      %1999 = vmatprep.subr.bf16.mxu0 0
      %2000 = vmatpush1.bf16.msra.mxu0 0
      %2001 = vmatprep.subr.bf16.mxu0 0
      %2002 = vmatpush1.bf16.msra.mxu0 0
      %2003 = vmatprep.subr.bf16.mxu0 0
      %2004 = vmatpush1.bf16.msra.mxu0 %v1966
      %2005 = vmatprep.subr.bf16.mxu0 0
      %2006 = vmatpush1.bf16.msra.mxu0 %v1965
      %2007 = vmatprep.subr.bf16.mxu0 0
      %2008 = vmatpush1.bf16.msra.mxu0 %v1964
      %2009 = vmatprep.subr.bf16.mxu0 0
      %2010 = vmatpush1.bf16.msra.mxu0 %v1963
      %2011 = vmatprep.subr.bf16.mxu0 0
      %2012 = vmatpush2.bf16.msra.mxu0 0
      %2013 = vmatprep.subr.bf16.mxu0 0
      %2014 = vmatpush2.bf16.msra.mxu0 0
      %2015 = vmatprep.subr.bf16.mxu0 0
      %2016 = vmatpush2.bf16.msra.mxu0 0
      %2017 = vmatprep.subr.bf16.mxu0 0
      %2018 = vmatpush2.bf16.msra.mxu0 0
      %2019 = vmatprep.subr.bf16.mxu0 0
      %2020 = vmatpush2.bf16.msra.mxu0 0
      %2021 = vmatprep.subr.bf16.mxu0 0
      %2022 = vmatpush2.bf16.msra.mxu0 0
      %2023 = vmatprep.subr.bf16.mxu0 0
      %2024 = vmatpush2.bf16.msra.mxu0 0
      %2025 = vmatprep.subr.bf16.mxu0 0
      %2026 = vmatpush2.bf16.msra.mxu0 0
      %2027 = vmatprep.mubr.bf16.mxu0 0
      %2028 = vmatmul.mubr.bf16.gmra.mxu0 %v1972
      %v2029 = vpop.f32.mrf.mxu0
      %v2030 = vadd.f32 0.0, %v2029
      %v2031 = vpop.f32.mrf.mxu0
      %v2032 = vpop.f32.mrf.mxu0
      %v2033 = vadd.f32 0.0, %v2032
      %v2034 = vpop.f32.mrf.mxu0
      %2035 = vmatprep.mubr.bf16.mxu0 0
      %2036 = vmatmul.mubr.bf16.gmra.mxu0 %v1975
      %v2037 = vpop.f32.mrf.mxu0
      %v2038 = vadd.f32 0.0, %v2037
      %v2039 = vpop.f32.mrf.mxu0
      %v2040 = vpop.f32.mrf.mxu0
      %v2041 = vadd.f32 0.0, %v2040
      %v2042 = vpop.f32.mrf.mxu0
      %2043 = vmatprep.mubr.bf16.mxu0 0
      %2044 = vmatmul.mubr.bf16.gmra.mxu0 %v1978
      %v2045 = vpop.f32.mrf.mxu0
      %v2046 = vadd.f32 0.0, %v2045
      %v2047 = vpop.f32.mrf.mxu0
      %v2048 = vpop.f32.mrf.mxu0
      %v2049 = vadd.f32 0.0, %v2048
      %v2050 = vpop.f32.mrf.mxu0
      %2051 = vmatprep.mubr.bf16.mxu0 0
      %2052 = vmatmul.mubr.bf16.gmra.mxu0 %v1981
      %v2053 = vpop.f32.mrf.mxu0
      %v2054 = vadd.f32 0.0, %v2053
      %v2055 = vpop.f32.mrf.mxu0
      %v2056 = vpop.f32.mrf.mxu0
      %v2057 = vadd.f32 0.0, %v2056
      %v2058 = vpop.f32.mrf.mxu0
      %2059 = vmatprep.mubr.bf16.mxu0 0
      %2060 = vmatmul.mubr.bf16.gmra.mxu0 %v1984
      %v2061 = vpop.f32.mrf.mxu0
      %v2062 = vadd.f32 0.0, %v2061
      %v2063 = vpop.f32.mrf.mxu0
      %v2064 = vpop.f32.mrf.mxu0
      %v2065 = vadd.f32 0.0, %v2064
      %v2066 = vpop.f32.mrf.mxu0
      %2067 = vmatprep.mubr.bf16.mxu0 0
      %2068 = vmatmul.mubr.bf16.gmra.mxu0 %v1987
      %v2069 = vpop.f32.mrf.mxu0
      %v2070 = vadd.f32 0.0, %v2069
      %v2071 = vpop.f32.mrf.mxu0
      %v2072 = vpop.f32.mrf.mxu0
      %v2073 = vadd.f32 0.0, %v2072
      %v2074 = vpop.f32.mrf.mxu0
      %2075 = vmatprep.mubr.bf16.mxu0 0
      %2076 = vmatmul.mubr.bf16.gmra.mxu0 %v1990
      %v2077 = vpop.f32.mrf.mxu0
      %v2078 = vadd.f32 0.0, %v2077
      %v2079 = vpop.f32.mrf.mxu0
      %v2080 = vpop.f32.mrf.mxu0
      %v2081 = vadd.f32 0.0, %v2080
      %v2082 = vpop.f32.mrf.mxu0
      %2083 = vmatprep.mubr.bf16.mxu0 0
      %2084 = vmatmul.mubr.bf16.gmra.mxu0 %v1993
      %v2085 = vpop.f32.mrf.mxu0
      %v2086 = vadd.f32 0.0, %v2085
      %v2087 = vpop.f32.mrf.mxu0
      %v2088 = vpop.f32.mrf.mxu0
      %v2089 = vadd.f32 0.0, %v2088
      %v2090 = vpop.f32.mrf.mxu0
      %2091 = vdwg.mxu0
      %v2092 = vadd.f32 %v1831, %v2030
      %v2093 = vadd.f32 %v1832, %v2033
      %v2094 = vadd.f32 %v1833, %v2038
      %v2095 = vadd.f32 %v1834, %v2041
      %v2096 = vadd.f32 %v1835, %v2046
      %v2097 = vadd.f32 %v1836, %v2049
      %v2098 = vadd.f32 %v1837, %v2054
      %v2099 = vadd.f32 %v1838, %v2057
      %v2100 = vadd.f32 %v1839, %v2062
      %v2101 = vadd.f32 %v1840, %v2065
      %v2102 = vadd.f32 %v1841, %v2070
      %v2103 = vadd.f32 %v1842, %v2073
      %v2104 = vadd.f32 %v1843, %v2078
      %v2105 = vadd.f32 %v1844, %v2081
      %v2106 = vadd.f32 %v1845, %v2086
      %v2107 = vadd.f32 %v1846, %v2089
      %v2109 = vrot.slane %v614, 5
      %v2110 = vrot.slane %v2109, 4
      %v2111 = vrot.slane %v615, 5
      %v2112 = vsel %vm1857, %v2110, %v2111
      %v2113 = vrot.slane %v2111, 4
      %v2114 = vrot.slane %v616, 5
      %v2115 = vsel %vm1857, %v2113, %v2114
      %s2116 = scalar_lea.vmem %s3, 160
      %v2117 = vld [vmem:[%s2116] sm:$0xf]
      %v2118 = vld [vmem:[%s2116 + $0x4] sm:$0xf]
      %v2119 = vld [vmem:[%s2116 + $0x8] sm:$0xf]
      %v2120 = vld [vmem:[%s2116 + $0xc] sm:$0xf]
      %v2121 = vld [vmem:[%s2116 + $0x10] sm:$0xf]
      %v2122 = vld [vmem:[%s2116 + $0x14] sm:$0xf]
      %v2123 = vld [vmem:[%s2116 + $0x18] sm:$0xf]
      %v2124 = vld [vmem:[%s2116 + $0x1c] sm:$0xf]
      %v2125 = vunpack.c.l.b16 %v2112
      %v2126 = vunpack.c.l.b16 %v2115
      %v2127 = vpack.c.b16 %v2126, %v2125
      %v2136 = vunpack.c.l.b16 %v2117
      %v2137 = vunpack.c.l.b16 %v2118
      %v2138 = vunpack.c.l.b16 %v2119
      %v2139 = vunpack.c.l.b16 %v2120
      %v2140 = vunpack.c.l.b16 %v2121
      %v2141 = vunpack.c.l.b16 %v2122
      %v2142 = vunpack.c.l.b16 %v2123
      %v2143 = vunpack.c.l.b16 %v2124
      %v2144 = vpack.c.b16 %v2137, %v2136
      %v2145 = vpack.c.b16 %v2139, %v2138
      %v2146 = vpack.c.b16 %v2141, %v2140
      %v2147 = vpack.c.b16 %v2143, %v2142
      %v2153 = vsel %vm701, %v2127, 0
      %2155 = vmatprep.subr.bf16.mxu0 0
      %2156 = vmatpush1.bf16.msra.mxu0 0
      %2157 = vmatprep.subr.bf16.mxu0 0
      %2158 = vmatpush1.bf16.msra.mxu0 0
      %2159 = vmatprep.subr.bf16.mxu0 0
      %2160 = vmatpush1.bf16.msra.mxu0 0
      %2161 = vmatprep.subr.bf16.mxu0 0
      %2162 = vmatpush1.bf16.msra.mxu0 0
      %2163 = vmatprep.subr.bf16.mxu0 0
      %2164 = vmatpush1.bf16.msra.mxu0 %v2147
      %2165 = vmatprep.subr.bf16.mxu0 0
      %2166 = vmatpush1.bf16.msra.mxu0 %v2146
      %2167 = vmatprep.subr.bf16.mxu0 0
      %2168 = vmatpush1.bf16.msra.mxu0 %v2145
      %2169 = vmatprep.subr.bf16.mxu0 0
      %2170 = vmatpush1.bf16.msra.mxu0 %v2144
      %2171 = vmatprep.subr.bf16.mxu0 0
      %2172 = vmatpush2.bf16.msra.mxu0 0
      %2173 = vmatprep.subr.bf16.mxu0 0
      %2174 = vmatpush2.bf16.msra.mxu0 0
      %2175 = vmatprep.subr.bf16.mxu0 0
      %2176 = vmatpush2.bf16.msra.mxu0 0
      %2177 = vmatprep.subr.bf16.mxu0 0
      %2178 = vmatpush2.bf16.msra.mxu0 0
      %2179 = vmatprep.subr.bf16.mxu0 0
      %2180 = vmatpush2.bf16.msra.mxu0 0
      %2181 = vmatprep.subr.bf16.mxu0 0
      %2182 = vmatpush2.bf16.msra.mxu0 0
      %2183 = vmatprep.subr.bf16.mxu0 0
      %2184 = vmatpush2.bf16.msra.mxu0 0
      %2185 = vmatprep.subr.bf16.mxu0 0
      %2186 = vmatpush2.bf16.msra.mxu0 0
      %2187 = vmatprep.mubr.bf16.mxu0 0
      %2188 = vmatmul.mubr.bf16.gmra.mxu0 %v1975
      %v2189 = vpop.f32.mrf.mxu0
      %v2190 = vadd.f32 0.0, %v2189
      %v2191 = vpop.f32.mrf.mxu0
      %v2192 = vpop.f32.mrf.mxu0
      %v2193 = vadd.f32 0.0, %v2192
      %v2194 = vpop.f32.mrf.mxu0
      %2195 = vmatprep.mubr.bf16.mxu0 0
      %2196 = vmatmul.mubr.bf16.gmra.mxu0 %v1978
      %v2197 = vpop.f32.mrf.mxu0
      %v2198 = vadd.f32 0.0, %v2197
      %v2199 = vpop.f32.mrf.mxu0
      %v2200 = vpop.f32.mrf.mxu0
      %v2201 = vadd.f32 0.0, %v2200
      %v2202 = vpop.f32.mrf.mxu0
      %2203 = vmatprep.mubr.bf16.mxu0 0
      %2204 = vmatmul.mubr.bf16.gmra.mxu0 %v1981
      %v2205 = vpop.f32.mrf.mxu0
      %v2206 = vadd.f32 0.0, %v2205
      %v2207 = vpop.f32.mrf.mxu0
      %v2208 = vpop.f32.mrf.mxu0
      %v2209 = vadd.f32 0.0, %v2208
      %v2210 = vpop.f32.mrf.mxu0
      %2211 = vmatprep.mubr.bf16.mxu0 0
      %2212 = vmatmul.mubr.bf16.gmra.mxu0 %v1984
      %v2213 = vpop.f32.mrf.mxu0
      %v2214 = vadd.f32 0.0, %v2213
      %v2215 = vpop.f32.mrf.mxu0
      %v2216 = vpop.f32.mrf.mxu0
      %v2217 = vadd.f32 0.0, %v2216
      %v2218 = vpop.f32.mrf.mxu0
      %2219 = vmatprep.mubr.bf16.mxu0 0
      %2220 = vmatmul.mubr.bf16.gmra.mxu0 %v1987
      %v2221 = vpop.f32.mrf.mxu0
      %v2222 = vadd.f32 0.0, %v2221
      %v2223 = vpop.f32.mrf.mxu0
      %v2224 = vpop.f32.mrf.mxu0
      %v2225 = vadd.f32 0.0, %v2224
      %v2226 = vpop.f32.mrf.mxu0
      %2227 = vmatprep.mubr.bf16.mxu0 0
      %2228 = vmatmul.mubr.bf16.gmra.mxu0 %v1990
      %v2229 = vpop.f32.mrf.mxu0
      %v2230 = vadd.f32 0.0, %v2229
      %v2231 = vpop.f32.mrf.mxu0
      %v2232 = vpop.f32.mrf.mxu0
      %v2233 = vadd.f32 0.0, %v2232
      %v2234 = vpop.f32.mrf.mxu0
      %2235 = vmatprep.mubr.bf16.mxu0 0
      %2236 = vmatmul.mubr.bf16.gmra.mxu0 %v1993
      %v2237 = vpop.f32.mrf.mxu0
      %v2238 = vadd.f32 0.0, %v2237
      %v2239 = vpop.f32.mrf.mxu0
      %v2240 = vpop.f32.mrf.mxu0
      %v2241 = vadd.f32 0.0, %v2240
      %v2242 = vpop.f32.mrf.mxu0
      %2243 = vmatprep.mubr.bf16.mxu0 0
      %2244 = vmatmul.mubr.bf16.gmra.mxu0 %v2153
      %v2245 = vpop.f32.mrf.mxu0
      %v2246 = vadd.f32 0.0, %v2245
      %v2247 = vpop.f32.mrf.mxu0
      %v2248 = vpop.f32.mrf.mxu0
      %v2249 = vadd.f32 0.0, %v2248
      %v2250 = vpop.f32.mrf.mxu0
      %2251 = vdwg.mxu0
      %v2252 = vadd.f32 %v2092, %v2190
      %v2253 = vadd.f32 %v2093, %v2193
      %v2254 = vadd.f32 %v2094, %v2198
      %v2255 = vadd.f32 %v2095, %v2201
      %v2256 = vadd.f32 %v2096, %v2206
      %v2257 = vadd.f32 %v2097, %v2209
      %v2258 = vadd.f32 %v2098, %v2214
      %v2259 = vadd.f32 %v2099, %v2217
      %v2260 = vadd.f32 %v2100, %v2222
      %v2261 = vadd.f32 %v2101, %v2225
      %v2262 = vadd.f32 %v2102, %v2230
      %v2263 = vadd.f32 %v2103, %v2233
      %v2264 = vadd.f32 %v2104, %v2238
      %v2265 = vadd.f32 %v2105, %v2241
      %v2266 = vadd.f32 %v2106, %v2246
      %v2267 = vadd.f32 %v2107, %v2249
      %v2269 = vrot.slane %v617, 5
      %v2270 = vrot.slane %v2269, 4
      %v2271 = vrot.slane %v618, 5
      %v2272 = vsel %vm1857, %v2270, %v2271
      %v2273 = vrot.slane %v2271, 4
      %v2274 = vrot.slane %v619, 5
      %v2275 = vsel %vm1857, %v2273, %v2274
      %s2276 = scalar_lea.vmem %s3, 256
      %v2277 = vld [vmem:[%s2276] sm:$0xf]
      %v2278 = vld [vmem:[%s2276 + $0x4] sm:$0xf]
      %v2279 = vld [vmem:[%s2276 + $0x8] sm:$0xf]
      %v2280 = vld [vmem:[%s2276 + $0xc] sm:$0xf]
      %v2281 = vld [vmem:[%s2276 + $0x10] sm:$0xf]
      %v2282 = vld [vmem:[%s2276 + $0x14] sm:$0xf]
      %v2283 = vld [vmem:[%s2276 + $0x18] sm:$0xf]
      %v2284 = vld [vmem:[%s2276 + $0x1c] sm:$0xf]
      %v2285 = vunpack.c.l.b16 %v2272
      %v2286 = vunpack.c.l.b16 %v2275
      %v2287 = vpack.c.b16 %v2286, %v2285
      %v2296 = vunpack.c.l.b16 %v2277
      %v2297 = vunpack.c.l.b16 %v2278
      %v2298 = vunpack.c.l.b16 %v2279
      %v2299 = vunpack.c.l.b16 %v2280
      %v2300 = vunpack.c.l.b16 %v2281
      %v2301 = vunpack.c.l.b16 %v2282
      %v2302 = vunpack.c.l.b16 %v2283
      %v2303 = vunpack.c.l.b16 %v2284
      %v2304 = vpack.c.b16 %v2297, %v2296
      %v2305 = vpack.c.b16 %v2299, %v2298
      %v2306 = vpack.c.b16 %v2301, %v2300
      %v2307 = vpack.c.b16 %v2303, %v2302
      %v2313 = vsel %vm701, %v2287, 0
      %2315 = vmatprep.subr.bf16.mxu0 0
      %2316 = vmatpush1.bf16.msra.mxu0 0
      %2317 = vmatprep.subr.bf16.mxu0 0
      %2318 = vmatpush1.bf16.msra.mxu0 0
      %2319 = vmatprep.subr.bf16.mxu0 0
      %2320 = vmatpush1.bf16.msra.mxu0 0
      %2321 = vmatprep.subr.bf16.mxu0 0
      %2322 = vmatpush1.bf16.msra.mxu0 0
      %2323 = vmatprep.subr.bf16.mxu0 0
      %2324 = vmatpush1.bf16.msra.mxu0 %v2307
      %2325 = vmatprep.subr.bf16.mxu0 0
      %2326 = vmatpush1.bf16.msra.mxu0 %v2306
      %2327 = vmatprep.subr.bf16.mxu0 0
      %2328 = vmatpush1.bf16.msra.mxu0 %v2305
      %2329 = vmatprep.subr.bf16.mxu0 0
      %2330 = vmatpush1.bf16.msra.mxu0 %v2304
      %2331 = vmatprep.subr.bf16.mxu0 0
      %2332 = vmatpush2.bf16.msra.mxu0 0
      %2333 = vmatprep.subr.bf16.mxu0 0
      %2334 = vmatpush2.bf16.msra.mxu0 0
      %2335 = vmatprep.subr.bf16.mxu0 0
      %2336 = vmatpush2.bf16.msra.mxu0 0
      %2337 = vmatprep.subr.bf16.mxu0 0
      %2338 = vmatpush2.bf16.msra.mxu0 0
      %2339 = vmatprep.subr.bf16.mxu0 0
      %2340 = vmatpush2.bf16.msra.mxu0 0
      %2341 = vmatprep.subr.bf16.mxu0 0
      %2342 = vmatpush2.bf16.msra.mxu0 0
      %2343 = vmatprep.subr.bf16.mxu0 0
      %2344 = vmatpush2.bf16.msra.mxu0 0
      %2345 = vmatprep.subr.bf16.mxu0 0
      %2346 = vmatpush2.bf16.msra.mxu0 0
      %2347 = vmatprep.mubr.bf16.mxu0 0
      %2348 = vmatmul.mubr.bf16.gmra.mxu0 %v1978
      %v2349 = vpop.f32.mrf.mxu0
      %v2350 = vadd.f32 0.0, %v2349
      %v2351 = vpop.f32.mrf.mxu0
      %v2352 = vpop.f32.mrf.mxu0
      %v2353 = vadd.f32 0.0, %v2352
      %v2354 = vpop.f32.mrf.mxu0
      %2355 = vmatprep.mubr.bf16.mxu0 0
      %2356 = vmatmul.mubr.bf16.gmra.mxu0 %v1981
      %v2357 = vpop.f32.mrf.mxu0
      %v2358 = vadd.f32 0.0, %v2357
      %v2359 = vpop.f32.mrf.mxu0
      %v2360 = vpop.f32.mrf.mxu0
      %v2361 = vadd.f32 0.0, %v2360
      %v2362 = vpop.f32.mrf.mxu0
      %2363 = vmatprep.mubr.bf16.mxu0 0
      %2364 = vmatmul.mubr.bf16.gmra.mxu0 %v1984
      %v2365 = vpop.f32.mrf.mxu0
      %v2366 = vadd.f32 0.0, %v2365
      %v2367 = vpop.f32.mrf.mxu0
      %v2368 = vpop.f32.mrf.mxu0
      %v2369 = vadd.f32 0.0, %v2368
      %v2370 = vpop.f32.mrf.mxu0
      %2371 = vmatprep.mubr.bf16.mxu0 0
      %2372 = vmatmul.mubr.bf16.gmra.mxu0 %v1987
      %v2373 = vpop.f32.mrf.mxu0
      %v2374 = vadd.f32 0.0, %v2373
      %v2375 = vpop.f32.mrf.mxu0
      %v2376 = vpop.f32.mrf.mxu0
      %v2377 = vadd.f32 0.0, %v2376
      %v2378 = vpop.f32.mrf.mxu0
      %2379 = vmatprep.mubr.bf16.mxu0 0
      %2380 = vmatmul.mubr.bf16.gmra.mxu0 %v1990
      %v2381 = vpop.f32.mrf.mxu0
      %v2382 = vadd.f32 0.0, %v2381
      %v2383 = vpop.f32.mrf.mxu0
      %v2384 = vpop.f32.mrf.mxu0
      %v2385 = vadd.f32 0.0, %v2384
      %v2386 = vpop.f32.mrf.mxu0
      %2387 = vmatprep.mubr.bf16.mxu0 0
      %2388 = vmatmul.mubr.bf16.gmra.mxu0 %v1993
      %v2389 = vpop.f32.mrf.mxu0
      %v2390 = vadd.f32 0.0, %v2389
      %v2391 = vpop.f32.mrf.mxu0
      %v2392 = vpop.f32.mrf.mxu0
      %v2393 = vadd.f32 0.0, %v2392
      %v2394 = vpop.f32.mrf.mxu0
      %2395 = vmatprep.mubr.bf16.mxu0 0
      %2396 = vmatmul.mubr.bf16.gmra.mxu0 %v2153
      %v2397 = vpop.f32.mrf.mxu0
      %v2398 = vadd.f32 0.0, %v2397
      %v2399 = vpop.f32.mrf.mxu0
      %v2400 = vpop.f32.mrf.mxu0
      %v2401 = vadd.f32 0.0, %v2400
      %v2402 = vpop.f32.mrf.mxu0
      %2403 = vmatprep.mubr.bf16.mxu0 0
      %2404 = vmatmul.mubr.bf16.gmra.mxu0 %v2313
      %v2405 = vpop.f32.mrf.mxu0
      %v2406 = vadd.f32 0.0, %v2405
      %v2407 = vpop.f32.mrf.mxu0
      %v2408 = vpop.f32.mrf.mxu0
      %v2409 = vadd.f32 0.0, %v2408
      %v2410 = vpop.f32.mrf.mxu0
      %2411 = vdwg.mxu0
      %v2412 = vadd.f32 %v2252, %v2350
      %v2413 = vadd.f32 %v2253, %v2353
      %v2414 = vadd.f32 %v2254, %v2358
      %v2415 = vadd.f32 %v2255, %v2361
      %v2416 = vadd.f32 %v2256, %v2366
      %v2417 = vadd.f32 %v2257, %v2369
      %v2418 = vadd.f32 %v2258, %v2374
      %v2419 = vadd.f32 %v2259, %v2377
      %v2420 = vadd.f32 %v2260, %v2382
      %v2421 = vadd.f32 %v2261, %v2385
      %v2422 = vadd.f32 %v2262, %v2390
      %v2423 = vadd.f32 %v2263, %v2393
      %v2424 = vadd.f32 %v2264, %v2398
      %v2425 = vadd.f32 %v2265, %v2401
      %v2426 = vadd.f32 %v2266, %v2406
      %v2427 = vadd.f32 %v2267, %v2409
      %v2428 = vld [vmem:[%s4] sm:$0x1]
      %v2430 = vlaneseq
      %v2431 = vshrl.u32 %v2430, 7
      %v2432 = vsub.s32 0, %v2431
      %v2433 = vrot.slane %v2428, %v2432
      %v2435 = vadd.f32 %v2412, %v2433
      %v2436 = vadd.f32 %v2413, %v2433
      %v2437 = vadd.f32 %v2414, %v2433
      %v2438 = vadd.f32 %v2415, %v2433
      %v2439 = vadd.f32 %v2416, %v2433
      %v2440 = vadd.f32 %v2417, %v2433
      %v2441 = vadd.f32 %v2418, %v2433
      %v2442 = vadd.f32 %v2419, %v2433
      %v2443 = vadd.f32 %v2420, %v2433
      %v2444 = vadd.f32 %v2421, %v2433
      %v2445 = vadd.f32 %v2422, %v2433
      %v2446 = vadd.f32 %v2423, %v2433
      %v2447 = vadd.f32 %v2424, %v2433
      %v2448 = vadd.f32 %v2425, %v2433
      %v2449 = vadd.f32 %v2426, %v2433
      %v2450 = vadd.f32 %v2427, %v2433
      %v2451 = vmax.f32 %v2435, 0.0
      %v2452 = vmax.f32 %v2436, 0.0
      %v2453 = vmax.f32 %v2437, 0.0
      %v2454 = vmax.f32 %v2438, 0.0
      %v2455 = vmax.f32 %v2439, 0.0
      %v2456 = vmax.f32 %v2440, 0.0
      %v2457 = vmax.f32 %v2441, 0.0
      %v2458 = vmax.f32 %v2442, 0.0
      %v2459 = vmax.f32 %v2443, 0.0
      %v2460 = vmax.f32 %v2444, 0.0
      %v2461 = vmax.f32 %v2445, 0.0
      %v2462 = vmax.f32 %v2446, 0.0
      %v2463 = vmax.f32 %v2447, 0.0
      %v2464 = vmax.f32 %v2448, 0.0
      %v2465 = vmax.f32 %v2449, 0.0
      %v2466 = vmax.f32 %v2450, 0.0
      %2467 = vst.msk [vmem:[#allocation3] sm:$0xff] %vm701, %v2451
      %2468 = vst.msk [vmem:[#allocation3 + $0x8] sm:$0xff] %vm701, %v2452
      %2469 = vst.msk [vmem:[#allocation3 + $0x10] sm:$0xff] %vm701, %v2453
      %2470 = vst.msk [vmem:[#allocation3 + $0x18] sm:$0xff] %vm701, %v2454
      %2471 = vst.msk [vmem:[#allocation3 + $0x20] sm:$0xff] %vm701, %v2455
      %2472 = vst.msk [vmem:[#allocation3 + $0x28] sm:$0xff] %vm701, %v2456
      %2473 = vst.msk [vmem:[#allocation3 + $0x30] sm:$0xff] %vm701, %v2457
      %2474 = vst.msk [vmem:[#allocation3 + $0x38] sm:$0xff] %vm701, %v2458
      %2475 = vst.msk [vmem:[#allocation3 + $0x40] sm:$0xff] %vm701, %v2459
      %2476 = vst.msk [vmem:[#allocation3 + $0x48] sm:$0xff] %vm701, %v2460
      %2477 = vst.msk [vmem:[#allocation3 + $0x50] sm:$0xff] %vm701, %v2461
      %2478 = vst.msk [vmem:[#allocation3 + $0x58] sm:$0xff] %vm701, %v2462
      %2479 = vst.msk [vmem:[#allocation3 + $0x60] sm:$0xff] %vm701, %v2463
      %2480 = vst.msk [vmem:[#allocation3 + $0x68] sm:$0xff] %vm701, %v2464
      %2481 = vst.msk [vmem:[#allocation3 + $0x70] sm:$0xff] %vm701, %v2465
      %2482 = vst.msk [vmem:[#allocation3 + $0x78] sm:$0xff] %vm701, %v2466
      %v2483 = vld [vmem:[#allocation3] ss:$2 sm:$0xff]
      %s2484 = scalar_lea.vmem [#allocation3], 32
      %v2485 = vld [vmem:[%s2484] ss:$2 sm:$0xff]
      %s2486 = scalar_lea.vmem [#allocation3], 64
      %v2487 = vld [vmem:[%s2486] ss:$2 sm:$0xff]
      %s2488 = scalar_lea.vmem [#allocation3], 96
      %v2489 = vld [vmem:[%s2488] ss:$2 sm:$0xff]
      %s2490 = scalar_lea.vmem [#allocation3], 1
      %v2491 = vld [vmem:[%s2490] ss:$2 sm:$0xff]
      %s2492 = scalar_lea.vmem [#allocation3], 33
      %v2493 = vld [vmem:[%s2492] ss:$2 sm:$0xff]
      %s2494 = scalar_lea.vmem [#allocation3], 65
      %v2495 = vld [vmem:[%s2494] ss:$2 sm:$0xff]
      %s2496 = scalar_lea.vmem [#allocation3], 97
      %v2497 = vld [vmem:[%s2496] ss:$2 sm:$0xff]
      %v2498 = vmax.f32 %v2483, %v2491
      %v2499 = vmax.f32 %v2485, %v2493
      %v2500 = vmax.f32 %v2487, %v2495
      %v2501 = vmax.f32 %v2489, %v2497
      %s2502 = scalar_lea.vmem [#allocation3], 16
      %v2503 = vld [vmem:[%s2502] ss:$2 sm:$0xff]
      %s2504 = scalar_lea.vmem %s2502, 32 [#allocation3]
      %v2505 = vld [vmem:[%s2504] ss:$2 sm:$0xff]
      %s2506 = scalar_lea.vmem %s2502, 64 [#allocation3]
      %v2507 = vld [vmem:[%s2506] ss:$2 sm:$0xff]
      %s2508 = scalar_lea.vmem %s2502, 96 [#allocation3]
      %v2509 = vld [vmem:[%s2508] ss:$2 sm:$0xff]
      %s2510 = scalar_lea.vmem %s2502, 1 [#allocation3]
      %v2511 = vld [vmem:[%s2510] ss:$2 sm:$0xff]
      %s2512 = scalar_lea.vmem %s2502, 33 [#allocation3]
      %v2513 = vld [vmem:[%s2512] ss:$2 sm:$0xff]
      %s2514 = scalar_lea.vmem %s2502, 65 [#allocation3]
      %v2515 = vld [vmem:[%s2514] ss:$2 sm:$0xff]
      %s2516 = scalar_lea.vmem %s2502, 97 [#allocation3]
      %v2517 = vld [vmem:[%s2516] ss:$2 sm:$0xff]
      %v2518 = vmax.f32 %v2503, %v2511
      %v2519 = vmax.f32 %v2505, %v2513
      %v2520 = vmax.f32 %v2507, %v2515
      %v2521 = vmax.f32 %v2509, %v2517
      %v2522 = vmax.f32 %v2498, %v2518
      %v2523 = vmax.f32 %v2499, %v2519
      %v2524 = vmax.f32 %v2500, %v2520
      %v2525 = vmax.f32 %v2501, %v2521
      %2526 = vst.msk [vmem:[%s393] sm:$0xff] %vm701, %v2522
      %2527 = vst.msk [vmem:[%s393 + $0x8] sm:$0xff] %vm701, %v2523
      %2528 = vst.msk [vmem:[%s393 + $0x10] sm:$0xff] %vm701, %v2524
      %2529 = vst.msk [vmem:[%s393 + $0x18] sm:$0xff] %vm701, %v2525
      %s2530 = smul.u32 4, %s21
      %p2531 = scmp.lt.s32.totalorder %s20, 3
      %s2532 = scalar_select %p2531, %s20, 3
      %p2533 = scmp.lt.s32.totalorder %s2530, 7
      %s2534 = scalar_select %p2533, %s2530, 7
      %s2535 = smul.addr %s2532, 8
      %s2536 = sadd.s32 %s2534, %s2535
      %s2537 = smul.addr %s2536, 8
      %s2538 = scalar_lea.vmem %s5, %s2537
      // Predicated region
      $region41: #{a_call__.5} parent=39 // pred_check
        %p2539 = pneg %p184
      $region42: #{a_call__.5} parent=39 // pred_check_branch
        %2541 = sbr.rel (%p2539) target = $region44
      $region43: #{a_call__.5} parent=39 // pred_region
        %s2542 = smul.u32 4, %s21
      $region44: #{a_call__.5} parent=39 // pred_fallthru
        _
    $region40: #{a_call__.5} parent=5 // pred_fallthru
      _
    %p2543 = scmp.le.s32.totalorder 2, %s11
    // Predicated region
    $region45: #{a_call__.5} parent=5 // pred_check
      %p2544 = pneg %p2543
    $region46: #{a_call__.5} parent=5 // pred_check_branch
      %2546 = sbr.rel (%p2544) target = $region48
    $region47: #{a_call__.5} parent=5 // pred_region
      %s2547 = ssub.s32 %s11, 2
      // Predicated region
      $region49: #{a_call__.5} parent=47 // pred_check
        %p2548 = pneg %p190
      $region50: #{a_call__.5} parent=47 // pred_check_branch
        %2550 = sbr.rel (%p2548) target = $region52
      $region51: #{a_call__.5} parent=47 // pred_region
        %s2551 = smul.u32 4, %s23
        %p2552 = scmp.lt.s32.totalorder %s22, 3
        %s2553 = scalar_select %p2552, %s22, 3
        %p2554 = scmp.lt.s32.totalorder %s2551, 7
        %s2555 = scalar_select %p2554, %s2551, 7
        %s2556 = smul.addr %s2553, 8
        %s2557 = sadd.s32 %s2555, %s2556
        %s2558 = smul.addr %s2557, 8
        %s2559 = scalar_lea.vmem %s5, %s2558
      $region52: #{a_call__.5} parent=47 // pred_fallthru
        _
    $region48: #{a_call__.5} parent=5 // pred_fallthru
      _
  $region6: #{a_call__.5} parent=0 // loop_footer
    %s15 = sadd.s32 1, %s11
  $region7: #{a_call__.5} parent=0 // loop_footer_branch
    %10 = sbr.rel target = $region3
  $region8: #{a_call__.5} parent=0 // loop_exit
    _

// kernel: a_call__.7
$region0: #{a_call__.7}
  #allocation0 [shape = 'u32[]', space=smem, size = 0x4, offset = 0x4, fixed_abs, tag = 'smem constant byte address 0x4 - core index']
  #allocation1 [shape = 'u32[144,128]{1,0:T(1,128)}', space=vmem, size = 0x12000, scoped, tag = 'internal scratch']
  #allocation2 [shape = 'f32[8,8,128]{2,1,0:T(8,128)}', space=vmem, size = 0x8000, scoped, tag = 'scratch operand']
  %s0 = inlined_call_operand.vmem [shape: f32[2,8,8,128], index: 0, kind: input, shape index: {}]
  %s1 = inlined_call_operand.vmem [shape: f32[2,8,8,128], index: 1, kind: input, shape index: {}]
  %s2 = inlined_call_operand.hbm [shape: f32[1,1], index: 2, kind: output, shape index: {}]
  %s3 = sld [smem:[#allocation0]]
  $region49: #{a_call__.7} parent=0
    _
  %s5 = ssub.s32 1, %s3
  %s6 = scalar_select 0, %s5, %s3
  $region1: #{a_call__.7} parent=0
    #allocation3 [shape = 'u8[512]{0}', space=vmem, size = 0x400, scoped, tag = 'output window, operand 0, single buffered']
    #allocation4 [shape = 's32[2]{0}', space=sflag, size = 0x8, scoped, tag = 'scoped memory for a_call__.7']
    %7 = vsyncpa [#allocation4], 0
    loop: start=0, step=1, limit=4
    $region2: #{a_call__.7} parent=1 // loop_pre_header
      _
    $region3: #{a_call__.7} parent=1 // loop_header
      %s9 = sphi 0, %s13
      %p10 = scmp.ge.s32.totalorder %s9, 4
      %s16 = sphi 0, %s28
      %s17 = sphi 0, %s24
      %s18 = sphi 0, %s16
      %s19 = sphi 0, %s17
      %s20 = sphi 0, %s18
      %s21 = sphi 0, %s19
      %s33 = sphi 0, %s35
      %s36 = sphi 0, %s33
      %s37 = sphi 0, %s36
      %s53 = sphi 0, %s37
      %s61 = sphi 0, %s63
      %s64 = sphi 0, %s61
      %s65 = sphi 0, %s64
      %s81 = sphi 0, %s65
      %s85 = sphi 0, %s85
      %s87 = sphi 0, %s85
      %s88 = sphi 0, %s87
      %s102 = sphi 0, %s88
    $region4: #{a_call__.7} parent=1 // loop_header_branch
      %12 = sbr.rel (%p10) target = $region8
    $region5: #{a_call__.7} parent=1 // loop_body
      %s14 = ssub.s32 %s9, 1
      %s15 = ssub.s32 %s9, 2
      %s22 = sadd.s32 1, %s17
      %p23 = scmp.ge.s32.totalorder %s22, 1
      %s24 = scalar_select %p23, 0, %s22
      %s25 = sadd.s32 1, %s16
      %s26 = scalar_select %p23, %s25, %s16
      %p27 = scmp.ge.s32.totalorder %s26, 2
      %s28 = scalar_select %p27, 0, %s26
      %s29 = ssub.s32 %s16, %s28
      %s30 = ssub.s32 %s17, %s24
      %s31 = sor.u32 %s29, %s30
      %p32 = scmp.eq.s32.totalorder %s31, 0
      %s34 = sadd.s32 %s33, 1
      %s35 = scalar_select %p32, %s33, %s34
      %p38 = pneg %p32
      %p39 = scmp.eq.s32.totalorder %s9, 1
      %p40 = por %p38, %p39
      %p41 = scmp.ne.s32.totalorder %s33, %s36
      %p42 = scmp.eq.s32.totalorder %s9, 0
      %p43 = por %p41, %p42
      %p44 = scmp.ne.s32.totalorder %s33, %s36
      %p45 = scmp.eq.s32.totalorder %s14, 1
      %p46 = por %p44, %p45
      %p47 = scmp.ne.s32.totalorder %s36, %s37
      %p48 = scmp.eq.s32.totalorder %s14, 0
      %p49 = por %p47, %p48
      %p50 = scmp.ne.s32.totalorder %s36, %s37
      %p51 = scmp.eq.s32.totalorder %s15, 1
      %p52 = por %p50, %p51
      %p54 = scmp.ne.s32.totalorder %s37, %s53
      %p55 = scmp.eq.s32.totalorder %s15, 0
      %p56 = por %p54, %p55
      %s57 = ssub.s32 %s16, %s28
      %s58 = ssub.s32 %s17, %s24
      %s59 = sor.u32 %s57, %s58
      %p60 = scmp.eq.s32.totalorder %s59, 0
      %s62 = sadd.s32 %s61, 1
      %s63 = scalar_select %p60, %s61, %s62
      %p66 = pneg %p60
      %p67 = scmp.eq.s32.totalorder %s9, 1
      %p68 = por %p66, %p67
      %p69 = scmp.ne.s32.totalorder %s61, %s64
      %p70 = scmp.eq.s32.totalorder %s9, 0
      %p71 = por %p69, %p70
      %p72 = scmp.ne.s32.totalorder %s61, %s64
      %p73 = scmp.eq.s32.totalorder %s14, 1
      %p74 = por %p72, %p73
      %p75 = scmp.ne.s32.totalorder %s64, %s65
      %p76 = scmp.eq.s32.totalorder %s14, 0
      %p77 = por %p75, %p76
      %p78 = scmp.ne.s32.totalorder %s64, %s65
      %p79 = scmp.eq.s32.totalorder %s15, 1
      %p80 = por %p78, %p79
      %p82 = scmp.ne.s32.totalorder %s65, %s81
      %p83 = scmp.eq.s32.totalorder %s15, 0
      %p84 = por %p82, %p83
      %s86 = sadd.s32 %s85, 1
      %p89 = scmp.eq.s32.totalorder %s9, 1
      %p90 = scmp.ne.s32.totalorder %s85, %s87
      %p91 = scmp.eq.s32.totalorder %s9, 0
      %p92 = por %p90, %p91
      %p93 = scmp.ne.s32.totalorder %s85, %s87
      %p94 = scmp.eq.s32.totalorder %s14, 1
      %p95 = por %p93, %p94
      %p96 = scmp.ne.s32.totalorder %s87, %s88
      %p97 = scmp.eq.s32.totalorder %s14, 0
      %p98 = por %p96, %p97
      %p99 = scmp.ne.s32.totalorder %s87, %s88
      %p100 = scmp.eq.s32.totalorder %s15, 1
      %p101 = por %p99, %p100
      %p103 = scmp.ne.s32.totalorder %s88, %s102
      %p104 = scmp.eq.s32.totalorder %s15, 0
      %p105 = por %p103, %p104
      %p106 = scmp.le.s32.totalorder 1, %s9
      %p107 = scmp.lt.s32.totalorder %s9, 3
      %p108 = pnand %p106, %p107
      %p109 = pneg %p108
      // Predicated region
      $region9: #{a_call__.7} parent=5 // pred_check
        _
      $region10: #{a_call__.7} parent=5 // pred_check_branch
        %111 = sbr.rel (%p108) target = $region12
      $region11: #{a_call__.7} parent=5 // pred_region
        %s112 = ssub.s32 %s9, 1
      $region12: #{a_call__.7} parent=5 // pred_fallthru
        _
      %p113 = scmp.lt.s32.totalorder %s9, 2
      // Predicated region
      $region13: #{a_call__.7} parent=5 // pred_check
        %p114 = pneg %p113
      $region14: #{a_call__.7} parent=5 // pred_check_branch
        %116 = sbr.rel (%p114) target = $region16
      $region15: #{a_call__.7} parent=5 // pred_region
        // Predicated region
        $region17: #{a_call__.7} parent=15 // pred_check
          %p117 = pneg %p43
        $region18: #{a_call__.7} parent=15 // pred_check_branch
          %119 = sbr.rel (%p117) target = $region20
        $region19: #{a_call__.7} parent=15 // pred_region
          %s120 = smul.u32 8, %s17
          %p121 = scmp.lt.s32.totalorder %s16, 1
          %s122 = scalar_select %p121, %s16, 1
          %p123 = scmp.lt.s32.totalorder %s120, 7
          %s124 = scalar_select %p123, %s120, 7
          %s125 = smul.addr %s122, 8
          %s126 = sadd.s32 %s124, %s125
          %s127 = smul.addr %s126, 8
          %s128 = scalar_lea.vmem %s0, %s127
          %s129 = smul.u32 8, %s17
        $region20: #{a_call__.7} parent=15 // pred_fallthru
          _
        // Predicated region
        $region21: #{a_call__.7} parent=15 // pred_check
          %p130 = pneg %p71
        $region22: #{a_call__.7} parent=15 // pred_check_branch
          %132 = sbr.rel (%p130) target = $region24
        $region23: #{a_call__.7} parent=15 // pred_region
          %s133 = smul.u32 8, %s17
          %p134 = scmp.lt.s32.totalorder %s16, 1
          %s135 = scalar_select %p134, %s16, 1
          %p136 = scmp.lt.s32.totalorder %s133, 7
          %s137 = scalar_select %p136, %s133, 7
          %s138 = smul.addr %s135, 8
          %s139 = sadd.s32 %s137, %s138
          %s140 = smul.addr %s139, 8
          %s141 = scalar_lea.vmem %s1, %s140
          %s142 = smul.u32 8, %s17
        $region24: #{a_call__.7} parent=15 // pred_fallthru
          _
      $region16: #{a_call__.7} parent=5 // pred_fallthru
        _
      %p143 = scmp.le.s32.totalorder 1, %s9
      %p144 = scmp.lt.s32.totalorder %s9, 3
      %p145 = pnand %p143, %p144
      %p146 = pneg %p145
      // Predicated region
      $region25: #{a_call__.7} parent=5 // pred_check
        _
      $region26: #{a_call__.7} parent=5 // pred_check_branch
        %148 = sbr.rel (%p145) target = $region28
      $region27: #{a_call__.7} parent=5 // pred_region
        %s149 = ssub.s32 %s9, 1
        %s150 = smul.u32 8, %s19
        %p151 = scmp.lt.s32.totalorder %s18, 1
        %s152 = scalar_select %p151, %s18, 1
        %p153 = scmp.lt.s32.totalorder %s150, 7
        %s154 = scalar_select %p153, %s150, 7
        %s155 = smul.addr %s152, 8
        %s156 = sadd.s32 %s154, %s155
        %s157 = smul.addr %s156, 8
        %s158 = scalar_lea.vmem %s0, %s157
        %p159 = pneg %p49
        %p160 = pneg %p46
        %s161 = smul.u32 8, %s19
        %p162 = scmp.lt.s32.totalorder %s18, 1
        %s163 = scalar_select %p162, %s18, 1
        %p164 = scmp.lt.s32.totalorder %s161, 7
        %s165 = scalar_select %p164, %s161, 7
        %s166 = smul.addr %s163, 8
        %s167 = sadd.s32 %s165, %s166
        %s168 = smul.addr %s167, 8
        %s169 = scalar_lea.vmem %s1, %s168
        %p170 = pneg %p77
        %p171 = pneg %p74
        %p172 = pneg %p98
        %p173 = pneg %p95
        %s174 = smul.u32 8, %s19
        %p175 = scmp.lt.s32.totalorder %s18, 1
        %s176 = scalar_select %p175, %s18, 1
        %p177 = scmp.lt.s32.totalorder %s174, 7
        %s178 = scalar_select %p177, %s174, 7
        %s179 = smul.addr %s176, 8
        %s180 = sadd.s32 %s178, %s179
        %s181 = smul.addr %s180, 8
        %s182 = scalar_lea.vmem %s0, %s181
        %s183 = smul.u32 8, %s19
        %s184 = smul.u32 8, %s19
        %p185 = scmp.lt.s32.totalorder %s18, 1
        %s186 = scalar_select %p185, %s18, 1
        %p187 = scmp.lt.s32.totalorder %s184, 7
        %s188 = scalar_select %p187, %s184, 7
        %s189 = smul.addr %s186, 8
        %s190 = sadd.s32 %s188, %s189
        %s191 = smul.addr %s190, 8
        %s192 = scalar_lea.vmem %s1, %s191
        %s193 = smul.u32 8, %s19
        %p194 = scmp.eq.s32.totalorder %s18, 0
        %p195 = scmp.eq.s32.totalorder %s19, 0
        %p196 = pnand %p194, %p195
        %p197 = pneg %p196
        // Predicated region
        $region29: #{a_call__.7} parent=27 // pred_check
          _
        $region30: #{a_call__.7} parent=27 // pred_check_branch
          %199 = sbr.rel (%p196) target = $region32
        $region31: #{a_call__.7} parent=27 // pred_region
          %200 = vst [vmem:[#allocation2] sm:$0xff] 0.0
          %201 = vst [vmem:[#allocation2 + $0x8] sm:$0xff] 0.0
          %202 = vst [vmem:[#allocation2 + $0x10] sm:$0xff] 0.0
          %203 = vst [vmem:[#allocation2 + $0x18] sm:$0xff] 0.0
          %204 = vst [vmem:[#allocation2 + $0x20] sm:$0xff] 0.0
          %205 = vst [vmem:[#allocation2 + $0x28] sm:$0xff] 0.0
          %206 = vst [vmem:[#allocation2 + $0x30] sm:$0xff] 0.0
          %207 = vst [vmem:[#allocation2 + $0x38] sm:$0xff] 0.0
        $region32: #{a_call__.7} parent=27 // pred_fallthru
          _
        %v208 = vld [vmem:[#allocation2] sm:$0xff]
        %v209 = vld [vmem:[#allocation2 + $0x8] sm:$0xff]
        %v210 = vld [vmem:[#allocation2 + $0x10] sm:$0xff]
        %v211 = vld [vmem:[#allocation2 + $0x18] sm:$0xff]
        %v212 = vld [vmem:[#allocation2 + $0x20] sm:$0xff]
        %v213 = vld [vmem:[#allocation2 + $0x28] sm:$0xff]
        %v214 = vld [vmem:[#allocation2 + $0x30] sm:$0xff]
        %v215 = vld [vmem:[#allocation2 + $0x38] sm:$0xff]
        %v216 = vld [vmem:[%s182] sm:$0xff]
        %v217 = vld [vmem:[%s182 + $0x8] sm:$0xff]
        %v218 = vld [vmem:[%s182 + $0x10] sm:$0xff]
        %v219 = vld [vmem:[%s182 + $0x18] sm:$0xff]
        %v220 = vld [vmem:[%s182 + $0x20] sm:$0xff]
        %v221 = vld [vmem:[%s182 + $0x28] sm:$0xff]
        %v222 = vld [vmem:[%s182 + $0x30] sm:$0xff]
        %v223 = vld [vmem:[%s182 + $0x38] sm:$0xff]
        %v224 = vld [vmem:[%s192] sm:$0xff]
        %v225 = vld [vmem:[%s192 + $0x8] sm:$0xff]
        %v226 = vld [vmem:[%s192 + $0x10] sm:$0xff]
        %v227 = vld [vmem:[%s192 + $0x18] sm:$0xff]
        %v228 = vld [vmem:[%s192 + $0x20] sm:$0xff]
        %v229 = vld [vmem:[%s192 + $0x28] sm:$0xff]
        %v230 = vld [vmem:[%s192 + $0x30] sm:$0xff]
        %v231 = vld [vmem:[%s192 + $0x38] sm:$0xff]
        %v232 = vsub.f32 %v216, %v224
        %v233 = vsub.f32 %v217, %v225
        %v234 = vsub.f32 %v218, %v226
        %v235 = vsub.f32 %v219, %v227
        %v236 = vsub.f32 %v220, %v228
        %v237 = vsub.f32 %v221, %v229
        %v238 = vsub.f32 %v222, %v230
        %v239 = vsub.f32 %v223, %v231
        %v240 = vand.u32 2147483647, %v232
        %v241 = vand.u32 2147483647, %v233
        %v242 = vand.u32 2147483647, %v234
        %v243 = vand.u32 2147483647, %v235
        %v244 = vand.u32 2147483647, %v236
        %v245 = vand.u32 2147483647, %v237
        %v246 = vand.u32 2147483647, %v238
        %v247 = vand.u32 2147483647, %v239
        %v248 = vadd.f32 %v208, %v240
        %v249 = vadd.f32 %v209, %v241
        %v250 = vadd.f32 %v210, %v242
        %v251 = vadd.f32 %v211, %v243
        %v252 = vadd.f32 %v212, %v244
        %v253 = vadd.f32 %v213, %v245
        %v254 = vadd.f32 %v214, %v246
        %v255 = vadd.f32 %v215, %v247
        %256 = vst [vmem:[#allocation2] sm:$0xff] %v248
        %257 = vst [vmem:[#allocation2 + $0x8] sm:$0xff] %v249
        %258 = vst [vmem:[#allocation2 + $0x10] sm:$0xff] %v250
        %259 = vst [vmem:[#allocation2 + $0x18] sm:$0xff] %v251
        %260 = vst [vmem:[#allocation2 + $0x20] sm:$0xff] %v252
        %261 = vst [vmem:[#allocation2 + $0x28] sm:$0xff] %v253
        %262 = vst [vmem:[#allocation2 + $0x30] sm:$0xff] %v254
        %263 = vst [vmem:[#allocation2 + $0x38] sm:$0xff] %v255
        %p264 = scmp.eq.s32.totalorder %s18, 1
        %p265 = pnand %p264, %p195
        %p266 = pneg %p265
        // Predicated region
        $region33: #{a_call__.7} parent=27 // pred_check
          _
        $region34: #{a_call__.7} parent=27 // pred_check_branch
          %268 = sbr.rel (%p265) target = $region36
        $region35: #{a_call__.7} parent=27 // pred_region
          %v269 = vld [vmem:[#allocation2] sm:$0xff]
          %v270 = vld [vmem:[#allocation2 + $0x8] sm:$0xff]
          %v271 = vld [vmem:[#allocation2 + $0x10] sm:$0xff]
          %v272 = vld [vmem:[#allocation2 + $0x18] sm:$0xff]
          %v273 = vld [vmem:[#allocation2 + $0x20] sm:$0xff]
          %v274 = vld [vmem:[#allocation2 + $0x28] sm:$0xff]
          %v275 = vld [vmem:[#allocation2 + $0x30] sm:$0xff]
          %v276 = vld [vmem:[#allocation2 + $0x38] sm:$0xff]
          %v277 = vadd.f32 %v269, %v270
          %v278 = vadd.f32 %v277, %v271
          %v279 = vadd.f32 %v278, %v272
          %v280 = vadd.f32 %v279, %v273
          %v281 = vadd.f32 %v280, %v274
          %v282 = vadd.f32 %v281, %v275
          %v283 = vadd.f32 %v282, %v276
          %284 = vadd.xlane.f32.xlu0 %v283
          %v285 = vpop.xlane.xlu0 %284
          %v286 = vrot.slane %v285, 4
          %v287 = vadd.f32 %v285, %v286
          %v288 = vrot.slane %v287, 2
          %v289 = vadd.f32 %v287, %v288
          %v290 = vrot.slane %v289, 1
          %v291 = vadd.f32 %v289, %v290
          %s292 = vtos %v291
          %v293 = vstv %s292
          %v294 = vadd.f32 %v293, 0.0
          %vm295 = vcmask 0
          %296 = vst.msk [vmem:[#allocation3] sm:$0x1] %vm295, %v294
        $region36: #{a_call__.7} parent=27 // pred_fallthru
          _
        // Predicated region
        $region37: #{a_call__.7} parent=27 // pred_check
          %p297 = pneg %p95
        $region38: #{a_call__.7} parent=27 // pred_check_branch
          %299 = sbr.rel (%p297) target = $region40
        $region39: #{a_call__.7} parent=27 // pred_region
          %s301 = ssub.s32 16, 16
          %302 = vsyncadd [#allocation4], %s301
          %s304 = sshll.u32 [#allocation3], 4
          %s305 = int_to_ptr.vmem [resolvable:$true] %s304
          %307 = dma.vmem_to_hbm [thread:$0]  %s305, 16, %s2, [#allocation4]
        $region40: #{a_call__.7} parent=27 // pred_fallthru
          _
        // Predicated region
        $region41: #{a_call__.7} parent=27 // pred_check
          %p308 = pneg %p95
        $region42: #{a_call__.7} parent=27 // pred_check_branch
          %310 = sbr.rel (%p308) target = $region44
        $region43: #{a_call__.7} parent=27 // pred_region
          %311 = dma.done [#allocation4], 16
        $region44: #{a_call__.7} parent=27 // pred_fallthru
          _
      $region28: #{a_call__.7} parent=5 // pred_fallthru
        _
      %p312 = scmp.le.s32.totalorder 2, %s9
      // Predicated region
      $region45: #{a_call__.7} parent=5 // pred_check
        %p313 = pneg %p312
      $region46: #{a_call__.7} parent=5 // pred_check_branch
        %315 = sbr.rel (%p313) target = $region48
      $region47: #{a_call__.7} parent=5 // pred_region
        %s316 = ssub.s32 %s9, 2
      $region48: #{a_call__.7} parent=5 // pred_fallthru
        _
    $region6: #{a_call__.7} parent=1 // loop_footer
      %s13 = sadd.s32 1, %s9
    $region7: #{a_call__.7} parent=1 // loop_footer_branch
      %8 = sbr.rel target = $region3
    $region8: #{a_call__.7} parent=1 // loop_exit
      _
    %317 = vsyncpa [#allocation4], 1
    %s318 = scalar_lea.sflag [#allocation4], 1
    %319 = vsyncpa %s318, 1

</llo_original>
